<compile_context>
chip_gen: v6e
topology: v6e:2x2x1
jax: 0.10.0
libtpu: 0.0.40
codegen_flags: <defaults>
</compile_context>

<pallas_src>
import functools

import jax
import jax.numpy as jnp
from jax.experimental import pallas as pl
from jax.experimental.pallas import tpu as pltpu


# ----------------------------------------------------------------------------
# Kernel: one TransformerBlock layer per grid step, whole batch-chunk at once.
# Grid = (batch_chunk, layer); the output block is constant over the layer axis
# and acts as the resident running hidden state.
# ----------------------------------------------------------------------------
def _encoder_kernel(*refs, num_heads, head_size, block_batch, seq_len, has_mask):
    if has_mask:
        (x_ref, bias_ref,
         wk_ref, wq_ref, wv_ref, wo_ref, bo_ref,
         g1_ref, b1_ref, w1_ref, bf1_ref, w2_ref, bf2_ref, g2_ref, b2_ref,
         o_ref) = refs
    else:
        (x_ref,
         wk_ref, wq_ref, wv_ref, wo_ref, bo_ref,
         g1_ref, b1_ref, w1_ref, bf1_ref, w2_ref, bf2_ref, g2_ref, b2_ref,
         o_ref) = refs
        bias_ref = None

    layer = pl.program_id(1)

    # First layer of this batch chunk: seed the resident hidden state.
    @pl.when(layer == 0)
    def _():
        o_ref[...] = x_ref[...]

    x = o_ref[...]                      # [Bb*S, E] f32 running hidden state
    Bb, S, H, Dh = block_batch, seq_len, num_heads, head_size
    E = x.shape[-1]

    cd = wk_ref.dtype                   # matmul compute dtype (f32 or bf16)

    def mm(a, b):                       # 2-D MXU matmul, f32 accumulation
        return jnp.dot(a.astype(cd), b.astype(cd),
                       preferred_element_type=jnp.float32)

    def bmm(spec, a, b):                # batched (over Bb) matmul, f32 acc
        return jnp.einsum(spec, a.astype(cd), b.astype(cd),
                          preferred_element_type=jnp.float32)

    wk, wq, wv, wo = wk_ref[0], wq_ref[0], wv_ref[0], wo_ref[0]

    # Big flattened-row projections (good MXU M dimension).
    q = mm(x, wq)                       # [Bb*S, E]
    k = mm(x, wk)
    v = mm(x, wv)

    q3 = q.reshape(Bb, S, E)            # leading-dim split only (tile-aligned)
    k3 = k.reshape(Bb, S, E)
    v3 = v.reshape(Bb, S, E)

    # q,k each scaled by head_size^(1/4) in torch -> scores scaled by 1/sqrt(Dh)
    sm_scale = 1.0 / (float(Dh) ** 0.5)
    if has_mask:
        bias = bias_ref[...]            # [1 or Bb, S, S] additive (0 / -1e9)

    # Per-head attention, batched over the batch-chunk; accumulate the output
    # projection per head instead of concatenating head outputs.
    attn = jnp.zeros((Bb * S, E), jnp.float32)
    for h in range(H):
        lo = h * Dh
        qh = q3[:, :, lo:lo + Dh]       # [Bb, S, Dh]
        kh = k3[:, :, lo:lo + Dh]
        vh = v3[:, :, lo:lo + Dh]
        s = bmm('bqd,bkd->bqk', qh, kh) * sm_scale        # [Bb, S, S]
        if has_mask:
            s = s + bias
        s = s - jnp.max(s, axis=-1, keepdims=True)
        p = jnp.exp(s)
        p = p * pl.reciprocal(jnp.sum(p, axis=-1, keepdims=True), approx=True)
        ctx = bmm('bqk,bkd->bqd', p, vh)                  # [Bb, S, Dh]
        attn = attn + mm(ctx.reshape(Bb * S, Dh), wo[lo:lo + Dh, :])
    attn = attn + bo_ref[0]                               # [Bb*S, E]

    def layernorm(y, gamma, beta):      # f32 elementwise (v5e-safe)
        mu = jnp.mean(y, axis=-1, keepdims=True)
        var = jnp.mean(jnp.square(y - mu), axis=-1, keepdims=True)
        return (y - mu) * jax.lax.rsqrt(var + 1e-5) * gamma + beta

    # residual + norm1   (dropout == identity in eval mode)
    h1 = layernorm(attn + x, g1_ref[0], b1_ref[0])

    # feed forward: Linear -> ReLU -> Linear (flattened rows)
    ff = mm(h1, w1_ref[0]) + bf1_ref[0]
    ff = jnp.maximum(ff, 0.0)
    ff = mm(ff, w2_ref[0]) + bf2_ref[0]

    # residual + norm2 -> write back resident hidden state
    o_ref[...] = layernorm(ff + h1, g2_ref[0], b2_ref[0]).astype(o_ref.dtype)


# ----------------------------------------------------------------------------
# Wrapper: single pallas_call over (batch_chunks, num_layers)
# ----------------------------------------------------------------------------
def encoder_forward(hidden, mask, params, *, num_heads, head_size,
                    block_batch=None, compute_dtype=jnp.float32):
    B, S, E = hidden.shape
    L = params["wk"].shape[0]
    F = params["w1"].shape[-1]

    if block_batch is None:
        # Whole batch per grid step (biggest MXU M / fewest steps).  On v7x
        # (2 TensorCores) pick block_batch = B // 2 to get >= 2 parallel steps.
        block_batch = B
    assert B % block_batch == 0
    nchunks = B // block_batch
    rows = block_batch * S

    x2 = hidden.astype(jnp.float32).reshape(B * S, E)   # lane/sublane-dense slab

    cd = compute_dtype
    wk = params["wk"].astype(cd)
    wq = params["wq"].astype(cd)
    wv = params["wv"].astype(cd)
    wo = params["wo"].astype(cd)
    w1 = params["w1"].astype(cd)
    w2 = params["w2"].astype(cd)

    has_mask = mask is not None

    in_specs = [pl.BlockSpec((rows, E), lambda c, l: (c, 0))]
    inputs = [x2]

    if has_mask:
        m = jnp.asarray(mask)
        while m.ndim < 3:
            m = m[None]
        if m.ndim == 4:                 # e.g. [B, 1, S, S] (shared over heads)
            m = m[:, 0]
        Bm = B if m.shape[0] == B else 1
        m = jnp.broadcast_to(m, (Bm, S, S))
        bias = jnp.where(m == 0, jnp.float32(-1e9), jnp.float32(0.0))
        if Bm == 1:
            in_specs.append(pl.BlockSpec((1, S, S), lambda c, l: (0, 0, 0)))
        else:
            in_specs.append(pl.BlockSpec((block_batch, S, S),
                                         lambda c, l: (c, 0, 0)))
        inputs.append(bias)

    wmap = lambda c, l: (l, 0, 0)       # stream one layer's params per step
    in_specs += [
        pl.BlockSpec((1, E, E), wmap),  # wk
        pl.BlockSpec((1, E, E), wmap),  # wq
        pl.BlockSpec((1, E, E), wmap),  # wv
        pl.BlockSpec((1, E, E), wmap),  # wo
        pl.BlockSpec((1, 1, E), wmap),  # bo
        pl.BlockSpec((1, 1, E), wmap),  # ln1 gamma
        pl.BlockSpec((1, 1, E), wmap),  # ln1 beta
        pl.BlockSpec((1, E, F), wmap),  # ff w1
        pl.BlockSpec((1, 1, F), wmap),  # ff b1
        pl.BlockSpec((1, F, E), wmap),  # ff w2
        pl.BlockSpec((1, 1, E), wmap),  # ff b2
        pl.BlockSpec((1, 1, E), wmap),  # ln2 gamma
        pl.BlockSpec((1, 1, E), wmap),  # ln2 beta
    ]
    inputs += [wk, wq, wv, wo, params["bo"], params["g1"], params["b1"],
               w1, params["bf1"], w2, params["bf2"], params["g2"], params["b2"]]

    kern = functools.partial(
        _encoder_kernel, num_heads=num_heads, head_size=head_size,
        block_batch=block_batch, seq_len=S, has_mask=has_mask)

    out = pl.pallas_call(
        kern,
        out_shape=jax.ShapeDtypeStruct((B * S, E), jnp.float32),
        grid=(nchunks, L),
        in_specs=in_specs,
        out_specs=pl.BlockSpec((rows, E), lambda c, l: (c, 0)),
        compiler_params=pltpu.CompilerParams(
            dimension_semantics=("parallel", "arbitrary")),
    )(*inputs)
    return out.reshape(B, S, E)


# ----------------------------------------------------------------------------
# Deterministic stacked-parameter init (shapes follow the PyTorch __init__)
# ----------------------------------------------------------------------------
def init_params(key, embed_size, num_layers, num_heads, forward_expansion):
    E = embed_size
    F = forward_expansion * embed_size
    L = num_layers
    ks = jax.random.split(key, 9)
    se = 1.0 / (E ** 0.5)
    sf = 1.0 / (F ** 0.5)
    u = lambda k, shape, s: jax.random.uniform(k, shape, jnp.float32, -s, s)
    return dict(
        wk=u(ks[0], (L, E, E), se),
        wq=u(ks[1], (L, E, E), se),
        wv=u(ks[2], (L, E, E), se),
        wo=u(ks[3], (L, E, E), se),
        bo=u(ks[4], (L, 1, E), se),
        g1=jnp.ones((L, 1, E), jnp.float32),
        b1=jnp.zeros((L, 1, E), jnp.float32),
        w1=u(ks[5], (L, E, F), se),
        bf1=u(ks[6], (L, 1, F), se),
        w2=u(ks[7], (L, F, E), sf),
        bf2=u(ks[8], (L, 1, E), sf),
        g2=jnp.ones((L, 1, E), jnp.float32),
        b2=jnp.zeros((L, 1, E), jnp.float32),
    )


# ----------------------------------------------------------------------------
# Pure-JAX reference (mirrors the PyTorch forward, eval mode) for verification
# ----------------------------------------------------------------------------
def encoder_reference(hidden, mask, params, *, num_heads, head_size):
    B, S, E = hidden.shape
    L = params["wk"].shape[0]
    H, Dh = num_heads, head_size

    if mask is None:
        bias = jnp.zeros((1, S, S), jnp.float32)
    else:
        m = jnp.asarray(mask)
        while m.ndim < 3:
            m = m[None]
        if m.ndim == 4:
            m = m[:, 0]
        m = jnp.broadcast_to(m, (m.shape[0], S, S))
        bias = jnp.where(m == 0, -1e9, 0.0).astype(jnp.float32)
    bias = bias[:, None, :, :]

    def ln(y, g, b):
        mu = y.mean(-1, keepdims=True)
        var = ((y - mu) ** 2).mean(-1, keepdims=True)
        return (y - mu) / jnp.sqrt(var + 1e-5) * g + b

    scale = 1.0 / (float(Dh) ** 0.25)
    x = hidden.astype(jnp.float32)
    for l in range(L):
        k = (x @ params["wk"][l]) * scale
        q = (x @ params["wq"][l]) * scale
        v = x @ params["wv"][l]
        split = lambda t: t.reshape(B, S, H, Dh).transpose(0, 2, 1, 3)
        kh, qh, vh = split(k), split(q), split(v)
        scores = jnp.einsum("bhqd,bhkd->bhqk", qh, kh) + bias
        probs = jax.nn.softmax(scores, axis=-1)
        attn = jnp.einsum("bhqk,bhkd->bhqd", probs, vh)
        attn = attn.transpose(0, 2, 1, 3).reshape(B, S, E)
        attn = attn @ params["wo"][l] + params["bo"][l]
        h1 = ln(attn + x, params["g1"][l], params["b1"][l])
        ff = (jax.nn.relu(h1 @ params["w1"][l] + params["bf1"][l])
              @ params["w2"][l] + params["bf2"][l])
        x = ln(ff + h1, params["g2"][l], params["b2"][l])
    return x


if __name__ == "__main__":
    # Small config: embed=32, layers=2, heads=4, expansion=4, dropout (identity)
    B, S, E = 2, 8, 32
    NUM_LAYERS, NUM_HEADS, FWD_EXP = 2, 4, 4
    HEAD_SIZE = E // NUM_HEADS

    key = jax.random.PRNGKey(0)
    k_x, k_p, k_m = jax.random.split(key, 3)
    hidden = jax.random.normal(k_x, (B, S, E), jnp.float32)
    params = init_params(k_p, E, NUM_LAYERS, NUM_HEADS, FWD_EXP)

    # 1) no mask (no bias array materialized), f32 matmuls
    out = encoder_forward(hidden, None, params,
                          num_heads=NUM_HEADS, head_size=HEAD_SIZE)
    out = jax.block_until_ready(out)
    ref = encoder_reference(hidden, None, params,
                            num_heads=NUM_HEADS, head_size=HEAD_SIZE)
    assert out.shape == (B, S, E)
    assert bool(jnp.all(jnp.isfinite(out)))
    assert bool(jnp.allclose(out, ref, atol=1e-2, rtol=1e-2)), "mismatch (no mask)"

    # 2) key-padding mask (broadcast over heads), f32 matmuls
    mask = (jax.random.uniform(k_m, (B, 1, S)) > 0.2).astype(jnp.int32)
    out_m = jax.block_until_ready(
        encoder_forward(hidden, mask, params,
                        num_heads=NUM_HEADS, head_size=HEAD_SIZE))
    ref_m = encoder_reference(hidden, mask, params,
                              num_heads=NUM_HEADS, head_size=HEAD_SIZE)
    assert bool(jnp.allclose(out_m, ref_m, atol=1e-2, rtol=1e-2)), "mismatch (mask)"

    # 3) bf16 matmul weights (MXU-friendly on v6e/v7x), f32 accum/elementwise
    out_bf = jax.block_until_ready(
        encoder_forward(hidden, None, params, num_heads=NUM_HEADS,
                        head_size=HEAD_SIZE, compute_dtype=jnp.bfloat16))
    assert bool(jnp.all(jnp.isfinite(out_bf)))
    assert bool(jnp.allclose(out_bf, ref, atol=5e-2, rtol=5e-2)), "mismatch (bf16)"

    print("KERNEL_OK")
</pallas_src>

<mosaic_0001>
module attributes {stable_mosaic.version = 11 : i64} {
  func.func @_encoder_kernel(%arg0: i32, %arg1: i32, %arg2: memref<16x32xf32, #tpu.memory_space<vmem>>, %arg3: memref<1x32x32xf32, #tpu.memory_space<vmem>>, %arg4: memref<1x32x32xf32, #tpu.memory_space<vmem>>, %arg5: memref<1x32x32xf32, #tpu.memory_space<vmem>>, %arg6: memref<1x32x32xf32, #tpu.memory_space<vmem>>, %arg7: memref<1x1x32xf32, #tpu.memory_space<vmem>>, %arg8: memref<1x1x32xf32, #tpu.memory_space<vmem>>, %arg9: memref<1x1x32xf32, #tpu.memory_space<vmem>>, %arg10: memref<1x32x128xf32, #tpu.memory_space<vmem>>, %arg11: memref<1x1x128xf32, #tpu.memory_space<vmem>>, %arg12: memref<1x128x32xf32, #tpu.memory_space<vmem>>, %arg13: memref<1x1x32xf32, #tpu.memory_space<vmem>>, %arg14: memref<1x1x32xf32, #tpu.memory_space<vmem>>, %arg15: memref<1x1x32xf32, #tpu.memory_space<vmem>>, %arg16: memref<16x32xf32, #tpu.memory_space<vmem>>) attributes {dimension_semantics = [#tpu.dimension_semantics<parallel>, #tpu.dimension_semantics<arbitrary>], iteration_bounds = array<i64: 1, 2>, scalar_prefetch = 0 : i64, scratch_operands = 0 : i64, tpu.core_type = #tpu.core_type<tc>, window_params = [{transform_indices = @transform_0, window_bounds = array<i64: 16, 32>}, {transform_indices = @transform_1, window_bounds = array<i64: 1, 32, 32>}, {transform_indices = @transform_2, window_bounds = array<i64: 1, 32, 32>}, {transform_indices = @transform_3, window_bounds = array<i64: 1, 32, 32>}, {transform_indices = @transform_4, window_bounds = array<i64: 1, 32, 32>}, {transform_indices = @transform_5, window_bounds = array<i64: 1, 1, 32>}, {transform_indices = @transform_6, window_bounds = array<i64: 1, 1, 32>}, {transform_indices = @transform_7, window_bounds = array<i64: 1, 1, 32>}, {transform_indices = @transform_8, window_bounds = array<i64: 1, 32, 128>}, {transform_indices = @transform_9, window_bounds = array<i64: 1, 1, 128>}, {transform_indices = @transform_10, window_bounds = array<i64: 1, 128, 32>}, {transform_indices = @transform_11, window_bounds = array<i64: 1, 1, 32>}, {transform_indices = @transform_12, window_bounds = array<i64: 1, 1, 32>}, {transform_indices = @transform_13, window_bounds = array<i64: 1, 1, 32>}, {transform_indices = @transform_14, window_bounds = array<i64: 16, 32>}]} {
    %c0_i32 = arith.constant 0 : i32
    %0 = arith.cmpi eq, %arg1, %c0_i32 : i32
    %1 = arith.extui %0 : i1 to i32
    %c0_i32_0 = arith.constant 0 : i32
    %2 = arith.cmpi ne, %1, %c0_i32_0 : i32
    scf.if %2 {
      %c0_83 = arith.constant 0 : index
      %c0_84 = arith.constant 0 : index
      %178 = vector.load %arg2[%c0_83, %c0_84] : memref<16x32xf32, #tpu.memory_space<vmem>>, vector<16x32xf32>
      %c0_85 = arith.constant 0 : index
      %c0_86 = arith.constant 0 : index
      %179 = vector.load %arg16[%c0_85, %c0_86] : memref<16x32xf32, #tpu.memory_space<vmem>>, vector<16x32xf32>
      tpu.vector_store %arg16[%c0_85, %c0_86], %178 {strides = array<i32>} : memref<16x32xf32, #tpu.memory_space<vmem>>, vector<16x32xf32>,
    } else {
    }
    %c0 = arith.constant 0 : index
    %c0_1 = arith.constant 0 : index
    %3 = vector.load %arg16[%c0, %c0_1] : memref<16x32xf32, #tpu.memory_space<vmem>>, vector<16x32xf32>
    %c0_2 = arith.constant 0 : index
    %c0_3 = arith.constant 0 : index
    %c0_4 = arith.constant 0 : index
    %4 = vector.load %arg3[%c0_2, %c0_3, %c0_4] : memref<1x32x32xf32, #tpu.memory_space<vmem>>, vector<1x32x32xf32>
    %5 = vector.shape_cast %4 : vector<1x32x32xf32> to vector<32x32xf32>
    %c0_5 = arith.constant 0 : index
    %c0_6 = arith.constant 0 : index
    %c0_7 = arith.constant 0 : index
    %6 = vector.load %arg4[%c0_5, %c0_6, %c0_7] : memref<1x32x32xf32, #tpu.memory_space<vmem>>, vector<1x32x32xf32>
    %7 = vector.shape_cast %6 : vector<1x32x32xf32> to vector<32x32xf32>
    %c0_8 = arith.constant 0 : index
    %c0_9 = arith.constant 0 : index
    %c0_10 = arith.constant 0 : index
    %8 = vector.load %arg5[%c0_8, %c0_9, %c0_10] : memref<1x32x32xf32, #tpu.memory_space<vmem>>, vector<1x32x32xf32>
    %9 = vector.shape_cast %8 : vector<1x32x32xf32> to vector<32x32xf32>
    %c0_11 = arith.constant 0 : index
    %c0_12 = arith.constant 0 : index
    %c0_13 = arith.constant 0 : index
    %10 = vector.load %arg6[%c0_11, %c0_12, %c0_13] : memref<1x32x32xf32, #tpu.memory_space<vmem>>, vector<1x32x32xf32>
    %11 = vector.shape_cast %10 : vector<1x32x32xf32> to vector<32x32xf32>
    %cst = arith.constant dense<0.000000e+00> : vector<16x32xf32>
    %12 = tpu.matmul %3, %7, %cst {dimension_numbers = #tpu.dot_dimension_numbers<[1], [0], [0], [1], [0, 0, 1, 1], [], []>} : vector<16x32xf32>, vector<32x32xf32>, vector<16x32xf32> -> vector<16x32xf32>
    %cst_14 = arith.constant dense<0.000000e+00> : vector<16x32xf32>
    %13 = tpu.matmul %3, %5, %cst_14 {dimension_numbers = #tpu.dot_dimension_numbers<[1], [0], [0], [1], [0, 0, 1, 1], [], []>} : vector<16x32xf32>, vector<32x32xf32>, vector<16x32xf32> -> vector<16x32xf32>
    %cst_15 = arith.constant dense<0.000000e+00> : vector<16x32xf32>
    %14 = tpu.matmul %3, %9, %cst_15 {dimension_numbers = #tpu.dot_dimension_numbers<[1], [0], [0], [1], [0, 0, 1, 1], [], []>} : vector<16x32xf32>, vector<32x32xf32>, vector<16x32xf32> -> vector<16x32xf32>
    %15 = vector.shape_cast %12 : vector<16x32xf32> to vector<2x8x32xf32>
    %16 = vector.shape_cast %13 : vector<16x32xf32> to vector<2x8x32xf32>
    %17 = vector.shape_cast %14 : vector<16x32xf32> to vector<2x8x32xf32>
    %cst_16 = arith.constant 0.000000e+00 : f32
    %18 = vector.broadcast %cst_16 : f32 to vector<16x32xf32>
    %19 = vector.extract_strided_slice %15 {offsets = [0, 0, 0], sizes = [2, 8, 8], strides = [1, 1, 1]} : vector<2x8x32xf32> to vector<2x8x8xf32>
    %20 = vector.extract_strided_slice %16 {offsets = [0, 0, 0], sizes = [2, 8, 8], strides = [1, 1, 1]} : vector<2x8x32xf32> to vector<2x8x8xf32>
    %21 = vector.extract_strided_slice %17 {offsets = [0, 0, 0], sizes = [2, 8, 8], strides = [1, 1, 1]} : vector<2x8x32xf32> to vector<2x8x8xf32>
    "tpu.trace_start"() <{level = 10 : i32, message = "bqd,bkd->bqk"}> : () -> ()
    %cst_17 = arith.constant dense<0.000000e+00> : vector<2x8x8xf32>
    %22 = tpu.matmul %19, %20, %cst_17 {dimension_numbers = #tpu.dot_dimension_numbers<[2], [2], [1], [1], [0, 0, 0, 1, 1, 1], [0], [0]>} : vector<2x8x8xf32>, vector<2x8x8xf32>, vector<2x8x8xf32> -> vector<2x8x8xf32>
    "tpu.trace_stop"() : () -> ()
    %cst_18 = arith.constant 0.353553385 : f32
    %23 = vector.broadcast %cst_18 : f32 to vector<2x8x8xf32>
    %24 = arith.mulf %22, %23 : vector<2x8x8xf32>
    %cst_19 = arith.constant dense<0xFF800000> : vector<2x8xf32>
    %25 = vector.multi_reduction <maximumf>, %24, %cst_19 [2] : vector<2x8x8xf32> to vector<2x8xf32>
    %26 = vector.shape_cast %25 : vector<2x8xf32> to vector<2x8x1xf32>
    %27 = vector.broadcast %26 : vector<2x8x1xf32> to vector<2x8x8xf32>
    %28 = arith.subf %24, %27 : vector<2x8x8xf32>
    %29 = math.exp %28 : vector<2x8x8xf32>
    %cst_20 = arith.constant dense<0.000000e+00> : vector<2x8xf32>
    %30 = vector.multi_reduction <add>, %29, %cst_20 [2] : vector<2x8x8xf32> to vector<2x8xf32>
    %31 = vector.shape_cast %30 : vector<2x8xf32> to vector<2x8x1xf32>
    %32 = tpu.reciprocal %31 {approx = true} : vector<2x8x1xf32> -> vector<2x8x1xf32>
    %33 = vector.broadcast %32 : vector<2x8x1xf32> to vector<2x8x8xf32>
    %34 = arith.mulf %29, %33 : vector<2x8x8xf32>
    "tpu.trace_start"() <{level = 10 : i32, message = "bqk,bkd->bqd"}> : () -> ()
    %cst_21 = arith.constant dense<0.000000e+00> : vector<2x8x8xf32>
    %35 = tpu.matmul %34, %21, %cst_21 {dimension_numbers = #tpu.dot_dimension_numbers<[2], [1], [1], [2], [0, 0, 0, 1, 1, 2], [0], [0]>} : vector<2x8x8xf32>, vector<2x8x8xf32>, vector<2x8x8xf32> -> vector<2x8x8xf32>
    "tpu.trace_stop"() : () -> ()
    %36 = vector.shape_cast %35 : vector<2x8x8xf32> to vector<16x8xf32>
    %37 = vector.extract_strided_slice %11 {offsets = [0, 0], sizes = [8, 32], strides = [1, 1]} : vector<32x32xf32> to vector<8x32xf32>
    %cst_22 = arith.constant dense<0.000000e+00> : vector<16x32xf32>
    %38 = tpu.matmul %36, %37, %cst_22 {dimension_numbers = #tpu.dot_dimension_numbers<[1], [0], [0], [1], [0, 0, 1, 1], [], []>} : vector<16x8xf32>, vector<8x32xf32>, vector<16x32xf32> -> vector<16x32xf32>
    %39 = arith.addf %18, %38 : vector<16x32xf32>
    %40 = vector.extract_strided_slice %15 {offsets = [0, 0, 8], sizes = [2, 8, 8], strides = [1, 1, 1]} : vector<2x8x32xf32> to vector<2x8x8xf32>
    %41 = vector.extract_strided_slice %16 {offsets = [0, 0, 8], sizes = [2, 8, 8], strides = [1, 1, 1]} : vector<2x8x32xf32> to vector<2x8x8xf32>
    %42 = vector.extract_strided_slice %17 {offsets = [0, 0, 8], sizes = [2, 8, 8], strides = [1, 1, 1]} : vector<2x8x32xf32> to vector<2x8x8xf32>
    "tpu.trace_start"() <{level = 10 : i32, message = "bqd,bkd->bqk"}> : () -> ()
    %cst_23 = arith.constant dense<0.000000e+00> : vector<2x8x8xf32>
    %43 = tpu.matmul %40, %41, %cst_23 {dimension_numbers = #tpu.dot_dimension_numbers<[2], [2], [1], [1], [0, 0, 0, 1, 1, 1], [0], [0]>} : vector<2x8x8xf32>, vector<2x8x8xf32>, vector<2x8x8xf32> -> vector<2x8x8xf32>
    "tpu.trace_stop"() : () -> ()
    %cst_24 = arith.constant 0.353553385 : f32
    %44 = vector.broadcast %cst_24 : f32 to vector<2x8x8xf32>
    %45 = arith.mulf %43, %44 : vector<2x8x8xf32>
    %cst_25 = arith.constant dense<0xFF800000> : vector<2x8xf32>
    %46 = vector.multi_reduction <maximumf>, %45, %cst_25 [2] : vector<2x8x8xf32> to vector<2x8xf32>
    %47 = vector.shape_cast %46 : vector<2x8xf32> to vector<2x8x1xf32>
    %48 = vector.broadcast %47 : vector<2x8x1xf32> to vector<2x8x8xf32>
    %49 = arith.subf %45, %48 : vector<2x8x8xf32>
    %50 = math.exp %49 : vector<2x8x8xf32>
    %cst_26 = arith.constant dense<0.000000e+00> : vector<2x8xf32>
    %51 = vector.multi_reduction <add>, %50, %cst_26 [2] : vector<2x8x8xf32> to vector<2x8xf32>
    %52 = vector.shape_cast %51 : vector<2x8xf32> to vector<2x8x1xf32>
    %53 = tpu.reciprocal %52 {approx = true} : vector<2x8x1xf32> -> vector<2x8x1xf32>
    %54 = vector.broadcast %53 : vector<2x8x1xf32> to vector<2x8x8xf32>
    %55 = arith.mulf %50, %54 : vector<2x8x8xf32>
    "tpu.trace_start"() <{level = 10 : i32, message = "bqk,bkd->bqd"}> : () -> ()
    %cst_27 = arith.constant dense<0.000000e+00> : vector<2x8x8xf32>
    %56 = tpu.matmul %55, %42, %cst_27 {dimension_numbers = #tpu.dot_dimension_numbers<[2], [1], [1], [2], [0, 0, 0, 1, 1, 2], [0], [0]>} : vector<2x8x8xf32>, vector<2x8x8xf32>, vector<2x8x8xf32> -> vector<2x8x8xf32>
    "tpu.trace_stop"() : () -> ()
    %57 = vector.shape_cast %56 : vector<2x8x8xf32> to vector<16x8xf32>
    %58 = vector.extract_strided_slice %11 {offsets = [8, 0], sizes = [8, 32], strides = [1, 1]} : vector<32x32xf32> to vector<8x32xf32>
    %cst_28 = arith.constant dense<0.000000e+00> : vector<16x32xf32>
    %59 = tpu.matmul %57, %58, %cst_28 {dimension_numbers = #tpu.dot_dimension_numbers<[1], [0], [0], [1], [0, 0, 1, 1], [], []>} : vector<16x8xf32>, vector<8x32xf32>, vector<16x32xf32> -> vector<16x32xf32>
    %60 = arith.addf %39, %59 : vector<16x32xf32>
    %61 = vector.extract_strided_slice %15 {offsets = [0, 0, 16], sizes = [2, 8, 8], strides = [1, 1, 1]} : vector<2x8x32xf32> to vector<2x8x8xf32>
    %62 = vector.extract_strided_slice %16 {offsets = [0, 0, 16], sizes = [2, 8, 8], strides = [1, 1, 1]} : vector<2x8x32xf32> to vector<2x8x8xf32>
    %63 = vector.extract_strided_slice %17 {offsets = [0, 0, 16], sizes = [2, 8, 8], strides = [1, 1, 1]} : vector<2x8x32xf32> to vector<2x8x8xf32>
    "tpu.trace_start"() <{level = 10 : i32, message = "bqd,bkd->bqk"}> : () -> ()
    %cst_29 = arith.constant dense<0.000000e+00> : vector<2x8x8xf32>
    %64 = tpu.matmul %61, %62, %cst_29 {dimension_numbers = #tpu.dot_dimension_numbers<[2], [2], [1], [1], [0, 0, 0, 1, 1, 1], [0], [0]>} : vector<2x8x8xf32>, vector<2x8x8xf32>, vector<2x8x8xf32> -> vector<2x8x8xf32>
    "tpu.trace_stop"() : () -> ()
    %cst_30 = arith.constant 0.353553385 : f32
    %65 = vector.broadcast %cst_30 : f32 to vector<2x8x8xf32>
    %66 = arith.mulf %64, %65 : vector<2x8x8xf32>
    %cst_31 = arith.constant dense<0xFF800000> : vector<2x8xf32>
    %67 = vector.multi_reduction <maximumf>, %66, %cst_31 [2] : vector<2x8x8xf32> to vector<2x8xf32>
    %68 = vector.shape_cast %67 : vector<2x8xf32> to vector<2x8x1xf32>
    %69 = vector.broadcast %68 : vector<2x8x1xf32> to vector<2x8x8xf32>
    %70 = arith.subf %66, %69 : vector<2x8x8xf32>
    %71 = math.exp %70 : vector<2x8x8xf32>
    %cst_32 = arith.constant dense<0.000000e+00> : vector<2x8xf32>
    %72 = vector.multi_reduction <add>, %71, %cst_32 [2] : vector<2x8x8xf32> to vector<2x8xf32>
    %73 = vector.shape_cast %72 : vector<2x8xf32> to vector<2x8x1xf32>
    %74 = tpu.reciprocal %73 {approx = true} : vector<2x8x1xf32> -> vector<2x8x1xf32>
    %75 = vector.broadcast %74 : vector<2x8x1xf32> to vector<2x8x8xf32>
    %76 = arith.mulf %71, %75 : vector<2x8x8xf32>
    "tpu.trace_start"() <{level = 10 : i32, message = "bqk,bkd->bqd"}> : () -> ()
    %cst_33 = arith.constant dense<0.000000e+00> : vector<2x8x8xf32>
    %77 = tpu.matmul %76, %63, %cst_33 {dimension_numbers = #tpu.dot_dimension_numbers<[2], [1], [1], [2], [0, 0, 0, 1, 1, 2], [0], [0]>} : vector<2x8x8xf32>, vector<2x8x8xf32>, vector<2x8x8xf32> -> vector<2x8x8xf32>
    "tpu.trace_stop"() : () -> ()
    %78 = vector.shape_cast %77 : vector<2x8x8xf32> to vector<16x8xf32>
    %79 = vector.extract_strided_slice %11 {offsets = [16, 0], sizes = [8, 32], strides = [1, 1]} : vector<32x32xf32> to vector<8x32xf32>
    %cst_34 = arith.constant dense<0.000000e+00> : vector<16x32xf32>
    %80 = tpu.matmul %78, %79, %cst_34 {dimension_numbers = #tpu.dot_dimension_numbers<[1], [0], [0], [1], [0, 0, 1, 1], [], []>} : vector<16x8xf32>, vector<8x32xf32>, vector<16x32xf32> -> vector<16x32xf32>
    %81 = arith.addf %60, %80 : vector<16x32xf32>
    %82 = vector.extract_strided_slice %15 {offsets = [0, 0, 24], sizes = [2, 8, 8], strides = [1, 1, 1]} : vector<2x8x32xf32> to vector<2x8x8xf32>
    %83 = vector.extract_strided_slice %16 {offsets = [0, 0, 24], sizes = [2, 8, 8], strides = [1, 1, 1]} : vector<2x8x32xf32> to vector<2x8x8xf32>
    %84 = vector.extract_strided_slice %17 {offsets = [0, 0, 24], sizes = [2, 8, 8], strides = [1, 1, 1]} : vector<2x8x32xf32> to vector<2x8x8xf32>
    "tpu.trace_start"() <{level = 10 : i32, message = "bqd,bkd->bqk"}> : () -> ()
    %cst_35 = arith.constant dense<0.000000e+00> : vector<2x8x8xf32>
    %85 = tpu.matmul %82, %83, %cst_35 {dimension_numbers = #tpu.dot_dimension_numbers<[2], [2], [1], [1], [0, 0, 0, 1, 1, 1], [0], [0]>} : vector<2x8x8xf32>, vector<2x8x8xf32>, vector<2x8x8xf32> -> vector<2x8x8xf32>
    "tpu.trace_stop"() : () -> ()
    %cst_36 = arith.constant 0.353553385 : f32
    %86 = vector.broadcast %cst_36 : f32 to vector<2x8x8xf32>
    %87 = arith.mulf %85, %86 : vector<2x8x8xf32>
    %cst_37 = arith.constant dense<0xFF800000> : vector<2x8xf32>
    %88 = vector.multi_reduction <maximumf>, %87, %cst_37 [2] : vector<2x8x8xf32> to vector<2x8xf32>
    %89 = vector.shape_cast %88 : vector<2x8xf32> to vector<2x8x1xf32>
    %90 = vector.broadcast %89 : vector<2x8x1xf32> to vector<2x8x8xf32>
    %91 = arith.subf %87, %90 : vector<2x8x8xf32>
    %92 = math.exp %91 : vector<2x8x8xf32>
    %cst_38 = arith.constant dense<0.000000e+00> : vector<2x8xf32>
    %93 = vector.multi_reduction <add>, %92, %cst_38 [2] : vector<2x8x8xf32> to vector<2x8xf32>
    %94 = vector.shape_cast %93 : vector<2x8xf32> to vector<2x8x1xf32>
    %95 = tpu.reciprocal %94 {approx = true} : vector<2x8x1xf32> -> vector<2x8x1xf32>
    %96 = vector.broadcast %95 : vector<2x8x1xf32> to vector<2x8x8xf32>
    %97 = arith.mulf %92, %96 : vector<2x8x8xf32>
    "tpu.trace_start"() <{level = 10 : i32, message = "bqk,bkd->bqd"}> : () -> ()
    %cst_39 = arith.constant dense<0.000000e+00> : vector<2x8x8xf32>
    %98 = tpu.matmul %97, %84, %cst_39 {dimension_numbers = #tpu.dot_dimension_numbers<[2], [1], [1], [2], [0, 0, 0, 1, 1, 2], [0], [0]>} : vector<2x8x8xf32>, vector<2x8x8xf32>, vector<2x8x8xf32> -> vector<2x8x8xf32>
    "tpu.trace_stop"() : () -> ()
    %99 = vector.shape_cast %98 : vector<2x8x8xf32> to vector<16x8xf32>
    %100 = vector.extract_strided_slice %11 {offsets = [24, 0], sizes = [8, 32], strides = [1, 1]} : vector<32x32xf32> to vector<8x32xf32>
    %cst_40 = arith.constant dense<0.000000e+00> : vector<16x32xf32>
    %101 = tpu.matmul %99, %100, %cst_40 {dimension_numbers = #tpu.dot_dimension_numbers<[1], [0], [0], [1], [0, 0, 1, 1], [], []>} : vector<16x8xf32>, vector<8x32xf32>, vector<16x32xf32> -> vector<16x32xf32>
    %102 = arith.addf %81, %101 : vector<16x32xf32>
    %c0_41 = arith.constant 0 : index
    %c0_42 = arith.constant 0 : index
    %c0_43 = arith.constant 0 : index
    %103 = vector.load %arg7[%c0_41, %c0_42, %c0_43] : memref<1x1x32xf32, #tpu.memory_space<vmem>>, vector<1x1x32xf32>
    %104 = vector.shape_cast %103 : vector<1x1x32xf32> to vector<1x32xf32>
    %105 = vector.broadcast %104 : vector<1x32xf32> to vector<16x32xf32>
    %106 = arith.addf %102, %105 : vector<16x32xf32>
    %107 = arith.addf %106, %3 : vector<16x32xf32>
    %c0_44 = arith.constant 0 : index
    %c0_45 = arith.constant 0 : index
    %c0_46 = arith.constant 0 : index
    %108 = vector.load %arg8[%c0_44, %c0_45, %c0_46] : memref<1x1x32xf32, #tpu.memory_space<vmem>>, vector<1x1x32xf32>
    %109 = vector.shape_cast %108 : vector<1x1x32xf32> to vector<1x32xf32>
    %c0_47 = arith.constant 0 : index
    %c0_48 = arith.constant 0 : index
    %c0_49 = arith.constant 0 : index
    %110 = vector.load %arg9[%c0_47, %c0_48, %c0_49] : memref<1x1x32xf32, #tpu.memory_space<vmem>>, vector<1x1x32xf32>
    %111 = vector.shape_cast %110 : vector<1x1x32xf32> to vector<1x32xf32>
    %cst_50 = arith.constant dense<0.000000e+00> : vector<16xf32>
    %112 = vector.multi_reduction <add>, %107, %cst_50 [1] : vector<16x32xf32> to vector<16xf32>
    %113 = vector.shape_cast %112 : vector<16xf32> to vector<16x1xf32>
    %cst_51 = arith.constant 3.200000e+01 : f32
    %114 = vector.broadcast %cst_51 : f32 to vector<16x1xf32>
    %115 = arith.divf %113, %114 : vector<16x1xf32>
    %116 = vector.broadcast %115 : vector<16x1xf32> to vector<16x32xf32>
    %117 = arith.subf %107, %116 : vector<16x32xf32>
    %118 = arith.mulf %117, %117 : vector<16x32xf32>
    %cst_52 = arith.constant dense<0.000000e+00> : vector<16xf32>
    %119 = vector.multi_reduction <add>, %118, %cst_52 [1] : vector<16x32xf32> to vector<16xf32>
    %120 = vector.shape_cast %119 : vector<16xf32> to vector<16x1xf32>
    %cst_53 = arith.constant 3.200000e+01 : f32
    %121 = vector.broadcast %cst_53 : f32 to vector<16x1xf32>
    %122 = arith.divf %120, %121 : vector<16x1xf32>
    %123 = vector.broadcast %115 : vector<16x1xf32> to vector<16x32xf32>
    %124 = arith.subf %107, %123 : vector<16x32xf32>
    %cst_54 = arith.constant 9.99999974E-6 : f32
    %125 = vector.broadcast %cst_54 : f32 to vector<16x1xf32>
    %126 = arith.addf %122, %125 : vector<16x1xf32>
    %127 = math.rsqrt %126 : vector<16x1xf32>
    %128 = vector.broadcast %127 : vector<16x1xf32> to vector<16x32xf32>
    %129 = arith.mulf %124, %128 : vector<16x32xf32>
    %130 = vector.broadcast %109 : vector<1x32xf32> to vector<16x32xf32>
    %131 = arith.mulf %129, %130 : vector<16x32xf32>
    %132 = vector.broadcast %111 : vector<1x32xf32> to vector<16x32xf32>
    %133 = arith.addf %131, %132 : vector<16x32xf32>
    %c0_55 = arith.constant 0 : index
    %c0_56 = arith.constant 0 : index
    %c0_57 = arith.constant 0 : index
    %134 = vector.load %arg10[%c0_55, %c0_56, %c0_57] : memref<1x32x128xf32, #tpu.memory_space<vmem>>, vector<1x32x128xf32>
    %135 = vector.shape_cast %134 : vector<1x32x128xf32> to vector<32x128xf32>
    %cst_58 = arith.constant dense<0.000000e+00> : vector<16x128xf32>
    %136 = tpu.matmul %133, %135, %cst_58 {dimension_numbers = #tpu.dot_dimension_numbers<[1], [0], [0], [1], [0, 0, 1, 1], [], []>} : vector<16x32xf32>, vector<32x128xf32>, vector<16x128xf32> -> vector<16x128xf32>
    %c0_59 = arith.constant 0 : index
    %c0_60 = arith.constant 0 : index
    %c0_61 = arith.constant 0 : index
    %137 = vector.load %arg11[%c0_59, %c0_60, %c0_61] : memref<1x1x128xf32, #tpu.memory_space<vmem>>, vector<1x1x128xf32>
    %138 = vector.shape_cast %137 : vector<1x1x128xf32> to vector<1x128xf32>
    %139 = vector.broadcast %138 : vector<1x128xf32> to vector<16x128xf32>
    %140 = arith.addf %136, %139 : vector<16x128xf32>
    %cst_62 = arith.constant 0.000000e+00 : f32
    %141 = vector.broadcast %cst_62 : f32 to vector<16x128xf32>
    %142 = arith.maximumf %140, %141 : vector<16x128xf32>
    %c0_63 = arith.constant 0 : index
    %c0_64 = arith.constant 0 : index
    %c0_65 = arith.constant 0 : index
    %143 = vector.load %arg12[%c0_63, %c0_64, %c0_65] : memref<1x128x32xf32, #tpu.memory_space<vmem>>, vector<1x128x32xf32>
    %144 = vector.shape_cast %143 : vector<1x128x32xf32> to vector<128x32xf32>
    %cst_66 = arith.constant dense<0.000000e+00> : vector<16x32xf32>
    %145 = tpu.matmul %142, %144, %cst_66 {dimension_numbers = #tpu.dot_dimension_numbers<[1], [0], [0], [1], [0, 0, 1, 1], [], []>} : vector<16x128xf32>, vector<128x32xf32>, vector<16x32xf32> -> vector<16x32xf32>
    %c0_67 = arith.constant 0 : index
    %c0_68 = arith.constant 0 : index
    %c0_69 = arith.constant 0 : index
    %146 = vector.load %arg13[%c0_67, %c0_68, %c0_69] : memref<1x1x32xf32, #tpu.memory_space<vmem>>, vector<1x1x32xf32>
    %147 = vector.shape_cast %146 : vector<1x1x32xf32> to vector<1x32xf32>
    %148 = vector.broadcast %147 : vector<1x32xf32> to vector<16x32xf32>
    %149 = arith.addf %145, %148 : vector<16x32xf32>
    %150 = arith.addf %149, %133 : vector<16x32xf32>
    %c0_70 = arith.constant 0 : index
    %c0_71 = arith.constant 0 : index
    %c0_72 = arith.constant 0 : index
    %151 = vector.load %arg14[%c0_70, %c0_71, %c0_72] : memref<1x1x32xf32, #tpu.memory_space<vmem>>, vector<1x1x32xf32>
    %152 = vector.shape_cast %151 : vector<1x1x32xf32> to vector<1x32xf32>
    %c0_73 = arith.constant 0 : index
    %c0_74 = arith.constant 0 : index
    %c0_75 = arith.constant 0 : index
    %153 = vector.load %arg15[%c0_73, %c0_74, %c0_75] : memref<1x1x32xf32, #tpu.memory_space<vmem>>, vector<1x1x32xf32>
    %154 = vector.shape_cast %153 : vector<1x1x32xf32> to vector<1x32xf32>
    %cst_76 = arith.constant dense<0.000000e+00> : vector<16xf32>
    %155 = vector.multi_reduction <add>, %150, %cst_76 [1] : vector<16x32xf32> to vector<16xf32>
    %156 = vector.shape_cast %155 : vector<16xf32> to vector<16x1xf32>
    %cst_77 = arith.constant 3.200000e+01 : f32
    %157 = vector.broadcast %cst_77 : f32 to vector<16x1xf32>
    %158 = arith.divf %156, %157 : vector<16x1xf32>
    %159 = vector.broadcast %158 : vector<16x1xf32> to vector<16x32xf32>
    %160 = arith.subf %150, %159 : vector<16x32xf32>
    %161 = arith.mulf %160, %160 : vector<16x32xf32>
    %cst_78 = arith.constant dense<0.000000e+00> : vector<16xf32>
    %162 = vector.multi_reduction <add>, %161, %cst_78 [1] : vector<16x32xf32> to vector<16xf32>
    %163 = vector.shape_cast %162 : vector<16xf32> to vector<16x1xf32>
    %cst_79 = arith.constant 3.200000e+01 : f32
    %164 = vector.broadcast %cst_79 : f32 to vector<16x1xf32>
    %165 = arith.divf %163, %164 : vector<16x1xf32>
    %166 = vector.broadcast %158 : vector<16x1xf32> to vector<16x32xf32>
    %167 = arith.subf %150, %166 : vector<16x32xf32>
    %cst_80 = arith.constant 9.99999974E-6 : f32
    %168 = vector.broadcast %cst_80 : f32 to vector<16x1xf32>
    %169 = arith.addf %165, %168 : vector<16x1xf32>
    %170 = math.rsqrt %169 : vector<16x1xf32>
    %171 = vector.broadcast %170 : vector<16x1xf32> to vector<16x32xf32>
    %172 = arith.mulf %167, %171 : vector<16x32xf32>
    %173 = vector.broadcast %152 : vector<1x32xf32> to vector<16x32xf32>
    %174 = arith.mulf %172, %173 : vector<16x32xf32>
    %175 = vector.broadcast %154 : vector<1x32xf32> to vector<16x32xf32>
    %176 = arith.addf %174, %175 : vector<16x32xf32>
    %c0_81 = arith.constant 0 : index
    %c0_82 = arith.constant 0 : index
    %177 = vector.load %arg16[%c0_81, %c0_82] : memref<16x32xf32, #tpu.memory_space<vmem>>, vector<16x32xf32>
    tpu.vector_store %arg16[%c0_81, %c0_82], %176 {strides = array<i32>} : memref<16x32xf32, #tpu.memory_space<vmem>>, vector<16x32xf32>,
    return
  }
  func.func @transform_0(%arg0: i32, %arg1: i32) -> (i32, i32) {
    %c0_i32 = arith.constant 0 : i32
    %c0_i32_0 = arith.constant 0 : i32
    return %arg0, %c0_i32 : i32, i32
  }
  func.func @transform_1(%arg0: i32, %arg1: i32) -> (i32, i32, i32) {
    %c0_i32 = arith.constant 0 : i32
    %c0_i32_0 = arith.constant 0 : i32
    %c0_i32_1 = arith.constant 0 : i32
    return %arg1, %c0_i32, %c0_i32_0 : i32, i32, i32
  }
  func.func @transform_2(%arg0: i32, %arg1: i32) -> (i32, i32, i32) {
    %c0_i32 = arith.constant 0 : i32
    %c0_i32_0 = arith.constant 0 : i32
    %c0_i32_1 = arith.constant 0 : i32
    return %arg1, %c0_i32, %c0_i32_0 : i32, i32, i32
  }
  func.func @transform_3(%arg0: i32, %arg1: i32) -> (i32, i32, i32) {
    %c0_i32 = arith.constant 0 : i32
    %c0_i32_0 = arith.constant 0 : i32
    %c0_i32_1 = arith.constant 0 : i32
    return %arg1, %c0_i32, %c0_i32_0 : i32, i32, i32
  }
  func.func @transform_4(%arg0: i32, %arg1: i32) -> (i32, i32, i32) {
    %c0_i32 = arith.constant 0 : i32
    %c0_i32_0 = arith.constant 0 : i32
    %c0_i32_1 = arith.constant 0 : i32
    return %arg1, %c0_i32, %c0_i32_0 : i32, i32, i32
  }
  func.func @transform_5(%arg0: i32, %arg1: i32) -> (i32, i32, i32) {
    %c0_i32 = arith.constant 0 : i32
    %c0_i32_0 = arith.constant 0 : i32
    %c0_i32_1 = arith.constant 0 : i32
    return %arg1, %c0_i32, %c0_i32_0 : i32, i32, i32
  }
  func.func @transform_6(%arg0: i32, %arg1: i32) -> (i32, i32, i32) {
    %c0_i32 = arith.constant 0 : i32
    %c0_i32_0 = arith.constant 0 : i32
    %c0_i32_1 = arith.constant 0 : i32
    return %arg1, %c0_i32, %c0_i32_0 : i32, i32, i32
  }
  func.func @transform_7(%arg0: i32, %arg1: i32) -> (i32, i32, i32) {
    %c0_i32 = arith.constant 0 : i32
    %c0_i32_0 = arith.constant 0 : i32
    %c0_i32_1 = arith.constant 0 : i32
    return %arg1, %c0_i32, %c0_i32_0 : i32, i32, i32
  }
  func.func @transform_8(%arg0: i32, %arg1: i32) -> (i32, i32, i32) {
    %c0_i32 = arith.constant 0 : i32
    %c0_i32_0 = arith.constant 0 : i32
    %c0_i32_1 = arith.constant 0 : i32
    return %arg1, %c0_i32, %c0_i32_0 : i32, i32, i32
  }
  func.func @transform_9(%arg0: i32, %arg1: i32) -> (i32, i32, i32) {
    %c0_i32 = arith.constant 0 : i32
    %c0_i32_0 = arith.constant 0 : i32
    %c0_i32_1 = arith.constant 0 : i32
    return %arg1, %c0_i32, %c0_i32_0 : i32, i32, i32
  }
  func.func @transform_10(%arg0: i32, %arg1: i32) -> (i32, i32, i32) {
    %c0_i32 = arith.constant 0 : i32
    %c0_i32_0 = arith.constant 0 : i32
    %c0_i32_1 = arith.constant 0 : i32
    return %arg1, %c0_i32, %c0_i32_0 : i32, i32, i32
  }
  func.func @transform_11(%arg0: i32, %arg1: i32) -> (i32, i32, i32) {
    %c0_i32 = arith.constant 0 : i32
    %c0_i32_0 = arith.constant 0 : i32
    %c0_i32_1 = arith.constant 0 : i32
    return %arg1, %c0_i32, %c0_i32_0 : i32, i32, i32
  }
  func.func @transform_12(%arg0: i32, %arg1: i32) -> (i32, i32, i32) {
    %c0_i32 = arith.constant 0 : i32
    %c0_i32_0 = arith.constant 0 : i32
    %c0_i32_1 = arith.constant 0 : i32
    return %arg1, %c0_i32, %c0_i32_0 : i32, i32, i32
  }
  func.func @transform_13(%arg0: i32, %arg1: i32) -> (i32, i32, i32) {
    %c0_i32 = arith.constant 0 : i32
    %c0_i32_0 = arith.constant 0 : i32
    %c0_i32_1 = arith.constant 0 : i32
    return %arg1, %c0_i32, %c0_i32_0 : i32, i32, i32
  }
  func.func @transform_14(%arg0: i32, %arg1: i32) -> (i32, i32) {
    %c0_i32 = arith.constant 0 : i32
    %c0_i32_0 = arith.constant 0 : i32
    return %arg0, %c0_i32 : i32, i32
  }
}

</mosaic_0001>

<llo_original>
// kernel: tpu_custom_call.1
$region0: #{tpu_custom_call.1}
  #allocation0 [shape = 'u32[]', space=smem, size = 0x4, offset = 0x4, fixed_abs, tag = 'smem constant byte address 0x4 - core index']
  #allocation1 [shape = 'u32[144,128]{1,0:T(1,128)}', space=vmem, size = 0x12000, scoped, tag = 'internal scratch']
  %s0 = inlined_call_operand.hbm [shape: f32[16,32], index: 0, kind: input, shape index: {}]
  %s1 = inlined_call_operand.vmem [shape: f32[2,32,32], index: 1, kind: input, shape index: {}]
  %s2 = inlined_call_operand.vmem [shape: f32[2,32,32], index: 2, kind: input, shape index: {}]
  %s3 = inlined_call_operand.vmem [shape: f32[2,32,32], index: 3, kind: input, shape index: {}]
  %s4 = inlined_call_operand.vmem [shape: f32[2,32,32], index: 4, kind: input, shape index: {}]
  %s5 = inlined_call_operand.vmem [shape: f32[2,1,32], index: 5, kind: input, shape index: {}]
  %s6 = inlined_call_operand.vmem [shape: f32[2,1,32], index: 6, kind: input, shape index: {}]
  %s7 = inlined_call_operand.vmem [shape: f32[2,1,32], index: 7, kind: input, shape index: {}]
  %s8 = inlined_call_operand.vmem [shape: f32[2,32,128], index: 8, kind: input, shape index: {}]
  %s9 = inlined_call_operand.vmem [shape: f32[2,1,128], index: 9, kind: input, shape index: {}]
  %s10 = inlined_call_operand.vmem [shape: f32[2,128,32], index: 10, kind: input, shape index: {}]
  %s11 = inlined_call_operand.vmem [shape: f32[2,1,32], index: 11, kind: input, shape index: {}]
  %s12 = inlined_call_operand.vmem [shape: f32[2,1,32], index: 12, kind: input, shape index: {}]
  %s13 = inlined_call_operand.vmem [shape: f32[2,1,32], index: 13, kind: input, shape index: {}]
  %s14 = inlined_call_operand.hbm [shape: f32[16,32], index: 14, kind: output, shape index: {}]
  %s15 = sld [smem:[#allocation0]]
  $region97: #{tpu_custom_call.1} parent=0
    _
  %s17 = ssub.s32 1, %s15
  %s18 = scalar_select 0, %s17, %s15
  $region1: #{tpu_custom_call.1} parent=0
    #allocation2 [shape = 'u8[8192]{0}', space=vmem, size = 0x2000, scoped, tag = 'input window, operand 0, single buffered']
    #allocation3 [shape = 's32[2]{0}', space=sflag, size = 0x8, scoped, tag = 'scoped memory for tpu_custom_call.1']
    #allocation4 [shape = 's32[2]{0}', space=sflag, size = 0x8, scoped, tag = 'scoped memory for tpu_custom_call.1']
    #allocation5 [shape = 'u8[8192]{0}', space=vmem, size = 0x2000, scoped, tag = 'output window, operand 0, single buffered']
    %19 = vsyncpa [#allocation3], 0
    %20 = vsyncpa [#allocation4], 0
    loop: start=0, step=1, limit=4
    $region2: #{tpu_custom_call.1} parent=1 // loop_pre_header
      _
    $region3: #{tpu_custom_call.1} parent=1 // loop_header
      %s22 = sphi 0, %s26
      %p23 = scmp.ge.s32.totalorder %s22, 4
      %s29 = sphi 0, %s41
      %s30 = sphi 0, %s37
      %s31 = sphi 0, %s29
      %s32 = sphi 0, %s30
      %s33 = sphi 0, %s31
      %s34 = sphi 0, %s32
      %s44 = sphi 0, %s46
      %s47 = sphi 0, %s44
      %s48 = sphi 0, %s47
      %s64 = sphi 0, %s48
      %s70 = sphi 0, %s72
      %s73 = sphi 0, %s70
      %s74 = sphi 0, %s73
      %s90 = sphi 0, %s74
      %s96 = sphi 0, %s98
      %s99 = sphi 0, %s96
      %s100 = sphi 0, %s99
      %s116 = sphi 0, %s100
      %s122 = sphi 0, %s124
      %s125 = sphi 0, %s122
      %s126 = sphi 0, %s125
      %s142 = sphi 0, %s126
      %s148 = sphi 0, %s150
      %s151 = sphi 0, %s148
      %s152 = sphi 0, %s151
      %s168 = sphi 0, %s152
      %s174 = sphi 0, %s176
      %s177 = sphi 0, %s174
      %s178 = sphi 0, %s177
      %s194 = sphi 0, %s178
      %s200 = sphi 0, %s202
      %s203 = sphi 0, %s200
      %s204 = sphi 0, %s203
      %s220 = sphi 0, %s204
      %s226 = sphi 0, %s228
      %s229 = sphi 0, %s226
      %s230 = sphi 0, %s229
      %s246 = sphi 0, %s230
      %s252 = sphi 0, %s254
      %s255 = sphi 0, %s252
      %s256 = sphi 0, %s255
      %s272 = sphi 0, %s256
      %s278 = sphi 0, %s280
      %s281 = sphi 0, %s278
      %s282 = sphi 0, %s281
      %s298 = sphi 0, %s282
      %s304 = sphi 0, %s306
      %s307 = sphi 0, %s304
      %s308 = sphi 0, %s307
      %s324 = sphi 0, %s308
      %s330 = sphi 0, %s332
      %s333 = sphi 0, %s330
      %s334 = sphi 0, %s333
      %s350 = sphi 0, %s334
      %s356 = sphi 0, %s358
      %s359 = sphi 0, %s356
      %s360 = sphi 0, %s359
      %s376 = sphi 0, %s360
      %s382 = sphi 0, %s384
      %s385 = sphi 0, %s382
      %s386 = sphi 0, %s385
      %s402 = sphi 0, %s386
      %s408 = sphi 0, %s410
      %s411 = sphi 0, %s408
      %s412 = sphi 0, %s411
      %s428 = sphi 0, %s412
    $region4: #{tpu_custom_call.1} parent=1 // loop_header_branch
      %25 = sbr.rel (%p23) target = $region8
    $region5: #{tpu_custom_call.1} parent=1 // loop_body
      %s27 = ssub.s32 %s22, 1
      %s28 = ssub.s32 %s22, 2
      %s35 = sadd.s32 1, %s30
      %p36 = scmp.ge.s32.totalorder %s35, 2
      %s37 = scalar_select %p36, 0, %s35
      %s38 = sadd.s32 1, %s29
      %s39 = scalar_select %p36, %s38, %s29
      %p40 = scmp.ge.s32.totalorder %s39, 1
      %s41 = scalar_select %p40, 0, %s39
      %s42 = ssub.s32 %s29, %s41
      %p43 = scmp.eq.s32.totalorder %s42, 0
      %s45 = sadd.s32 %s44, 1
      %s46 = scalar_select %p43, %s44, %s45
      %p49 = pneg %p43
      %p50 = scmp.eq.s32.totalorder %s22, 1
      %p51 = por %p49, %p50
      %p52 = scmp.ne.s32.totalorder %s44, %s47
      %p53 = scmp.eq.s32.totalorder %s22, 0
      %p54 = por %p52, %p53
      %p55 = scmp.ne.s32.totalorder %s44, %s47
      %p56 = scmp.eq.s32.totalorder %s27, 1
      %p57 = por %p55, %p56
      %p58 = scmp.ne.s32.totalorder %s47, %s48
      %p59 = scmp.eq.s32.totalorder %s27, 0
      %p60 = por %p58, %p59
      %p61 = scmp.ne.s32.totalorder %s47, %s48
      %p62 = scmp.eq.s32.totalorder %s28, 1
      %p63 = por %p61, %p62
      %p65 = scmp.ne.s32.totalorder %s48, %s64
      %p66 = scmp.eq.s32.totalorder %s28, 0
      %p67 = por %p65, %p66
      %s68 = ssub.s32 %s30, %s37
      %p69 = scmp.eq.s32.totalorder %s68, 0
      %s71 = sadd.s32 %s70, 1
      %s72 = scalar_select %p69, %s70, %s71
      %p75 = pneg %p69
      %p76 = scmp.eq.s32.totalorder %s22, 1
      %p77 = por %p75, %p76
      %p78 = scmp.ne.s32.totalorder %s70, %s73
      %p79 = scmp.eq.s32.totalorder %s22, 0
      %p80 = por %p78, %p79
      %p81 = scmp.ne.s32.totalorder %s70, %s73
      %p82 = scmp.eq.s32.totalorder %s27, 1
      %p83 = por %p81, %p82
      %p84 = scmp.ne.s32.totalorder %s73, %s74
      %p85 = scmp.eq.s32.totalorder %s27, 0
      %p86 = por %p84, %p85
      %p87 = scmp.ne.s32.totalorder %s73, %s74
      %p88 = scmp.eq.s32.totalorder %s28, 1
      %p89 = por %p87, %p88
      %p91 = scmp.ne.s32.totalorder %s74, %s90
      %p92 = scmp.eq.s32.totalorder %s28, 0
      %p93 = por %p91, %p92
      %s94 = ssub.s32 %s30, %s37
      %p95 = scmp.eq.s32.totalorder %s94, 0
      %s97 = sadd.s32 %s96, 1
      %s98 = scalar_select %p95, %s96, %s97
      %p101 = pneg %p95
      %p102 = scmp.eq.s32.totalorder %s22, 1
      %p103 = por %p101, %p102
      %p104 = scmp.ne.s32.totalorder %s96, %s99
      %p105 = scmp.eq.s32.totalorder %s22, 0
      %p106 = por %p104, %p105
      %p107 = scmp.ne.s32.totalorder %s96, %s99
      %p108 = scmp.eq.s32.totalorder %s27, 1
      %p109 = por %p107, %p108
      %p110 = scmp.ne.s32.totalorder %s99, %s100
      %p111 = scmp.eq.s32.totalorder %s27, 0
      %p112 = por %p110, %p111
      %p113 = scmp.ne.s32.totalorder %s99, %s100
      %p114 = scmp.eq.s32.totalorder %s28, 1
      %p115 = por %p113, %p114
      %p117 = scmp.ne.s32.totalorder %s100, %s116
      %p118 = scmp.eq.s32.totalorder %s28, 0
      %p119 = por %p117, %p118
      %s120 = ssub.s32 %s30, %s37
      %p121 = scmp.eq.s32.totalorder %s120, 0
      %s123 = sadd.s32 %s122, 1
      %s124 = scalar_select %p121, %s122, %s123
      %p127 = pneg %p121
      %p128 = scmp.eq.s32.totalorder %s22, 1
      %p129 = por %p127, %p128
      %p130 = scmp.ne.s32.totalorder %s122, %s125
      %p131 = scmp.eq.s32.totalorder %s22, 0
      %p132 = por %p130, %p131
      %p133 = scmp.ne.s32.totalorder %s122, %s125
      %p134 = scmp.eq.s32.totalorder %s27, 1
      %p135 = por %p133, %p134
      %p136 = scmp.ne.s32.totalorder %s125, %s126
      %p137 = scmp.eq.s32.totalorder %s27, 0
      %p138 = por %p136, %p137
      %p139 = scmp.ne.s32.totalorder %s125, %s126
      %p140 = scmp.eq.s32.totalorder %s28, 1
      %p141 = por %p139, %p140
      %p143 = scmp.ne.s32.totalorder %s126, %s142
      %p144 = scmp.eq.s32.totalorder %s28, 0
      %p145 = por %p143, %p144
      %s146 = ssub.s32 %s30, %s37
      %p147 = scmp.eq.s32.totalorder %s146, 0
      %s149 = sadd.s32 %s148, 1
      %s150 = scalar_select %p147, %s148, %s149
      %p153 = pneg %p147
      %p154 = scmp.eq.s32.totalorder %s22, 1
      %p155 = por %p153, %p154
      %p156 = scmp.ne.s32.totalorder %s148, %s151
      %p157 = scmp.eq.s32.totalorder %s22, 0
      %p158 = por %p156, %p157
      %p159 = scmp.ne.s32.totalorder %s148, %s151
      %p160 = scmp.eq.s32.totalorder %s27, 1
      %p161 = por %p159, %p160
      %p162 = scmp.ne.s32.totalorder %s151, %s152
      %p163 = scmp.eq.s32.totalorder %s27, 0
      %p164 = por %p162, %p163
      %p165 = scmp.ne.s32.totalorder %s151, %s152
      %p166 = scmp.eq.s32.totalorder %s28, 1
      %p167 = por %p165, %p166
      %p169 = scmp.ne.s32.totalorder %s152, %s168
      %p170 = scmp.eq.s32.totalorder %s28, 0
      %p171 = por %p169, %p170
      %s172 = ssub.s32 %s30, %s37
      %p173 = scmp.eq.s32.totalorder %s172, 0
      %s175 = sadd.s32 %s174, 1
      %s176 = scalar_select %p173, %s174, %s175
      %p179 = pneg %p173
      %p180 = scmp.eq.s32.totalorder %s22, 1
      %p181 = por %p179, %p180
      %p182 = scmp.ne.s32.totalorder %s174, %s177
      %p183 = scmp.eq.s32.totalorder %s22, 0
      %p184 = por %p182, %p183
      %p185 = scmp.ne.s32.totalorder %s174, %s177
      %p186 = scmp.eq.s32.totalorder %s27, 1
      %p187 = por %p185, %p186
      %p188 = scmp.ne.s32.totalorder %s177, %s178
      %p189 = scmp.eq.s32.totalorder %s27, 0
      %p190 = por %p188, %p189
      %p191 = scmp.ne.s32.totalorder %s177, %s178
      %p192 = scmp.eq.s32.totalorder %s28, 1
      %p193 = por %p191, %p192
      %p195 = scmp.ne.s32.totalorder %s178, %s194
      %p196 = scmp.eq.s32.totalorder %s28, 0
      %p197 = por %p195, %p196
      %s198 = ssub.s32 %s30, %s37
      %p199 = scmp.eq.s32.totalorder %s198, 0
      %s201 = sadd.s32 %s200, 1
      %s202 = scalar_select %p199, %s200, %s201
      %p205 = pneg %p199
      %p206 = scmp.eq.s32.totalorder %s22, 1
      %p207 = por %p205, %p206
      %p208 = scmp.ne.s32.totalorder %s200, %s203
      %p209 = scmp.eq.s32.totalorder %s22, 0
      %p210 = por %p208, %p209
      %p211 = scmp.ne.s32.totalorder %s200, %s203
      %p212 = scmp.eq.s32.totalorder %s27, 1
      %p213 = por %p211, %p212
      %p214 = scmp.ne.s32.totalorder %s203, %s204
      %p215 = scmp.eq.s32.totalorder %s27, 0
      %p216 = por %p214, %p215
      %p217 = scmp.ne.s32.totalorder %s203, %s204
      %p218 = scmp.eq.s32.totalorder %s28, 1
      %p219 = por %p217, %p218
      %p221 = scmp.ne.s32.totalorder %s204, %s220
      %p222 = scmp.eq.s32.totalorder %s28, 0
      %p223 = por %p221, %p222
      %s224 = ssub.s32 %s30, %s37
      %p225 = scmp.eq.s32.totalorder %s224, 0
      %s227 = sadd.s32 %s226, 1
      %s228 = scalar_select %p225, %s226, %s227
      %p231 = pneg %p225
      %p232 = scmp.eq.s32.totalorder %s22, 1
      %p233 = por %p231, %p232
      %p234 = scmp.ne.s32.totalorder %s226, %s229
      %p235 = scmp.eq.s32.totalorder %s22, 0
      %p236 = por %p234, %p235
      %p237 = scmp.ne.s32.totalorder %s226, %s229
      %p238 = scmp.eq.s32.totalorder %s27, 1
      %p239 = por %p237, %p238
      %p240 = scmp.ne.s32.totalorder %s229, %s230
      %p241 = scmp.eq.s32.totalorder %s27, 0
      %p242 = por %p240, %p241
      %p243 = scmp.ne.s32.totalorder %s229, %s230
      %p244 = scmp.eq.s32.totalorder %s28, 1
      %p245 = por %p243, %p244
      %p247 = scmp.ne.s32.totalorder %s230, %s246
      %p248 = scmp.eq.s32.totalorder %s28, 0
      %p249 = por %p247, %p248
      %s250 = ssub.s32 %s30, %s37
      %p251 = scmp.eq.s32.totalorder %s250, 0
      %s253 = sadd.s32 %s252, 1
      %s254 = scalar_select %p251, %s252, %s253
      %p257 = pneg %p251
      %p258 = scmp.eq.s32.totalorder %s22, 1
      %p259 = por %p257, %p258
      %p260 = scmp.ne.s32.totalorder %s252, %s255
      %p261 = scmp.eq.s32.totalorder %s22, 0
      %p262 = por %p260, %p261
      %p263 = scmp.ne.s32.totalorder %s252, %s255
      %p264 = scmp.eq.s32.totalorder %s27, 1
      %p265 = por %p263, %p264
      %p266 = scmp.ne.s32.totalorder %s255, %s256
      %p267 = scmp.eq.s32.totalorder %s27, 0
      %p268 = por %p266, %p267
      %p269 = scmp.ne.s32.totalorder %s255, %s256
      %p270 = scmp.eq.s32.totalorder %s28, 1
      %p271 = por %p269, %p270
      %p273 = scmp.ne.s32.totalorder %s256, %s272
      %p274 = scmp.eq.s32.totalorder %s28, 0
      %p275 = por %p273, %p274
      %s276 = ssub.s32 %s30, %s37
      %p277 = scmp.eq.s32.totalorder %s276, 0
      %s279 = sadd.s32 %s278, 1
      %s280 = scalar_select %p277, %s278, %s279
      %p283 = pneg %p277
      %p284 = scmp.eq.s32.totalorder %s22, 1
      %p285 = por %p283, %p284
      %p286 = scmp.ne.s32.totalorder %s278, %s281
      %p287 = scmp.eq.s32.totalorder %s22, 0
      %p288 = por %p286, %p287
      %p289 = scmp.ne.s32.totalorder %s278, %s281
      %p290 = scmp.eq.s32.totalorder %s27, 1
      %p291 = por %p289, %p290
      %p292 = scmp.ne.s32.totalorder %s281, %s282
      %p293 = scmp.eq.s32.totalorder %s27, 0
      %p294 = por %p292, %p293
      %p295 = scmp.ne.s32.totalorder %s281, %s282
      %p296 = scmp.eq.s32.totalorder %s28, 1
      %p297 = por %p295, %p296
      %p299 = scmp.ne.s32.totalorder %s282, %s298
      %p300 = scmp.eq.s32.totalorder %s28, 0
      %p301 = por %p299, %p300
      %s302 = ssub.s32 %s30, %s37
      %p303 = scmp.eq.s32.totalorder %s302, 0
      %s305 = sadd.s32 %s304, 1
      %s306 = scalar_select %p303, %s304, %s305
      %p309 = pneg %p303
      %p310 = scmp.eq.s32.totalorder %s22, 1
      %p311 = por %p309, %p310
      %p312 = scmp.ne.s32.totalorder %s304, %s307
      %p313 = scmp.eq.s32.totalorder %s22, 0
      %p314 = por %p312, %p313
      %p315 = scmp.ne.s32.totalorder %s304, %s307
      %p316 = scmp.eq.s32.totalorder %s27, 1
      %p317 = por %p315, %p316
      %p318 = scmp.ne.s32.totalorder %s307, %s308
      %p319 = scmp.eq.s32.totalorder %s27, 0
      %p320 = por %p318, %p319
      %p321 = scmp.ne.s32.totalorder %s307, %s308
      %p322 = scmp.eq.s32.totalorder %s28, 1
      %p323 = por %p321, %p322
      %p325 = scmp.ne.s32.totalorder %s308, %s324
      %p326 = scmp.eq.s32.totalorder %s28, 0
      %p327 = por %p325, %p326
      %s328 = ssub.s32 %s30, %s37
      %p329 = scmp.eq.s32.totalorder %s328, 0
      %s331 = sadd.s32 %s330, 1
      %s332 = scalar_select %p329, %s330, %s331
      %p335 = pneg %p329
      %p336 = scmp.eq.s32.totalorder %s22, 1
      %p337 = por %p335, %p336
      %p338 = scmp.ne.s32.totalorder %s330, %s333
      %p339 = scmp.eq.s32.totalorder %s22, 0
      %p340 = por %p338, %p339
      %p341 = scmp.ne.s32.totalorder %s330, %s333
      %p342 = scmp.eq.s32.totalorder %s27, 1
      %p343 = por %p341, %p342
      %p344 = scmp.ne.s32.totalorder %s333, %s334
      %p345 = scmp.eq.s32.totalorder %s27, 0
      %p346 = por %p344, %p345
      %p347 = scmp.ne.s32.totalorder %s333, %s334
      %p348 = scmp.eq.s32.totalorder %s28, 1
      %p349 = por %p347, %p348
      %p351 = scmp.ne.s32.totalorder %s334, %s350
      %p352 = scmp.eq.s32.totalorder %s28, 0
      %p353 = por %p351, %p352
      %s354 = ssub.s32 %s30, %s37
      %p355 = scmp.eq.s32.totalorder %s354, 0
      %s357 = sadd.s32 %s356, 1
      %s358 = scalar_select %p355, %s356, %s357
      %p361 = pneg %p355
      %p362 = scmp.eq.s32.totalorder %s22, 1
      %p363 = por %p361, %p362
      %p364 = scmp.ne.s32.totalorder %s356, %s359
      %p365 = scmp.eq.s32.totalorder %s22, 0
      %p366 = por %p364, %p365
      %p367 = scmp.ne.s32.totalorder %s356, %s359
      %p368 = scmp.eq.s32.totalorder %s27, 1
      %p369 = por %p367, %p368
      %p370 = scmp.ne.s32.totalorder %s359, %s360
      %p371 = scmp.eq.s32.totalorder %s27, 0
      %p372 = por %p370, %p371
      %p373 = scmp.ne.s32.totalorder %s359, %s360
      %p374 = scmp.eq.s32.totalorder %s28, 1
      %p375 = por %p373, %p374
      %p377 = scmp.ne.s32.totalorder %s360, %s376
      %p378 = scmp.eq.s32.totalorder %s28, 0
      %p379 = por %p377, %p378
      %s380 = ssub.s32 %s30, %s37
      %p381 = scmp.eq.s32.totalorder %s380, 0
      %s383 = sadd.s32 %s382, 1
      %s384 = scalar_select %p381, %s382, %s383
      %p387 = pneg %p381
      %p388 = scmp.eq.s32.totalorder %s22, 1
      %p389 = por %p387, %p388
      %p390 = scmp.ne.s32.totalorder %s382, %s385
      %p391 = scmp.eq.s32.totalorder %s22, 0
      %p392 = por %p390, %p391
      %p393 = scmp.ne.s32.totalorder %s382, %s385
      %p394 = scmp.eq.s32.totalorder %s27, 1
      %p395 = por %p393, %p394
      %p396 = scmp.ne.s32.totalorder %s385, %s386
      %p397 = scmp.eq.s32.totalorder %s27, 0
      %p398 = por %p396, %p397
      %p399 = scmp.ne.s32.totalorder %s385, %s386
      %p400 = scmp.eq.s32.totalorder %s28, 1
      %p401 = por %p399, %p400
      %p403 = scmp.ne.s32.totalorder %s386, %s402
      %p404 = scmp.eq.s32.totalorder %s28, 0
      %p405 = por %p403, %p404
      %s406 = ssub.s32 %s29, %s41
      %p407 = scmp.eq.s32.totalorder %s406, 0
      %s409 = sadd.s32 %s408, 1
      %s410 = scalar_select %p407, %s408, %s409
      %p413 = pneg %p407
      %p414 = scmp.eq.s32.totalorder %s22, 1
      %p415 = por %p413, %p414
      %p416 = scmp.ne.s32.totalorder %s408, %s411
      %p417 = scmp.eq.s32.totalorder %s22, 0
      %p418 = por %p416, %p417
      %p419 = scmp.ne.s32.totalorder %s408, %s411
      %p420 = scmp.eq.s32.totalorder %s27, 1
      %p421 = por %p419, %p420
      %p422 = scmp.ne.s32.totalorder %s411, %s412
      %p423 = scmp.eq.s32.totalorder %s27, 0
      %p424 = por %p422, %p423
      %p425 = scmp.ne.s32.totalorder %s411, %s412
      %p426 = scmp.eq.s32.totalorder %s28, 1
      %p427 = por %p425, %p426
      %p429 = scmp.ne.s32.totalorder %s412, %s428
      %p430 = scmp.eq.s32.totalorder %s28, 0
      %p431 = por %p429, %p430
      %p432 = scmp.le.s32.totalorder 1, %s22
      %p433 = scmp.lt.s32.totalorder %s22, 3
      %p434 = pnand %p432, %p433
      %p435 = pneg %p434
      // Predicated region
      $region9: #{tpu_custom_call.1} parent=5 // pred_check
        _
      $region10: #{tpu_custom_call.1} parent=5 // pred_check_branch
        %437 = sbr.rel (%p434) target = $region12
      $region11: #{tpu_custom_call.1} parent=5 // pred_region
        %s438 = ssub.s32 %s22, 1
        // Predicated region
        $region13: #{tpu_custom_call.1} parent=11 // pred_check
          %p439 = pneg %p60
        $region14: #{tpu_custom_call.1} parent=11 // pred_check_branch
          %441 = sbr.rel (%p439) target = $region16
        $region15: #{tpu_custom_call.1} parent=11 // pred_region
          %s442 = smul.u32 2, %s31
          %s444 = ssub.s32 256, 256
          %445 = vsyncadd [#allocation3], %s444
          %s446 = smul.addr %s442, 128
          %s447 = scalar_lea.hbm %s0, %s446
          %s448 = sshll.u32 [#allocation2], 4
          %s449 = int_to_ptr.vmem [resolvable:$true] %s448
          %454 = dma.hbm_to_vmem [thread:$0]  %s447, 256, %s449, [#allocation3], 128, 128, 8
        $region16: #{tpu_custom_call.1} parent=11 // pred_fallthru
          _
      $region12: #{tpu_custom_call.1} parent=5 // pred_fallthru
        _
      %p455 = scmp.lt.s32.totalorder %s22, 2
      // Predicated region
      $region17: #{tpu_custom_call.1} parent=5 // pred_check
        %p456 = pneg %p455
      $region18: #{tpu_custom_call.1} parent=5 // pred_check_branch
        %458 = sbr.rel (%p456) target = $region20
      $region19: #{tpu_custom_call.1} parent=5 // pred_region
        // Predicated region
        $region21: #{tpu_custom_call.1} parent=19 // pred_check
          %p459 = pneg %p80
        $region22: #{tpu_custom_call.1} parent=19 // pred_check_branch
          %461 = sbr.rel (%p459) target = $region24
        $region23: #{tpu_custom_call.1} parent=19 // pred_region
          %p462 = scmp.lt.s32.totalorder %s30, 1
          %s463 = scalar_select %p462, %s30, 1
          %s464 = smul.addr %s463, 4
          %s465 = smul.addr %s464, 8
          %s466 = scalar_lea.vmem %s1, %s465
        $region24: #{tpu_custom_call.1} parent=19 // pred_fallthru
          _
        // Predicated region
        $region25: #{tpu_custom_call.1} parent=19 // pred_check
          %p467 = pneg %p106
        $region26: #{tpu_custom_call.1} parent=19 // pred_check_branch
          %469 = sbr.rel (%p467) target = $region28
        $region27: #{tpu_custom_call.1} parent=19 // pred_region
          %p470 = scmp.lt.s32.totalorder %s30, 1
          %s471 = scalar_select %p470, %s30, 1
          %s472 = smul.addr %s471, 4
          %s473 = smul.addr %s472, 8
          %s474 = scalar_lea.vmem %s2, %s473
        $region28: #{tpu_custom_call.1} parent=19 // pred_fallthru
          _
        // Predicated region
        $region29: #{tpu_custom_call.1} parent=19 // pred_check
          %p475 = pneg %p132
        $region30: #{tpu_custom_call.1} parent=19 // pred_check_branch
          %477 = sbr.rel (%p475) target = $region32
        $region31: #{tpu_custom_call.1} parent=19 // pred_region
          %p478 = scmp.lt.s32.totalorder %s30, 1
          %s479 = scalar_select %p478, %s30, 1
          %s480 = smul.addr %s479, 4
          %s481 = smul.addr %s480, 8
          %s482 = scalar_lea.vmem %s3, %s481
        $region32: #{tpu_custom_call.1} parent=19 // pred_fallthru
          _
        // Predicated region
        $region33: #{tpu_custom_call.1} parent=19 // pred_check
          %p483 = pneg %p158
        $region34: #{tpu_custom_call.1} parent=19 // pred_check_branch
          %485 = sbr.rel (%p483) target = $region36
        $region35: #{tpu_custom_call.1} parent=19 // pred_region
          %p486 = scmp.lt.s32.totalorder %s30, 1
          %s487 = scalar_select %p486, %s30, 1
          %s488 = smul.addr %s487, 4
          %s489 = smul.addr %s488, 8
          %s490 = scalar_lea.vmem %s4, %s489
        $region36: #{tpu_custom_call.1} parent=19 // pred_fallthru
          _
        // Predicated region
        $region37: #{tpu_custom_call.1} parent=19 // pred_check
          %p491 = pneg %p184
        $region38: #{tpu_custom_call.1} parent=19 // pred_check_branch
          %493 = sbr.rel (%p491) target = $region40
        $region39: #{tpu_custom_call.1} parent=19 // pred_region
          %p494 = scmp.lt.s32.totalorder %s30, 1
          %s495 = scalar_select %p494, %s30, 1
          %s496 = scalar_lea.vmem %s5, %s495
        $region40: #{tpu_custom_call.1} parent=19 // pred_fallthru
          _
        // Predicated region
        $region41: #{tpu_custom_call.1} parent=19 // pred_check
          %p497 = pneg %p210
        $region42: #{tpu_custom_call.1} parent=19 // pred_check_branch
          %499 = sbr.rel (%p497) target = $region44
        $region43: #{tpu_custom_call.1} parent=19 // pred_region
          %p500 = scmp.lt.s32.totalorder %s30, 1
          %s501 = scalar_select %p500, %s30, 1
          %s502 = scalar_lea.vmem %s6, %s501
        $region44: #{tpu_custom_call.1} parent=19 // pred_fallthru
          _
        // Predicated region
        $region45: #{tpu_custom_call.1} parent=19 // pred_check
          %p503 = pneg %p236
        $region46: #{tpu_custom_call.1} parent=19 // pred_check_branch
          %505 = sbr.rel (%p503) target = $region48
        $region47: #{tpu_custom_call.1} parent=19 // pred_region
          %p506 = scmp.lt.s32.totalorder %s30, 1
          %s507 = scalar_select %p506, %s30, 1
          %s508 = scalar_lea.vmem %s7, %s507
        $region48: #{tpu_custom_call.1} parent=19 // pred_fallthru
          _
        // Predicated region
        $region49: #{tpu_custom_call.1} parent=19 // pred_check
          %p509 = pneg %p262
        $region50: #{tpu_custom_call.1} parent=19 // pred_check_branch
          %511 = sbr.rel (%p509) target = $region52
        $region51: #{tpu_custom_call.1} parent=19 // pred_region
          %p512 = scmp.lt.s32.totalorder %s30, 1
          %s513 = scalar_select %p512, %s30, 1
          %s514 = smul.addr %s513, 4
          %s515 = smul.addr %s514, 8
          %s516 = scalar_lea.vmem %s8, %s515
        $region52: #{tpu_custom_call.1} parent=19 // pred_fallthru
          _
        // Predicated region
        $region53: #{tpu_custom_call.1} parent=19 // pred_check
          %p517 = pneg %p288
        $region54: #{tpu_custom_call.1} parent=19 // pred_check_branch
          %519 = sbr.rel (%p517) target = $region56
        $region55: #{tpu_custom_call.1} parent=19 // pred_region
          %p520 = scmp.lt.s32.totalorder %s30, 1
          %s521 = scalar_select %p520, %s30, 1
          %s522 = scalar_lea.vmem %s9, %s521
        $region56: #{tpu_custom_call.1} parent=19 // pred_fallthru
          _
        // Predicated region
        $region57: #{tpu_custom_call.1} parent=19 // pred_check
          %p523 = pneg %p314
        $region58: #{tpu_custom_call.1} parent=19 // pred_check_branch
          %525 = sbr.rel (%p523) target = $region60
        $region59: #{tpu_custom_call.1} parent=19 // pred_region
          %p526 = scmp.lt.s32.totalorder %s30, 1
          %s527 = scalar_select %p526, %s30, 1
          %s528 = smul.addr %s527, 16
          %s529 = smul.addr %s528, 8
          %s530 = scalar_lea.vmem %s10, %s529
        $region60: #{tpu_custom_call.1} parent=19 // pred_fallthru
          _
        // Predicated region
        $region61: #{tpu_custom_call.1} parent=19 // pred_check
          %p531 = pneg %p340
        $region62: #{tpu_custom_call.1} parent=19 // pred_check_branch
          %533 = sbr.rel (%p531) target = $region64
        $region63: #{tpu_custom_call.1} parent=19 // pred_region
          %p534 = scmp.lt.s32.totalorder %s30, 1
          %s535 = scalar_select %p534, %s30, 1
          %s536 = scalar_lea.vmem %s11, %s535
        $region64: #{tpu_custom_call.1} parent=19 // pred_fallthru
          _
        // Predicated region
        $region65: #{tpu_custom_call.1} parent=19 // pred_check
          %p537 = pneg %p366
        $region66: #{tpu_custom_call.1} parent=19 // pred_check_branch
          %539 = sbr.rel (%p537) target = $region68
        $region67: #{tpu_custom_call.1} parent=19 // pred_region
          %p540 = scmp.lt.s32.totalorder %s30, 1
          %s541 = scalar_select %p540, %s30, 1
          %s542 = scalar_lea.vmem %s12, %s541
        $region68: #{tpu_custom_call.1} parent=19 // pred_fallthru
          _
        // Predicated region
        $region69: #{tpu_custom_call.1} parent=19 // pred_check
          %p543 = pneg %p392
        $region70: #{tpu_custom_call.1} parent=19 // pred_check_branch
          %545 = sbr.rel (%p543) target = $region72
        $region71: #{tpu_custom_call.1} parent=19 // pred_region
          %p546 = scmp.lt.s32.totalorder %s30, 1
          %s547 = scalar_select %p546, %s30, 1
          %s548 = scalar_lea.vmem %s13, %s547
        $region72: #{tpu_custom_call.1} parent=19 // pred_fallthru
          _
      $region20: #{tpu_custom_call.1} parent=5 // pred_fallthru
        _
      %p549 = scmp.le.s32.totalorder 1, %s22
      %p550 = scmp.lt.s32.totalorder %s22, 3
      %p551 = pnand %p549, %p550
      %p552 = pneg %p551
      // Predicated region
      $region73: #{tpu_custom_call.1} parent=5 // pred_check
        _
      $region74: #{tpu_custom_call.1} parent=5 // pred_check_branch
        %554 = sbr.rel (%p551) target = $region76
      $region75: #{tpu_custom_call.1} parent=5 // pred_region
        %s555 = ssub.s32 %s22, 1
        // Predicated region
        $region77: #{tpu_custom_call.1} parent=75 // pred_check
          %p556 = pneg %p60
        $region78: #{tpu_custom_call.1} parent=75 // pred_check_branch
          %558 = sbr.rel (%p556) target = $region80
        $region79: #{tpu_custom_call.1} parent=75 // pred_region
          %559 = dma.done [#allocation3], 256
        $region80: #{tpu_custom_call.1} parent=75 // pred_fallthru
          _
        %p560 = pneg %p60
        %p561 = pneg %p57
        %p562 = scmp.lt.s32.totalorder %s32, 1
        %s563 = scalar_select %p562, %s32, 1
        %s564 = smul.addr %s563, 4
        %s565 = smul.addr %s564, 8
        %s566 = scalar_lea.vmem %s1, %s565
        %p567 = pneg %p86
        %p568 = pneg %p83
        %p569 = scmp.lt.s32.totalorder %s32, 1
        %s570 = scalar_select %p569, %s32, 1
        %s571 = smul.addr %s570, 4
        %s572 = smul.addr %s571, 8
        %s573 = scalar_lea.vmem %s2, %s572
        %p574 = pneg %p112
        %p575 = pneg %p109
        %p576 = scmp.lt.s32.totalorder %s32, 1
        %s577 = scalar_select %p576, %s32, 1
        %s578 = smul.addr %s577, 4
        %s579 = smul.addr %s578, 8
        %s580 = scalar_lea.vmem %s3, %s579
        %p581 = pneg %p138
        %p582 = pneg %p135
        %p583 = scmp.lt.s32.totalorder %s32, 1
        %s584 = scalar_select %p583, %s32, 1
        %s585 = smul.addr %s584, 4
        %s586 = smul.addr %s585, 8
        %s587 = scalar_lea.vmem %s4, %s586
        %p588 = pneg %p164
        %p589 = pneg %p161
        %p590 = scmp.lt.s32.totalorder %s32, 1
        %s591 = scalar_select %p590, %s32, 1
        %s592 = scalar_lea.vmem %s5, %s591
        %p593 = pneg %p190
        %p594 = pneg %p187
        %p595 = scmp.lt.s32.totalorder %s32, 1
        %s596 = scalar_select %p595, %s32, 1
        %s597 = scalar_lea.vmem %s6, %s596
        %p598 = pneg %p216
        %p599 = pneg %p213
        %p600 = scmp.lt.s32.totalorder %s32, 1
        %s601 = scalar_select %p600, %s32, 1
        %s602 = scalar_lea.vmem %s7, %s601
        %p603 = pneg %p242
        %p604 = pneg %p239
        %p605 = scmp.lt.s32.totalorder %s32, 1
        %s606 = scalar_select %p605, %s32, 1
        %s607 = smul.addr %s606, 4
        %s608 = smul.addr %s607, 8
        %s609 = scalar_lea.vmem %s8, %s608
        %p610 = pneg %p268
        %p611 = pneg %p265
        %p612 = scmp.lt.s32.totalorder %s32, 1
        %s613 = scalar_select %p612, %s32, 1
        %s614 = scalar_lea.vmem %s9, %s613
        %p615 = pneg %p294
        %p616 = pneg %p291
        %p617 = scmp.lt.s32.totalorder %s32, 1
        %s618 = scalar_select %p617, %s32, 1
        %s619 = smul.addr %s618, 16
        %s620 = smul.addr %s619, 8
        %s621 = scalar_lea.vmem %s10, %s620
        %p622 = pneg %p320
        %p623 = pneg %p317
        %p624 = scmp.lt.s32.totalorder %s32, 1
        %s625 = scalar_select %p624, %s32, 1
        %s626 = scalar_lea.vmem %s11, %s625
        %p627 = pneg %p346
        %p628 = pneg %p343
        %p629 = scmp.lt.s32.totalorder %s32, 1
        %s630 = scalar_select %p629, %s32, 1
        %s631 = scalar_lea.vmem %s12, %s630
        %p632 = pneg %p372
        %p633 = pneg %p369
        %p634 = scmp.lt.s32.totalorder %s32, 1
        %s635 = scalar_select %p634, %s32, 1
        %s636 = scalar_lea.vmem %s13, %s635
        %p637 = pneg %p398
        %p638 = pneg %p395
        %p639 = pneg %p424
        %p640 = pneg %p421
        %s641 = smul.u32 2, %s31
        %p642 = scmp.lt.s32.totalorder %s32, 1
        %s643 = scalar_select %p642, %s32, 1
        %s644 = smul.addr %s643, 4
        %s645 = smul.addr %s644, 8
        %s646 = scalar_lea.vmem %s1, %s645
        %p647 = scmp.lt.s32.totalorder %s32, 1
        %s648 = scalar_select %p647, %s32, 1
        %s649 = smul.addr %s648, 4
        %s650 = smul.addr %s649, 8
        %s651 = scalar_lea.vmem %s2, %s650
        %p652 = scmp.lt.s32.totalorder %s32, 1
        %s653 = scalar_select %p652, %s32, 1
        %s654 = smul.addr %s653, 4
        %s655 = smul.addr %s654, 8
        %s656 = scalar_lea.vmem %s3, %s655
        %p657 = scmp.lt.s32.totalorder %s32, 1
        %s658 = scalar_select %p657, %s32, 1
        %s659 = smul.addr %s658, 4
        %s660 = smul.addr %s659, 8
        %s661 = scalar_lea.vmem %s4, %s660
        %p662 = scmp.lt.s32.totalorder %s32, 1
        %s663 = scalar_select %p662, %s32, 1
        %s664 = scalar_lea.vmem %s5, %s663
        %p665 = scmp.lt.s32.totalorder %s32, 1
        %s666 = scalar_select %p665, %s32, 1
        %s667 = scalar_lea.vmem %s6, %s666
        %p668 = scmp.lt.s32.totalorder %s32, 1
        %s669 = scalar_select %p668, %s32, 1
        %s670 = scalar_lea.vmem %s7, %s669
        %p671 = scmp.lt.s32.totalorder %s32, 1
        %s672 = scalar_select %p671, %s32, 1
        %s673 = smul.addr %s672, 4
        %s674 = smul.addr %s673, 8
        %s675 = scalar_lea.vmem %s8, %s674
        %p676 = scmp.lt.s32.totalorder %s32, 1
        %s677 = scalar_select %p676, %s32, 1
        %s678 = scalar_lea.vmem %s9, %s677
        %p679 = scmp.lt.s32.totalorder %s32, 1
        %s680 = scalar_select %p679, %s32, 1
        %s681 = smul.addr %s680, 16
        %s682 = smul.addr %s681, 8
        %s683 = scalar_lea.vmem %s10, %s682
        %p684 = scmp.lt.s32.totalorder %s32, 1
        %s685 = scalar_select %p684, %s32, 1
        %s686 = scalar_lea.vmem %s11, %s685
        %p687 = scmp.lt.s32.totalorder %s32, 1
        %s688 = scalar_select %p687, %s32, 1
        %s689 = scalar_lea.vmem %s12, %s688
        %p690 = scmp.lt.s32.totalorder %s32, 1
        %s691 = scalar_select %p690, %s32, 1
        %s692 = scalar_lea.vmem %s13, %s691
        %s693 = smul.u32 2, %s31
        %p694 = scmp.eq.s32.totalorder %s32, 0
        // Predicated region
        $region81: #{tpu_custom_call.1} parent=75 // pred_check
          %p695 = pneg %p694
        $region82: #{tpu_custom_call.1} parent=75 // pred_check_branch
          %697 = sbr.rel (%p695) target = $region84
        $region83: #{tpu_custom_call.1} parent=75 // pred_region
          %v698 = vld [vmem:[#allocation2] sm:$0xff]
          %v699 = vld [vmem:[#allocation2 + $0x8] sm:$0xff]
          %vm700 = vcmask 261120
          %701 = vst.msk [vmem:[#allocation5] sm:$0xff] %vm700, %v698
          %702 = vst.msk [vmem:[#allocation5 + $0x8] sm:$0xff] %vm700, %v699
        $region84: #{tpu_custom_call.1} parent=75 // pred_fallthru
          _
        %v703 = vld [vmem:[#allocation5] sm:$0xff]
        %v704 = vld [vmem:[#allocation5 + $0x8] sm:$0xff]
        %v705 = vld [vmem:[%s646] sm:$0xff]
        %v706 = vld [vmem:[%s646 + $0x8] sm:$0xff]
        %v707 = vld [vmem:[%s646 + $0x10] sm:$0xff]
        %v708 = vld [vmem:[%s646 + $0x18] sm:$0xff]
        %v709 = vld [vmem:[%s651] sm:$0xff]
        %v710 = vld [vmem:[%s651 + $0x8] sm:$0xff]
        %v711 = vld [vmem:[%s651 + $0x10] sm:$0xff]
        %v712 = vld [vmem:[%s651 + $0x18] sm:$0xff]
        %v713 = vld [vmem:[%s656] sm:$0xff]
        %v714 = vld [vmem:[%s656 + $0x8] sm:$0xff]
        %v715 = vld [vmem:[%s656 + $0x10] sm:$0xff]
        %v716 = vld [vmem:[%s656 + $0x18] sm:$0xff]
        %v717 = vld [vmem:[%s661] sm:$0xff]
        %v718 = vld [vmem:[%s661 + $0x8] sm:$0xff]
        %v719 = vld [vmem:[%s661 + $0x10] sm:$0xff]
        %v720 = vld [vmem:[%s661 + $0x18] sm:$0xff]
        %vm721 = vcmask 261120
        %v723 = vsel %vm721, %v703, 0
        %v726 = vsel %vm721, %v704, 0
        %728 = vmatprep.subr.mxu0 0.0
        %729 = vmatpush1.msra.mxu0 0.0
        %730 = vmatprep.subr.mxu0 0.0
        %731 = vmatpush1.msra.mxu0 0.0
        %732 = vmatprep.subr.mxu0 0.0
        %733 = vmatpush1.msra.mxu0 0.0
        %734 = vmatprep.subr.mxu0 0.0
        %735 = vmatpush1.msra.mxu0 0.0
        %736 = vmatprep.subr.mxu0 0.0
        %737 = vmatpush1.msra.mxu0 0.0
        %738 = vmatprep.subr.mxu0 0.0
        %739 = vmatpush1.msra.mxu0 0.0
        %740 = vmatprep.subr.mxu0 0.0
        %741 = vmatpush1.msra.mxu0 0.0
        %742 = vmatprep.subr.mxu0 0.0
        %743 = vmatpush1.msra.mxu0 0.0
        %744 = vmatprep.subr.mxu0 0.0
        %745 = vmatpush1.msra.mxu0 0.0
        %746 = vmatprep.subr.mxu0 0.0
        %747 = vmatpush1.msra.mxu0 0.0
        %748 = vmatprep.subr.mxu0 0.0
        %749 = vmatpush1.msra.mxu0 0.0
        %750 = vmatprep.subr.mxu0 0.0
        %751 = vmatpush1.msra.mxu0 0.0
        %752 = vmatprep.subr.mxu0 0.0
        %753 = vmatpush1.msra.mxu0 %v712
        %754 = vmatprep.subr.mxu0 0.0
        %755 = vmatpush1.msra.mxu0 %v711
        %756 = vmatprep.subr.mxu0 0.0
        %757 = vmatpush1.msra.mxu0 %v710
        %758 = vmatprep.subr.mxu0 0.0
        %759 = vmatpush1.msra.mxu0 %v709
        %760 = vmatprep.subr.mxu0 0.0
        %761 = vmatpush2.msra.mxu0 0.0
        %762 = vmatprep.subr.mxu0 0.0
        %763 = vmatpush2.msra.mxu0 0.0
        %764 = vmatprep.subr.mxu0 0.0
        %765 = vmatpush2.msra.mxu0 0.0
        %766 = vmatprep.subr.mxu0 0.0
        %767 = vmatpush2.msra.mxu0 0.0
        %768 = vmatprep.subr.mxu0 0.0
        %769 = vmatpush2.msra.mxu0 0.0
        %770 = vmatprep.subr.mxu0 0.0
        %771 = vmatpush2.msra.mxu0 0.0
        %772 = vmatprep.subr.mxu0 0.0
        %773 = vmatpush2.msra.mxu0 0.0
        %774 = vmatprep.subr.mxu0 0.0
        %775 = vmatpush2.msra.mxu0 0.0
        %776 = vmatprep.subr.mxu0 0.0
        %777 = vmatpush2.msra.mxu0 0.0
        %778 = vmatprep.subr.mxu0 0.0
        %779 = vmatpush2.msra.mxu0 0.0
        %780 = vmatprep.subr.mxu0 0.0
        %781 = vmatpush2.msra.mxu0 0.0
        %782 = vmatprep.subr.mxu0 0.0
        %783 = vmatpush2.msra.mxu0 0.0
        %784 = vmatprep.subr.mxu0 0.0
        %785 = vmatpush2.msra.mxu0 0.0
        %786 = vmatprep.subr.mxu0 0.0
        %787 = vmatpush2.msra.mxu0 0.0
        %788 = vmatprep.subr.mxu0 0.0
        %789 = vmatpush2.msra.mxu0 0.0
        %790 = vmatprep.subr.mxu0 0.0
        %791 = vmatpush2.msra.mxu0 0.0
        %792 = vmatprep.mubr.f32.mxu0 0.0
        %793 = vmatmul.mubr.f32.gmra.mxu0 %v723
        %v794 = vpop.f32.mrf.mxu0
        %v795 = vadd.f32 0.0, %v794
        %v796 = vpop.f32.mrf.mxu0
        %797 = vmatprep.mubr.f32.mxu0 0.0
        %798 = vmatmul.mubr.f32.gmra.mxu0 %v726
        %v799 = vpop.f32.mrf.mxu0
        %v800 = vadd.f32 0.0, %v799
        %v801 = vpop.f32.mrf.mxu0
        %802 = vdwg.mxu0
        %803 = vmatprep.subr.mxu0 0.0
        %804 = vmatpush1.msra.mxu0 0.0
        %805 = vmatprep.subr.mxu0 0.0
        %806 = vmatpush1.msra.mxu0 0.0
        %807 = vmatprep.subr.mxu0 0.0
        %808 = vmatpush1.msra.mxu0 0.0
        %809 = vmatprep.subr.mxu0 0.0
        %810 = vmatpush1.msra.mxu0 0.0
        %811 = vmatprep.subr.mxu0 0.0
        %812 = vmatpush1.msra.mxu0 0.0
        %813 = vmatprep.subr.mxu0 0.0
        %814 = vmatpush1.msra.mxu0 0.0
        %815 = vmatprep.subr.mxu0 0.0
        %816 = vmatpush1.msra.mxu0 0.0
        %817 = vmatprep.subr.mxu0 0.0
        %818 = vmatpush1.msra.mxu0 0.0
        %819 = vmatprep.subr.mxu0 0.0
        %820 = vmatpush1.msra.mxu0 0.0
        %821 = vmatprep.subr.mxu0 0.0
        %822 = vmatpush1.msra.mxu0 0.0
        %823 = vmatprep.subr.mxu0 0.0
        %824 = vmatpush1.msra.mxu0 0.0
        %825 = vmatprep.subr.mxu0 0.0
        %826 = vmatpush1.msra.mxu0 0.0
        %827 = vmatprep.subr.mxu0 0.0
        %828 = vmatpush1.msra.mxu0 %v708
        %829 = vmatprep.subr.mxu0 0.0
        %830 = vmatpush1.msra.mxu0 %v707
        %831 = vmatprep.subr.mxu0 0.0
        %832 = vmatpush1.msra.mxu0 %v706
        %833 = vmatprep.subr.mxu0 0.0
        %834 = vmatpush1.msra.mxu0 %v705
        %835 = vmatprep.subr.mxu0 0.0
        %836 = vmatpush2.msra.mxu0 0.0
        %837 = vmatprep.subr.mxu0 0.0
        %838 = vmatpush2.msra.mxu0 0.0
        %839 = vmatprep.subr.mxu0 0.0
        %840 = vmatpush2.msra.mxu0 0.0
        %841 = vmatprep.subr.mxu0 0.0
        %842 = vmatpush2.msra.mxu0 0.0
        %843 = vmatprep.subr.mxu0 0.0
        %844 = vmatpush2.msra.mxu0 0.0
        %845 = vmatprep.subr.mxu0 0.0
        %846 = vmatpush2.msra.mxu0 0.0
        %847 = vmatprep.subr.mxu0 0.0
        %848 = vmatpush2.msra.mxu0 0.0
        %849 = vmatprep.subr.mxu0 0.0
        %850 = vmatpush2.msra.mxu0 0.0
        %851 = vmatprep.subr.mxu0 0.0
        %852 = vmatpush2.msra.mxu0 0.0
        %853 = vmatprep.subr.mxu0 0.0
        %854 = vmatpush2.msra.mxu0 0.0
        %855 = vmatprep.subr.mxu0 0.0
        %856 = vmatpush2.msra.mxu0 0.0
        %857 = vmatprep.subr.mxu0 0.0
        %858 = vmatpush2.msra.mxu0 0.0
        %859 = vmatprep.subr.mxu0 0.0
        %860 = vmatpush2.msra.mxu0 0.0
        %861 = vmatprep.subr.mxu0 0.0
        %862 = vmatpush2.msra.mxu0 0.0
        %863 = vmatprep.subr.mxu0 0.0
        %864 = vmatpush2.msra.mxu0 0.0
        %865 = vmatprep.subr.mxu0 0.0
        %866 = vmatpush2.msra.mxu0 0.0
        %867 = vmatprep.mubr.f32.mxu0 0.0
        %868 = vmatmul.mubr.f32.gmra.mxu0 %v723
        %v869 = vpop.f32.mrf.mxu0
        %v870 = vadd.f32 0.0, %v869
        %v871 = vpop.f32.mrf.mxu0
        %872 = vmatprep.mubr.f32.mxu0 0.0
        %873 = vmatmul.mubr.f32.gmra.mxu0 %v726
        %v874 = vpop.f32.mrf.mxu0
        %v875 = vadd.f32 0.0, %v874
        %v876 = vpop.f32.mrf.mxu0
        %877 = vdwg.mxu0
        %878 = vmatprep.subr.mxu0 0.0
        %879 = vmatpush1.msra.mxu0 0.0
        %880 = vmatprep.subr.mxu0 0.0
        %881 = vmatpush1.msra.mxu0 0.0
        %882 = vmatprep.subr.mxu0 0.0
        %883 = vmatpush1.msra.mxu0 0.0
        %884 = vmatprep.subr.mxu0 0.0
        %885 = vmatpush1.msra.mxu0 0.0
        %886 = vmatprep.subr.mxu0 0.0
        %887 = vmatpush1.msra.mxu0 0.0
        %888 = vmatprep.subr.mxu0 0.0
        %889 = vmatpush1.msra.mxu0 0.0
        %890 = vmatprep.subr.mxu0 0.0
        %891 = vmatpush1.msra.mxu0 0.0
        %892 = vmatprep.subr.mxu0 0.0
        %893 = vmatpush1.msra.mxu0 0.0
        %894 = vmatprep.subr.mxu0 0.0
        %895 = vmatpush1.msra.mxu0 0.0
        %896 = vmatprep.subr.mxu0 0.0
        %897 = vmatpush1.msra.mxu0 0.0
        %898 = vmatprep.subr.mxu0 0.0
        %899 = vmatpush1.msra.mxu0 0.0
        %900 = vmatprep.subr.mxu0 0.0
        %901 = vmatpush1.msra.mxu0 0.0
        %902 = vmatprep.subr.mxu0 0.0
        %903 = vmatpush1.msra.mxu0 %v716
        %904 = vmatprep.subr.mxu0 0.0
        %905 = vmatpush1.msra.mxu0 %v715
        %906 = vmatprep.subr.mxu0 0.0
        %907 = vmatpush1.msra.mxu0 %v714
        %908 = vmatprep.subr.mxu0 0.0
        %909 = vmatpush1.msra.mxu0 %v713
        %910 = vmatprep.subr.mxu0 0.0
        %911 = vmatpush2.msra.mxu0 0.0
        %912 = vmatprep.subr.mxu0 0.0
        %913 = vmatpush2.msra.mxu0 0.0
        %914 = vmatprep.subr.mxu0 0.0
        %915 = vmatpush2.msra.mxu0 0.0
        %916 = vmatprep.subr.mxu0 0.0
        %917 = vmatpush2.msra.mxu0 0.0
        %918 = vmatprep.subr.mxu0 0.0
        %919 = vmatpush2.msra.mxu0 0.0
        %920 = vmatprep.subr.mxu0 0.0
        %921 = vmatpush2.msra.mxu0 0.0
        %922 = vmatprep.subr.mxu0 0.0
        %923 = vmatpush2.msra.mxu0 0.0
        %924 = vmatprep.subr.mxu0 0.0
        %925 = vmatpush2.msra.mxu0 0.0
        %926 = vmatprep.subr.mxu0 0.0
        %927 = vmatpush2.msra.mxu0 0.0
        %928 = vmatprep.subr.mxu0 0.0
        %929 = vmatpush2.msra.mxu0 0.0
        %930 = vmatprep.subr.mxu0 0.0
        %931 = vmatpush2.msra.mxu0 0.0
        %932 = vmatprep.subr.mxu0 0.0
        %933 = vmatpush2.msra.mxu0 0.0
        %934 = vmatprep.subr.mxu0 0.0
        %935 = vmatpush2.msra.mxu0 0.0
        %936 = vmatprep.subr.mxu0 0.0
        %937 = vmatpush2.msra.mxu0 0.0
        %938 = vmatprep.subr.mxu0 0.0
        %939 = vmatpush2.msra.mxu0 0.0
        %940 = vmatprep.subr.mxu0 0.0
        %941 = vmatpush2.msra.mxu0 0.0
        %942 = vmatprep.mubr.f32.mxu0 0.0
        %943 = vmatmul.mubr.f32.gmra.mxu0 %v723
        %v944 = vpop.f32.mrf.mxu0
        %v945 = vadd.f32 0.0, %v944
        %v946 = vpop.f32.mrf.mxu0
        %947 = vmatprep.mubr.f32.mxu0 0.0
        %948 = vmatmul.mubr.f32.gmra.mxu0 %v726
        %v949 = vpop.f32.mrf.mxu0
        %v950 = vadd.f32 0.0, %v949
        %v951 = vpop.f32.mrf.mxu0
        %952 = vdwg.mxu0
        %vm953 = vcmask 64512
        %v955 = vsel %vm953, %v795, 0
        %v958 = vsel %vm953, %v870, 0
        %960 = vmatprep.subr.mxu0 0.0
        %961 = vmatpush1.xpose.msra.mxu0 0.0
        %962 = vmatprep.subr.mxu0 0.0
        %963 = vmatpush1.xpose.msra.mxu0 0.0
        %964 = vmatprep.subr.mxu0 0.0
        %965 = vmatpush1.xpose.msra.mxu0 0.0
        %966 = vmatprep.subr.mxu0 0.0
        %967 = vmatpush1.xpose.msra.mxu0 0.0
        %968 = vmatprep.subr.mxu0 0.0
        %969 = vmatpush1.xpose.msra.mxu0 0.0
        %970 = vmatprep.subr.mxu0 0.0
        %971 = vmatpush1.xpose.msra.mxu0 0.0
        %972 = vmatprep.subr.mxu0 0.0
        %973 = vmatpush1.xpose.msra.mxu0 0.0
        %974 = vmatprep.subr.mxu0 0.0
        %975 = vmatpush1.xpose.msra.mxu0 0.0
        %976 = vmatprep.subr.mxu0 0.0
        %977 = vmatpush1.xpose.msra.mxu0 0.0
        %978 = vmatprep.subr.mxu0 0.0
        %979 = vmatpush1.xpose.msra.mxu0 0.0
        %980 = vmatprep.subr.mxu0 0.0
        %981 = vmatpush1.xpose.msra.mxu0 0.0
        %982 = vmatprep.subr.mxu0 0.0
        %983 = vmatpush1.xpose.msra.mxu0 0.0
        %984 = vmatprep.subr.mxu0 0.0
        %985 = vmatpush1.xpose.msra.mxu0 0.0
        %986 = vmatprep.subr.mxu0 0.0
        %987 = vmatpush1.xpose.msra.mxu0 0.0
        %988 = vmatprep.subr.mxu0 0.0
        %989 = vmatpush1.xpose.msra.mxu0 0.0
        %990 = vmatprep.subr.mxu0 0.0
        %991 = vmatpush1.xpose.msra.mxu0 %v958
        %992 = vmatprep.subr.mxu0 0.0
        %993 = vmatpush2.xpose.msra.mxu0 0.0
        %994 = vmatprep.subr.mxu0 0.0
        %995 = vmatpush2.xpose.msra.mxu0 0.0
        %996 = vmatprep.subr.mxu0 0.0
        %997 = vmatpush2.xpose.msra.mxu0 0.0
        %998 = vmatprep.subr.mxu0 0.0
        %999 = vmatpush2.xpose.msra.mxu0 0.0
        %1000 = vmatprep.subr.mxu0 0.0
        %1001 = vmatpush2.xpose.msra.mxu0 0.0
        %1002 = vmatprep.subr.mxu0 0.0
        %1003 = vmatpush2.xpose.msra.mxu0 0.0
        %1004 = vmatprep.subr.mxu0 0.0
        %1005 = vmatpush2.xpose.msra.mxu0 0.0
        %1006 = vmatprep.subr.mxu0 0.0
        %1007 = vmatpush2.xpose.msra.mxu0 0.0
        %1008 = vmatprep.subr.mxu0 0.0
        %1009 = vmatpush2.xpose.msra.mxu0 0.0
        %1010 = vmatprep.subr.mxu0 0.0
        %1011 = vmatpush2.xpose.msra.mxu0 0.0
        %1012 = vmatprep.subr.mxu0 0.0
        %1013 = vmatpush2.xpose.msra.mxu0 0.0
        %1014 = vmatprep.subr.mxu0 0.0
        %1015 = vmatpush2.xpose.msra.mxu0 0.0
        %1016 = vmatprep.subr.mxu0 0.0
        %1017 = vmatpush2.xpose.msra.mxu0 0.0
        %1018 = vmatprep.subr.mxu0 0.0
        %1019 = vmatpush2.xpose.msra.mxu0 0.0
        %1020 = vmatprep.subr.mxu0 0.0
        %1021 = vmatpush2.xpose.msra.mxu0 0.0
        %1022 = vmatprep.subr.mxu0 0.0
        %1023 = vmatpush2.xpose.msra.mxu0 0.0
        %1024 = vmatprep.mubr.f32.mxu0 0.0
        %1025 = vmatmul.mubr.f32.gmra.mxu0 %v955
        %v1026 = vpop.f32.mrf.mxu0
        %v1027 = vadd.f32 0.0, %v1026
        %v1028 = vpop.f32.mrf.mxu0
        %1029 = vdwg.mxu0
        %v1031 = vsel %vm953, %v800, 0
        %v1034 = vsel %vm953, %v875, 0
        %1036 = vmatprep.subr.mxu0 0.0
        %1037 = vmatpush1.xpose.msra.mxu0 0.0
        %1038 = vmatprep.subr.mxu0 0.0
        %1039 = vmatpush1.xpose.msra.mxu0 0.0
        %1040 = vmatprep.subr.mxu0 0.0
        %1041 = vmatpush1.xpose.msra.mxu0 0.0
        %1042 = vmatprep.subr.mxu0 0.0
        %1043 = vmatpush1.xpose.msra.mxu0 0.0
        %1044 = vmatprep.subr.mxu0 0.0
        %1045 = vmatpush1.xpose.msra.mxu0 0.0
        %1046 = vmatprep.subr.mxu0 0.0
        %1047 = vmatpush1.xpose.msra.mxu0 0.0
        %1048 = vmatprep.subr.mxu0 0.0
        %1049 = vmatpush1.xpose.msra.mxu0 0.0
        %1050 = vmatprep.subr.mxu0 0.0
        %1051 = vmatpush1.xpose.msra.mxu0 0.0
        %1052 = vmatprep.subr.mxu0 0.0
        %1053 = vmatpush1.xpose.msra.mxu0 0.0
        %1054 = vmatprep.subr.mxu0 0.0
        %1055 = vmatpush1.xpose.msra.mxu0 0.0
        %1056 = vmatprep.subr.mxu0 0.0
        %1057 = vmatpush1.xpose.msra.mxu0 0.0
        %1058 = vmatprep.subr.mxu0 0.0
        %1059 = vmatpush1.xpose.msra.mxu0 0.0
        %1060 = vmatprep.subr.mxu0 0.0
        %1061 = vmatpush1.xpose.msra.mxu0 0.0
        %1062 = vmatprep.subr.mxu0 0.0
        %1063 = vmatpush1.xpose.msra.mxu0 0.0
        %1064 = vmatprep.subr.mxu0 0.0
        %1065 = vmatpush1.xpose.msra.mxu0 0.0
        %1066 = vmatprep.subr.mxu0 0.0
        %1067 = vmatpush1.xpose.msra.mxu0 %v1034
        %1068 = vmatprep.subr.mxu0 0.0
        %1069 = vmatpush2.xpose.msra.mxu0 0.0
        %1070 = vmatprep.subr.mxu0 0.0
        %1071 = vmatpush2.xpose.msra.mxu0 0.0
        %1072 = vmatprep.subr.mxu0 0.0
        %1073 = vmatpush2.xpose.msra.mxu0 0.0
        %1074 = vmatprep.subr.mxu0 0.0
        %1075 = vmatpush2.xpose.msra.mxu0 0.0
        %1076 = vmatprep.subr.mxu0 0.0
        %1077 = vmatpush2.xpose.msra.mxu0 0.0
        %1078 = vmatprep.subr.mxu0 0.0
        %1079 = vmatpush2.xpose.msra.mxu0 0.0
        %1080 = vmatprep.subr.mxu0 0.0
        %1081 = vmatpush2.xpose.msra.mxu0 0.0
        %1082 = vmatprep.subr.mxu0 0.0
        %1083 = vmatpush2.xpose.msra.mxu0 0.0
        %1084 = vmatprep.subr.mxu0 0.0
        %1085 = vmatpush2.xpose.msra.mxu0 0.0
        %1086 = vmatprep.subr.mxu0 0.0
        %1087 = vmatpush2.xpose.msra.mxu0 0.0
        %1088 = vmatprep.subr.mxu0 0.0
        %1089 = vmatpush2.xpose.msra.mxu0 0.0
        %1090 = vmatprep.subr.mxu0 0.0
        %1091 = vmatpush2.xpose.msra.mxu0 0.0
        %1092 = vmatprep.subr.mxu0 0.0
        %1093 = vmatpush2.xpose.msra.mxu0 0.0
        %1094 = vmatprep.subr.mxu0 0.0
        %1095 = vmatpush2.xpose.msra.mxu0 0.0
        %1096 = vmatprep.subr.mxu0 0.0
        %1097 = vmatpush2.xpose.msra.mxu0 0.0
        %1098 = vmatprep.subr.mxu0 0.0
        %1099 = vmatpush2.xpose.msra.mxu0 0.0
        %1100 = vmatprep.mubr.f32.mxu0 0.0
        %1101 = vmatmul.mubr.f32.gmra.mxu0 %v1031
        %v1102 = vpop.f32.mrf.mxu0
        %v1103 = vadd.f32 0.0, %v1102
        %v1104 = vpop.f32.mrf.mxu0
        %1105 = vdwg.mxu0
        %v1106 = vmul.f32 %v1027, 0.35355338
        %v1107 = vmul.f32 %v1103, 0.35355338
        %v1108 = vsel %vm953, %v1106, -inf
        %1109 = vmax.xlane.f32.xlu0 %v1108
        %v1110 = vpop.xlane.xlu0 %1109
        %v1111 = vsel %vm953, %v1107, -inf
        %1112 = vmax.xlane.f32.xlu0 %v1111
        %v1113 = vpop.xlane.xlu0 %1112
        %v1114 = vsub.f32 %v1106, %v1110
        %v1115 = vsub.f32 %v1107, %v1113
        %v1116 = vmul.f32 %v1114, 1.442695
        %v1117 = vpow.pop %v1116
        %v1118 = vmul.f32 %v1115, 1.442695
        %v1119 = vpow.pop %v1118
        %v1120 = vsel %vm953, %v1117, 0.0
        %1121 = vadd.xlane.f32.xlu0 %v1120
        %v1122 = vpop.xlane.xlu0 %1121
        %v1123 = vsel %vm953, %v1119, 0.0
        %1124 = vadd.xlane.f32.xlu0 %v1123
        %v1125 = vpop.xlane.xlu0 %1124
        %v1126 = vrcp.pop %v1122
        %v1127 = vrcp.pop %v1125
        %v1128 = vmul.f32 %v1117, %v1126
        %v1129 = vmul.f32 %v1119, %v1127
        %v1131 = vsel %vm953, %v1128, 0
        %1133 = vmatprep.subr.mxu0 0.0
        %1134 = vmatpush1.msra.mxu0 0.0
        %1135 = vmatprep.subr.mxu0 0.0
        %1136 = vmatpush1.msra.mxu0 0.0
        %1137 = vmatprep.subr.mxu0 0.0
        %1138 = vmatpush1.msra.mxu0 0.0
        %1139 = vmatprep.subr.mxu0 0.0
        %1140 = vmatpush1.msra.mxu0 0.0
        %1141 = vmatprep.subr.mxu0 0.0
        %1142 = vmatpush1.msra.mxu0 0.0
        %1143 = vmatprep.subr.mxu0 0.0
        %1144 = vmatpush1.msra.mxu0 0.0
        %1145 = vmatprep.subr.mxu0 0.0
        %1146 = vmatpush1.msra.mxu0 0.0
        %1147 = vmatprep.subr.mxu0 0.0
        %1148 = vmatpush1.msra.mxu0 0.0
        %1149 = vmatprep.subr.mxu0 0.0
        %1150 = vmatpush1.msra.mxu0 0.0
        %1151 = vmatprep.subr.mxu0 0.0
        %1152 = vmatpush1.msra.mxu0 0.0
        %1153 = vmatprep.subr.mxu0 0.0
        %1154 = vmatpush1.msra.mxu0 0.0
        %1155 = vmatprep.subr.mxu0 0.0
        %1156 = vmatpush1.msra.mxu0 0.0
        %1157 = vmatprep.subr.mxu0 0.0
        %1158 = vmatpush1.msra.mxu0 0.0
        %1159 = vmatprep.subr.mxu0 0.0
        %1160 = vmatpush1.msra.mxu0 0.0
        %1161 = vmatprep.subr.mxu0 0.0
        %1162 = vmatpush1.msra.mxu0 0.0
        %1163 = vmatprep.subr.mxu0 0.0
        %1164 = vmatpush1.msra.mxu0 %v945
        %1165 = vmatprep.subr.mxu0 0.0
        %1166 = vmatpush2.msra.mxu0 0.0
        %1167 = vmatprep.subr.mxu0 0.0
        %1168 = vmatpush2.msra.mxu0 0.0
        %1169 = vmatprep.subr.mxu0 0.0
        %1170 = vmatpush2.msra.mxu0 0.0
        %1171 = vmatprep.subr.mxu0 0.0
        %1172 = vmatpush2.msra.mxu0 0.0
        %1173 = vmatprep.subr.mxu0 0.0
        %1174 = vmatpush2.msra.mxu0 0.0
        %1175 = vmatprep.subr.mxu0 0.0
        %1176 = vmatpush2.msra.mxu0 0.0
        %1177 = vmatprep.subr.mxu0 0.0
        %1178 = vmatpush2.msra.mxu0 0.0
        %1179 = vmatprep.subr.mxu0 0.0
        %1180 = vmatpush2.msra.mxu0 0.0
        %1181 = vmatprep.subr.mxu0 0.0
        %1182 = vmatpush2.msra.mxu0 0.0
        %1183 = vmatprep.subr.mxu0 0.0
        %1184 = vmatpush2.msra.mxu0 0.0
        %1185 = vmatprep.subr.mxu0 0.0
        %1186 = vmatpush2.msra.mxu0 0.0
        %1187 = vmatprep.subr.mxu0 0.0
        %1188 = vmatpush2.msra.mxu0 0.0
        %1189 = vmatprep.subr.mxu0 0.0
        %1190 = vmatpush2.msra.mxu0 0.0
        %1191 = vmatprep.subr.mxu0 0.0
        %1192 = vmatpush2.msra.mxu0 0.0
        %1193 = vmatprep.subr.mxu0 0.0
        %1194 = vmatpush2.msra.mxu0 0.0
        %1195 = vmatprep.subr.mxu0 0.0
        %1196 = vmatpush2.msra.mxu0 0.0
        %1197 = vmatprep.mubr.f32.mxu0 0.0
        %1198 = vmatmul.mubr.f32.gmra.mxu0 %v1131
        %v1199 = vpop.f32.mrf.mxu0
        %v1200 = vadd.f32 0.0, %v1199
        %v1201 = vpop.f32.mrf.mxu0
        %1202 = vdwg.mxu0
        %v1204 = vsel %vm953, %v1129, 0
        %1206 = vmatprep.subr.mxu0 0.0
        %1207 = vmatpush1.msra.mxu0 0.0
        %1208 = vmatprep.subr.mxu0 0.0
        %1209 = vmatpush1.msra.mxu0 0.0
        %1210 = vmatprep.subr.mxu0 0.0
        %1211 = vmatpush1.msra.mxu0 0.0
        %1212 = vmatprep.subr.mxu0 0.0
        %1213 = vmatpush1.msra.mxu0 0.0
        %1214 = vmatprep.subr.mxu0 0.0
        %1215 = vmatpush1.msra.mxu0 0.0
        %1216 = vmatprep.subr.mxu0 0.0
        %1217 = vmatpush1.msra.mxu0 0.0
        %1218 = vmatprep.subr.mxu0 0.0
        %1219 = vmatpush1.msra.mxu0 0.0
        %1220 = vmatprep.subr.mxu0 0.0
        %1221 = vmatpush1.msra.mxu0 0.0
        %1222 = vmatprep.subr.mxu0 0.0
        %1223 = vmatpush1.msra.mxu0 0.0
        %1224 = vmatprep.subr.mxu0 0.0
        %1225 = vmatpush1.msra.mxu0 0.0
        %1226 = vmatprep.subr.mxu0 0.0
        %1227 = vmatpush1.msra.mxu0 0.0
        %1228 = vmatprep.subr.mxu0 0.0
        %1229 = vmatpush1.msra.mxu0 0.0
        %1230 = vmatprep.subr.mxu0 0.0
        %1231 = vmatpush1.msra.mxu0 0.0
        %1232 = vmatprep.subr.mxu0 0.0
        %1233 = vmatpush1.msra.mxu0 0.0
        %1234 = vmatprep.subr.mxu0 0.0
        %1235 = vmatpush1.msra.mxu0 0.0
        %1236 = vmatprep.subr.mxu0 0.0
        %1237 = vmatpush1.msra.mxu0 %v950
        %1238 = vmatprep.subr.mxu0 0.0
        %1239 = vmatpush2.msra.mxu0 0.0
        %1240 = vmatprep.subr.mxu0 0.0
        %1241 = vmatpush2.msra.mxu0 0.0
        %1242 = vmatprep.subr.mxu0 0.0
        %1243 = vmatpush2.msra.mxu0 0.0
        %1244 = vmatprep.subr.mxu0 0.0
        %1245 = vmatpush2.msra.mxu0 0.0
        %1246 = vmatprep.subr.mxu0 0.0
        %1247 = vmatpush2.msra.mxu0 0.0
        %1248 = vmatprep.subr.mxu0 0.0
        %1249 = vmatpush2.msra.mxu0 0.0
        %1250 = vmatprep.subr.mxu0 0.0
        %1251 = vmatpush2.msra.mxu0 0.0
        %1252 = vmatprep.subr.mxu0 0.0
        %1253 = vmatpush2.msra.mxu0 0.0
        %1254 = vmatprep.subr.mxu0 0.0
        %1255 = vmatpush2.msra.mxu0 0.0
        %1256 = vmatprep.subr.mxu0 0.0
        %1257 = vmatpush2.msra.mxu0 0.0
        %1258 = vmatprep.subr.mxu0 0.0
        %1259 = vmatpush2.msra.mxu0 0.0
        %1260 = vmatprep.subr.mxu0 0.0
        %1261 = vmatpush2.msra.mxu0 0.0
        %1262 = vmatprep.subr.mxu0 0.0
        %1263 = vmatpush2.msra.mxu0 0.0
        %1264 = vmatprep.subr.mxu0 0.0
        %1265 = vmatpush2.msra.mxu0 0.0
        %1266 = vmatprep.subr.mxu0 0.0
        %1267 = vmatpush2.msra.mxu0 0.0
        %1268 = vmatprep.subr.mxu0 0.0
        %1269 = vmatpush2.msra.mxu0 0.0
        %1270 = vmatprep.mubr.f32.mxu0 0.0
        %1271 = vmatmul.mubr.f32.gmra.mxu0 %v1204
        %v1272 = vpop.f32.mrf.mxu0
        %v1273 = vadd.f32 0.0, %v1272
        %v1274 = vpop.f32.mrf.mxu0
        %1275 = vdwg.mxu0
        %1276 = vrot.lane.b32.xlu0 %v795, 120
        %v1277 = vpop.permute.xlu0 %1276
        %1278 = vrot.lane.b32.xlu0 %v870, 120
        %v1279 = vpop.permute.xlu0 %1278
        %v1280 = vsel %vm953, %v1277, 0
        %v1282 = vsel %vm953, %v1279, 0
        %1284 = vmatprep.subr.mxu0 0.0
        %1285 = vmatpush1.xpose.msra.mxu0 0.0
        %1286 = vmatprep.subr.mxu0 0.0
        %1287 = vmatpush1.xpose.msra.mxu0 0.0
        %1288 = vmatprep.subr.mxu0 0.0
        %1289 = vmatpush1.xpose.msra.mxu0 0.0
        %1290 = vmatprep.subr.mxu0 0.0
        %1291 = vmatpush1.xpose.msra.mxu0 0.0
        %1292 = vmatprep.subr.mxu0 0.0
        %1293 = vmatpush1.xpose.msra.mxu0 0.0
        %1294 = vmatprep.subr.mxu0 0.0
        %1295 = vmatpush1.xpose.msra.mxu0 0.0
        %1296 = vmatprep.subr.mxu0 0.0
        %1297 = vmatpush1.xpose.msra.mxu0 0.0
        %1298 = vmatprep.subr.mxu0 0.0
        %1299 = vmatpush1.xpose.msra.mxu0 0.0
        %1300 = vmatprep.subr.mxu0 0.0
        %1301 = vmatpush1.xpose.msra.mxu0 0.0
        %1302 = vmatprep.subr.mxu0 0.0
        %1303 = vmatpush1.xpose.msra.mxu0 0.0
        %1304 = vmatprep.subr.mxu0 0.0
        %1305 = vmatpush1.xpose.msra.mxu0 0.0
        %1306 = vmatprep.subr.mxu0 0.0
        %1307 = vmatpush1.xpose.msra.mxu0 0.0
        %1308 = vmatprep.subr.mxu0 0.0
        %1309 = vmatpush1.xpose.msra.mxu0 0.0
        %1310 = vmatprep.subr.mxu0 0.0
        %1311 = vmatpush1.xpose.msra.mxu0 0.0
        %1312 = vmatprep.subr.mxu0 0.0
        %1313 = vmatpush1.xpose.msra.mxu0 0.0
        %1314 = vmatprep.subr.mxu0 0.0
        %1315 = vmatpush1.xpose.msra.mxu0 %v1282
        %1316 = vmatprep.subr.mxu0 0.0
        %1317 = vmatpush2.xpose.msra.mxu0 0.0
        %1318 = vmatprep.subr.mxu0 0.0
        %1319 = vmatpush2.xpose.msra.mxu0 0.0
        %1320 = vmatprep.subr.mxu0 0.0
        %1321 = vmatpush2.xpose.msra.mxu0 0.0
        %1322 = vmatprep.subr.mxu0 0.0
        %1323 = vmatpush2.xpose.msra.mxu0 0.0
        %1324 = vmatprep.subr.mxu0 0.0
        %1325 = vmatpush2.xpose.msra.mxu0 0.0
        %1326 = vmatprep.subr.mxu0 0.0
        %1327 = vmatpush2.xpose.msra.mxu0 0.0
        %1328 = vmatprep.subr.mxu0 0.0
        %1329 = vmatpush2.xpose.msra.mxu0 0.0
        %1330 = vmatprep.subr.mxu0 0.0
        %1331 = vmatpush2.xpose.msra.mxu0 0.0
        %1332 = vmatprep.subr.mxu0 0.0
        %1333 = vmatpush2.xpose.msra.mxu0 0.0
        %1334 = vmatprep.subr.mxu0 0.0
        %1335 = vmatpush2.xpose.msra.mxu0 0.0
        %1336 = vmatprep.subr.mxu0 0.0
        %1337 = vmatpush2.xpose.msra.mxu0 0.0
        %1338 = vmatprep.subr.mxu0 0.0
        %1339 = vmatpush2.xpose.msra.mxu0 0.0
        %1340 = vmatprep.subr.mxu0 0.0
        %1341 = vmatpush2.xpose.msra.mxu0 0.0
        %1342 = vmatprep.subr.mxu0 0.0
        %1343 = vmatpush2.xpose.msra.mxu0 0.0
        %1344 = vmatprep.subr.mxu0 0.0
        %1345 = vmatpush2.xpose.msra.mxu0 0.0
        %1346 = vmatprep.subr.mxu0 0.0
        %1347 = vmatpush2.xpose.msra.mxu0 0.0
        %1348 = vmatprep.mubr.f32.mxu0 0.0
        %1349 = vmatmul.mubr.f32.gmra.mxu0 %v1280
        %v1350 = vpop.f32.mrf.mxu0
        %v1351 = vadd.f32 0.0, %v1350
        %v1352 = vpop.f32.mrf.mxu0
        %1353 = vdwg.mxu0
        %1354 = vrot.lane.b32.xlu0 %v800, 120
        %v1355 = vpop.permute.xlu0 %1354
        %1356 = vrot.lane.b32.xlu0 %v875, 120
        %v1357 = vpop.permute.xlu0 %1356
        %v1358 = vsel %vm953, %v1355, 0
        %v1360 = vsel %vm953, %v1357, 0
        %1362 = vmatprep.subr.mxu0 0.0
        %1363 = vmatpush1.xpose.msra.mxu0 0.0
        %1364 = vmatprep.subr.mxu0 0.0
        %1365 = vmatpush1.xpose.msra.mxu0 0.0
        %1366 = vmatprep.subr.mxu0 0.0
        %1367 = vmatpush1.xpose.msra.mxu0 0.0
        %1368 = vmatprep.subr.mxu0 0.0
        %1369 = vmatpush1.xpose.msra.mxu0 0.0
        %1370 = vmatprep.subr.mxu0 0.0
        %1371 = vmatpush1.xpose.msra.mxu0 0.0
        %1372 = vmatprep.subr.mxu0 0.0
        %1373 = vmatpush1.xpose.msra.mxu0 0.0
        %1374 = vmatprep.subr.mxu0 0.0
        %1375 = vmatpush1.xpose.msra.mxu0 0.0
        %1376 = vmatprep.subr.mxu0 0.0
        %1377 = vmatpush1.xpose.msra.mxu0 0.0
        %1378 = vmatprep.subr.mxu0 0.0
        %1379 = vmatpush1.xpose.msra.mxu0 0.0
        %1380 = vmatprep.subr.mxu0 0.0
        %1381 = vmatpush1.xpose.msra.mxu0 0.0
        %1382 = vmatprep.subr.mxu0 0.0
        %1383 = vmatpush1.xpose.msra.mxu0 0.0
        %1384 = vmatprep.subr.mxu0 0.0
        %1385 = vmatpush1.xpose.msra.mxu0 0.0
        %1386 = vmatprep.subr.mxu0 0.0
        %1387 = vmatpush1.xpose.msra.mxu0 0.0
        %1388 = vmatprep.subr.mxu0 0.0
        %1389 = vmatpush1.xpose.msra.mxu0 0.0
        %1390 = vmatprep.subr.mxu0 0.0
        %1391 = vmatpush1.xpose.msra.mxu0 0.0
        %1392 = vmatprep.subr.mxu0 0.0
        %1393 = vmatpush1.xpose.msra.mxu0 %v1360
        %1394 = vmatprep.subr.mxu0 0.0
        %1395 = vmatpush2.xpose.msra.mxu0 0.0
        %1396 = vmatprep.subr.mxu0 0.0
        %1397 = vmatpush2.xpose.msra.mxu0 0.0
        %1398 = vmatprep.subr.mxu0 0.0
        %1399 = vmatpush2.xpose.msra.mxu0 0.0
        %1400 = vmatprep.subr.mxu0 0.0
        %1401 = vmatpush2.xpose.msra.mxu0 0.0
        %1402 = vmatprep.subr.mxu0 0.0
        %1403 = vmatpush2.xpose.msra.mxu0 0.0
        %1404 = vmatprep.subr.mxu0 0.0
        %1405 = vmatpush2.xpose.msra.mxu0 0.0
        %1406 = vmatprep.subr.mxu0 0.0
        %1407 = vmatpush2.xpose.msra.mxu0 0.0
        %1408 = vmatprep.subr.mxu0 0.0
        %1409 = vmatpush2.xpose.msra.mxu0 0.0
        %1410 = vmatprep.subr.mxu0 0.0
        %1411 = vmatpush2.xpose.msra.mxu0 0.0
        %1412 = vmatprep.subr.mxu0 0.0
        %1413 = vmatpush2.xpose.msra.mxu0 0.0
        %1414 = vmatprep.subr.mxu0 0.0
        %1415 = vmatpush2.xpose.msra.mxu0 0.0
        %1416 = vmatprep.subr.mxu0 0.0
        %1417 = vmatpush2.xpose.msra.mxu0 0.0
        %1418 = vmatprep.subr.mxu0 0.0
        %1419 = vmatpush2.xpose.msra.mxu0 0.0
        %1420 = vmatprep.subr.mxu0 0.0
        %1421 = vmatpush2.xpose.msra.mxu0 0.0
        %1422 = vmatprep.subr.mxu0 0.0
        %1423 = vmatpush2.xpose.msra.mxu0 0.0
        %1424 = vmatprep.subr.mxu0 0.0
        %1425 = vmatpush2.xpose.msra.mxu0 0.0
        %1426 = vmatprep.mubr.f32.mxu0 0.0
        %1427 = vmatmul.mubr.f32.gmra.mxu0 %v1358
        %v1428 = vpop.f32.mrf.mxu0
        %v1429 = vadd.f32 0.0, %v1428
        %v1430 = vpop.f32.mrf.mxu0
        %1431 = vdwg.mxu0
        %v1432 = vmul.f32 %v1351, 0.35355338
        %v1433 = vmul.f32 %v1429, 0.35355338
        %v1434 = vsel %vm953, %v1432, -inf
        %1435 = vmax.xlane.f32.xlu0 %v1434
        %v1436 = vpop.xlane.xlu0 %1435
        %v1437 = vsel %vm953, %v1433, -inf
        %1438 = vmax.xlane.f32.xlu0 %v1437
        %v1439 = vpop.xlane.xlu0 %1438
        %v1440 = vsub.f32 %v1432, %v1436
        %v1441 = vsub.f32 %v1433, %v1439
        %v1442 = vmul.f32 %v1440, 1.442695
        %v1443 = vpow.pop %v1442
        %v1444 = vmul.f32 %v1441, 1.442695
        %v1445 = vpow.pop %v1444
        %v1446 = vsel %vm953, %v1443, 0.0
        %1447 = vadd.xlane.f32.xlu0 %v1446
        %v1448 = vpop.xlane.xlu0 %1447
        %v1449 = vsel %vm953, %v1445, 0.0
        %1450 = vadd.xlane.f32.xlu0 %v1449
        %v1451 = vpop.xlane.xlu0 %1450
        %v1452 = vrcp.pop %v1448
        %v1453 = vrcp.pop %v1451
        %v1454 = vmul.f32 %v1443, %v1452
        %v1455 = vmul.f32 %v1445, %v1453
        %1457 = vrot.lane.b32.xlu0 %v945, 120
        %v1458 = vpop.permute.xlu0 %1457
        %v1461 = vsel %vm953, %v1454, 0
        %1463 = vmatprep.subr.mxu0 0.0
        %1464 = vmatpush1.msra.mxu0 0.0
        %1465 = vmatprep.subr.mxu0 0.0
        %1466 = vmatpush1.msra.mxu0 0.0
        %1467 = vmatprep.subr.mxu0 0.0
        %1468 = vmatpush1.msra.mxu0 0.0
        %1469 = vmatprep.subr.mxu0 0.0
        %1470 = vmatpush1.msra.mxu0 0.0
        %1471 = vmatprep.subr.mxu0 0.0
        %1472 = vmatpush1.msra.mxu0 0.0
        %1473 = vmatprep.subr.mxu0 0.0
        %1474 = vmatpush1.msra.mxu0 0.0
        %1475 = vmatprep.subr.mxu0 0.0
        %1476 = vmatpush1.msra.mxu0 0.0
        %1477 = vmatprep.subr.mxu0 0.0
        %1478 = vmatpush1.msra.mxu0 0.0
        %1479 = vmatprep.subr.mxu0 0.0
        %1480 = vmatpush1.msra.mxu0 0.0
        %1481 = vmatprep.subr.mxu0 0.0
        %1482 = vmatpush1.msra.mxu0 0.0
        %1483 = vmatprep.subr.mxu0 0.0
        %1484 = vmatpush1.msra.mxu0 0.0
        %1485 = vmatprep.subr.mxu0 0.0
        %1486 = vmatpush1.msra.mxu0 0.0
        %1487 = vmatprep.subr.mxu0 0.0
        %1488 = vmatpush1.msra.mxu0 0.0
        %1489 = vmatprep.subr.mxu0 0.0
        %1490 = vmatpush1.msra.mxu0 0.0
        %1491 = vmatprep.subr.mxu0 0.0
        %1492 = vmatpush1.msra.mxu0 0.0
        %1493 = vmatprep.subr.mxu0 0.0
        %1494 = vmatpush1.msra.mxu0 %v1458
        %1495 = vmatprep.subr.mxu0 0.0
        %1496 = vmatpush2.msra.mxu0 0.0
        %1497 = vmatprep.subr.mxu0 0.0
        %1498 = vmatpush2.msra.mxu0 0.0
        %1499 = vmatprep.subr.mxu0 0.0
        %1500 = vmatpush2.msra.mxu0 0.0
        %1501 = vmatprep.subr.mxu0 0.0
        %1502 = vmatpush2.msra.mxu0 0.0
        %1503 = vmatprep.subr.mxu0 0.0
        %1504 = vmatpush2.msra.mxu0 0.0
        %1505 = vmatprep.subr.mxu0 0.0
        %1506 = vmatpush2.msra.mxu0 0.0
        %1507 = vmatprep.subr.mxu0 0.0
        %1508 = vmatpush2.msra.mxu0 0.0
        %1509 = vmatprep.subr.mxu0 0.0
        %1510 = vmatpush2.msra.mxu0 0.0
        %1511 = vmatprep.subr.mxu0 0.0
        %1512 = vmatpush2.msra.mxu0 0.0
        %1513 = vmatprep.subr.mxu0 0.0
        %1514 = vmatpush2.msra.mxu0 0.0
        %1515 = vmatprep.subr.mxu0 0.0
        %1516 = vmatpush2.msra.mxu0 0.0
        %1517 = vmatprep.subr.mxu0 0.0
        %1518 = vmatpush2.msra.mxu0 0.0
        %1519 = vmatprep.subr.mxu0 0.0
        %1520 = vmatpush2.msra.mxu0 0.0
        %1521 = vmatprep.subr.mxu0 0.0
        %1522 = vmatpush2.msra.mxu0 0.0
        %1523 = vmatprep.subr.mxu0 0.0
        %1524 = vmatpush2.msra.mxu0 0.0
        %1525 = vmatprep.subr.mxu0 0.0
        %1526 = vmatpush2.msra.mxu0 0.0
        %1527 = vmatprep.mubr.f32.mxu0 0.0
        %1528 = vmatmul.mubr.f32.gmra.mxu0 %v1461
        %v1529 = vpop.f32.mrf.mxu0
        %v1530 = vadd.f32 0.0, %v1529
        %v1531 = vpop.f32.mrf.mxu0
        %1532 = vdwg.mxu0
        %1534 = vrot.lane.b32.xlu0 %v950, 120
        %v1535 = vpop.permute.xlu0 %1534
        %v1538 = vsel %vm953, %v1455, 0
        %1540 = vmatprep.subr.mxu0 0.0
        %1541 = vmatpush1.msra.mxu0 0.0
        %1542 = vmatprep.subr.mxu0 0.0
        %1543 = vmatpush1.msra.mxu0 0.0
        %1544 = vmatprep.subr.mxu0 0.0
        %1545 = vmatpush1.msra.mxu0 0.0
        %1546 = vmatprep.subr.mxu0 0.0
        %1547 = vmatpush1.msra.mxu0 0.0
        %1548 = vmatprep.subr.mxu0 0.0
        %1549 = vmatpush1.msra.mxu0 0.0
        %1550 = vmatprep.subr.mxu0 0.0
        %1551 = vmatpush1.msra.mxu0 0.0
        %1552 = vmatprep.subr.mxu0 0.0
        %1553 = vmatpush1.msra.mxu0 0.0
        %1554 = vmatprep.subr.mxu0 0.0
        %1555 = vmatpush1.msra.mxu0 0.0
        %1556 = vmatprep.subr.mxu0 0.0
        %1557 = vmatpush1.msra.mxu0 0.0
        %1558 = vmatprep.subr.mxu0 0.0
        %1559 = vmatpush1.msra.mxu0 0.0
        %1560 = vmatprep.subr.mxu0 0.0
        %1561 = vmatpush1.msra.mxu0 0.0
        %1562 = vmatprep.subr.mxu0 0.0
        %1563 = vmatpush1.msra.mxu0 0.0
        %1564 = vmatprep.subr.mxu0 0.0
        %1565 = vmatpush1.msra.mxu0 0.0
        %1566 = vmatprep.subr.mxu0 0.0
        %1567 = vmatpush1.msra.mxu0 0.0
        %1568 = vmatprep.subr.mxu0 0.0
        %1569 = vmatpush1.msra.mxu0 0.0
        %1570 = vmatprep.subr.mxu0 0.0
        %1571 = vmatpush1.msra.mxu0 %v1535
        %1572 = vmatprep.subr.mxu0 0.0
        %1573 = vmatpush2.msra.mxu0 0.0
        %1574 = vmatprep.subr.mxu0 0.0
        %1575 = vmatpush2.msra.mxu0 0.0
        %1576 = vmatprep.subr.mxu0 0.0
        %1577 = vmatpush2.msra.mxu0 0.0
        %1578 = vmatprep.subr.mxu0 0.0
        %1579 = vmatpush2.msra.mxu0 0.0
        %1580 = vmatprep.subr.mxu0 0.0
        %1581 = vmatpush2.msra.mxu0 0.0
        %1582 = vmatprep.subr.mxu0 0.0
        %1583 = vmatpush2.msra.mxu0 0.0
        %1584 = vmatprep.subr.mxu0 0.0
        %1585 = vmatpush2.msra.mxu0 0.0
        %1586 = vmatprep.subr.mxu0 0.0
        %1587 = vmatpush2.msra.mxu0 0.0
        %1588 = vmatprep.subr.mxu0 0.0
        %1589 = vmatpush2.msra.mxu0 0.0
        %1590 = vmatprep.subr.mxu0 0.0
        %1591 = vmatpush2.msra.mxu0 0.0
        %1592 = vmatprep.subr.mxu0 0.0
        %1593 = vmatpush2.msra.mxu0 0.0
        %1594 = vmatprep.subr.mxu0 0.0
        %1595 = vmatpush2.msra.mxu0 0.0
        %1596 = vmatprep.subr.mxu0 0.0
        %1597 = vmatpush2.msra.mxu0 0.0
        %1598 = vmatprep.subr.mxu0 0.0
        %1599 = vmatpush2.msra.mxu0 0.0
        %1600 = vmatprep.subr.mxu0 0.0
        %1601 = vmatpush2.msra.mxu0 0.0
        %1602 = vmatprep.subr.mxu0 0.0
        %1603 = vmatpush2.msra.mxu0 0.0
        %1604 = vmatprep.mubr.f32.mxu0 0.0
        %1605 = vmatmul.mubr.f32.gmra.mxu0 %v1538
        %v1606 = vpop.f32.mrf.mxu0
        %v1607 = vadd.f32 0.0, %v1606
        %v1608 = vpop.f32.mrf.mxu0
        %1609 = vdwg.mxu0
        %v1611 = vsel %vm953, %v1530, 0
        %v1614 = vsel %vm953, %v1607, 0
        %1616 = vmatprep.subr.mxu0 0.0
        %1617 = vmatpush1.msra.mxu0 0.0
        %1618 = vmatprep.subr.mxu0 0.0
        %1619 = vmatpush1.msra.mxu0 0.0
        %1620 = vmatprep.subr.mxu0 0.0
        %1621 = vmatpush1.msra.mxu0 0.0
        %1622 = vmatprep.subr.mxu0 0.0
        %1623 = vmatpush1.msra.mxu0 0.0
        %1624 = vmatprep.subr.mxu0 0.0
        %1625 = vmatpush1.msra.mxu0 0.0
        %1626 = vmatprep.subr.mxu0 0.0
        %1627 = vmatpush1.msra.mxu0 0.0
        %1628 = vmatprep.subr.mxu0 0.0
        %1629 = vmatpush1.msra.mxu0 0.0
        %1630 = vmatprep.subr.mxu0 0.0
        %1631 = vmatpush1.msra.mxu0 0.0
        %1632 = vmatprep.subr.mxu0 0.0
        %1633 = vmatpush1.msra.mxu0 0.0
        %1634 = vmatprep.subr.mxu0 0.0
        %1635 = vmatpush1.msra.mxu0 0.0
        %1636 = vmatprep.subr.mxu0 0.0
        %1637 = vmatpush1.msra.mxu0 0.0
        %1638 = vmatprep.subr.mxu0 0.0
        %1639 = vmatpush1.msra.mxu0 0.0
        %1640 = vmatprep.subr.mxu0 0.0
        %1641 = vmatpush1.msra.mxu0 0.0
        %1642 = vmatprep.subr.mxu0 0.0
        %1643 = vmatpush1.msra.mxu0 0.0
        %1644 = vmatprep.subr.mxu0 0.0
        %1645 = vmatpush1.msra.mxu0 0.0
        %1646 = vmatprep.subr.mxu0 0.0
        %1647 = vmatpush1.msra.mxu0 %v718
        %1648 = vmatprep.subr.mxu0 0.0
        %1649 = vmatpush2.msra.mxu0 0.0
        %1650 = vmatprep.subr.mxu0 0.0
        %1651 = vmatpush2.msra.mxu0 0.0
        %1652 = vmatprep.subr.mxu0 0.0
        %1653 = vmatpush2.msra.mxu0 0.0
        %1654 = vmatprep.subr.mxu0 0.0
        %1655 = vmatpush2.msra.mxu0 0.0
        %1656 = vmatprep.subr.mxu0 0.0
        %1657 = vmatpush2.msra.mxu0 0.0
        %1658 = vmatprep.subr.mxu0 0.0
        %1659 = vmatpush2.msra.mxu0 0.0
        %1660 = vmatprep.subr.mxu0 0.0
        %1661 = vmatpush2.msra.mxu0 0.0
        %1662 = vmatprep.subr.mxu0 0.0
        %1663 = vmatpush2.msra.mxu0 0.0
        %1664 = vmatprep.subr.mxu0 0.0
        %1665 = vmatpush2.msra.mxu0 0.0
        %1666 = vmatprep.subr.mxu0 0.0
        %1667 = vmatpush2.msra.mxu0 0.0
        %1668 = vmatprep.subr.mxu0 0.0
        %1669 = vmatpush2.msra.mxu0 0.0
        %1670 = vmatprep.subr.mxu0 0.0
        %1671 = vmatpush2.msra.mxu0 0.0
        %1672 = vmatprep.subr.mxu0 0.0
        %1673 = vmatpush2.msra.mxu0 0.0
        %1674 = vmatprep.subr.mxu0 0.0
        %1675 = vmatpush2.msra.mxu0 0.0
        %1676 = vmatprep.subr.mxu0 0.0
        %1677 = vmatpush2.msra.mxu0 0.0
        %1678 = vmatprep.subr.mxu0 0.0
        %1679 = vmatpush2.msra.mxu0 0.0
        %1680 = vmatprep.mubr.f32.mxu0 0.0
        %1681 = vmatmul.mubr.f32.gmra.mxu0 %v1611
        %v1682 = vpop.f32.mrf.mxu0
        %v1683 = vadd.f32 0.0, %v1682
        %v1684 = vpop.f32.mrf.mxu0
        %1685 = vmatprep.mubr.f32.mxu0 0.0
        %1686 = vmatmul.mubr.f32.gmra.mxu0 %v1614
        %v1687 = vpop.f32.mrf.mxu0
        %v1688 = vadd.f32 0.0, %v1687
        %v1689 = vpop.f32.mrf.mxu0
        %1690 = vdwg.mxu0
        %v1692 = vsel %vm953, %v1200, 0
        %v1695 = vsel %vm953, %v1273, 0
        %1697 = vmatprep.subr.mxu0 0.0
        %1698 = vmatpush1.msra.mxu0 0.0
        %1699 = vmatprep.subr.mxu0 0.0
        %1700 = vmatpush1.msra.mxu0 0.0
        %1701 = vmatprep.subr.mxu0 0.0
        %1702 = vmatpush1.msra.mxu0 0.0
        %1703 = vmatprep.subr.mxu0 0.0
        %1704 = vmatpush1.msra.mxu0 0.0
        %1705 = vmatprep.subr.mxu0 0.0
        %1706 = vmatpush1.msra.mxu0 0.0
        %1707 = vmatprep.subr.mxu0 0.0
        %1708 = vmatpush1.msra.mxu0 0.0
        %1709 = vmatprep.subr.mxu0 0.0
        %1710 = vmatpush1.msra.mxu0 0.0
        %1711 = vmatprep.subr.mxu0 0.0
        %1712 = vmatpush1.msra.mxu0 0.0
        %1713 = vmatprep.subr.mxu0 0.0
        %1714 = vmatpush1.msra.mxu0 0.0
        %1715 = vmatprep.subr.mxu0 0.0
        %1716 = vmatpush1.msra.mxu0 0.0
        %1717 = vmatprep.subr.mxu0 0.0
        %1718 = vmatpush1.msra.mxu0 0.0
        %1719 = vmatprep.subr.mxu0 0.0
        %1720 = vmatpush1.msra.mxu0 0.0
        %1721 = vmatprep.subr.mxu0 0.0
        %1722 = vmatpush1.msra.mxu0 0.0
        %1723 = vmatprep.subr.mxu0 0.0
        %1724 = vmatpush1.msra.mxu0 0.0
        %1725 = vmatprep.subr.mxu0 0.0
        %1726 = vmatpush1.msra.mxu0 0.0
        %1727 = vmatprep.subr.mxu0 0.0
        %1728 = vmatpush1.msra.mxu0 %v717
        %1729 = vmatprep.subr.mxu0 0.0
        %1730 = vmatpush2.msra.mxu0 0.0
        %1731 = vmatprep.subr.mxu0 0.0
        %1732 = vmatpush2.msra.mxu0 0.0
        %1733 = vmatprep.subr.mxu0 0.0
        %1734 = vmatpush2.msra.mxu0 0.0
        %1735 = vmatprep.subr.mxu0 0.0
        %1736 = vmatpush2.msra.mxu0 0.0
        %1737 = vmatprep.subr.mxu0 0.0
        %1738 = vmatpush2.msra.mxu0 0.0
        %1739 = vmatprep.subr.mxu0 0.0
        %1740 = vmatpush2.msra.mxu0 0.0
        %1741 = vmatprep.subr.mxu0 0.0
        %1742 = vmatpush2.msra.mxu0 0.0
        %1743 = vmatprep.subr.mxu0 0.0
        %1744 = vmatpush2.msra.mxu0 0.0
        %1745 = vmatprep.subr.mxu0 0.0
        %1746 = vmatpush2.msra.mxu0 0.0
        %1747 = vmatprep.subr.mxu0 0.0
        %1748 = vmatpush2.msra.mxu0 0.0
        %1749 = vmatprep.subr.mxu0 0.0
        %1750 = vmatpush2.msra.mxu0 0.0
        %1751 = vmatprep.subr.mxu0 0.0
        %1752 = vmatpush2.msra.mxu0 0.0
        %1753 = vmatprep.subr.mxu0 0.0
        %1754 = vmatpush2.msra.mxu0 0.0
        %1755 = vmatprep.subr.mxu0 0.0
        %1756 = vmatpush2.msra.mxu0 0.0
        %1757 = vmatprep.subr.mxu0 0.0
        %1758 = vmatpush2.msra.mxu0 0.0
        %1759 = vmatprep.subr.mxu0 0.0
        %1760 = vmatpush2.msra.mxu0 0.0
        %1761 = vmatprep.mubr.f32.mxu0 0.0
        %1762 = vmatmul.mubr.f32.gmra.mxu0 %v1692
        %v1763 = vpop.f32.mrf.mxu0
        %v1764 = vadd.f32 %v1683, %v1763
        %v1765 = vpop.f32.mrf.mxu0
        %1766 = vmatprep.mubr.f32.mxu0 0.0
        %1767 = vmatmul.mubr.f32.gmra.mxu0 %v1695
        %v1768 = vpop.f32.mrf.mxu0
        %v1769 = vadd.f32 %v1688, %v1768
        %v1770 = vpop.f32.mrf.mxu0
        %1771 = vdwg.mxu0
        %1772 = vrot.lane.b32.xlu0 %v795, 112
        %v1773 = vpop.permute.xlu0 %1772
        %1774 = vrot.lane.b32.xlu0 %v870, 112
        %v1775 = vpop.permute.xlu0 %1774
        %v1776 = vsel %vm953, %v1773, 0
        %v1778 = vsel %vm953, %v1775, 0
        %1780 = vmatprep.subr.mxu0 0.0
        %1781 = vmatpush1.xpose.msra.mxu0 0.0
        %1782 = vmatprep.subr.mxu0 0.0
        %1783 = vmatpush1.xpose.msra.mxu0 0.0
        %1784 = vmatprep.subr.mxu0 0.0
        %1785 = vmatpush1.xpose.msra.mxu0 0.0
        %1786 = vmatprep.subr.mxu0 0.0
        %1787 = vmatpush1.xpose.msra.mxu0 0.0
        %1788 = vmatprep.subr.mxu0 0.0
        %1789 = vmatpush1.xpose.msra.mxu0 0.0
        %1790 = vmatprep.subr.mxu0 0.0
        %1791 = vmatpush1.xpose.msra.mxu0 0.0
        %1792 = vmatprep.subr.mxu0 0.0
        %1793 = vmatpush1.xpose.msra.mxu0 0.0
        %1794 = vmatprep.subr.mxu0 0.0
        %1795 = vmatpush1.xpose.msra.mxu0 0.0
        %1796 = vmatprep.subr.mxu0 0.0
        %1797 = vmatpush1.xpose.msra.mxu0 0.0
        %1798 = vmatprep.subr.mxu0 0.0
        %1799 = vmatpush1.xpose.msra.mxu0 0.0
        %1800 = vmatprep.subr.mxu0 0.0
        %1801 = vmatpush1.xpose.msra.mxu0 0.0
        %1802 = vmatprep.subr.mxu0 0.0
        %1803 = vmatpush1.xpose.msra.mxu0 0.0
        %1804 = vmatprep.subr.mxu0 0.0
        %1805 = vmatpush1.xpose.msra.mxu0 0.0
        %1806 = vmatprep.subr.mxu0 0.0
        %1807 = vmatpush1.xpose.msra.mxu0 0.0
        %1808 = vmatprep.subr.mxu0 0.0
        %1809 = vmatpush1.xpose.msra.mxu0 0.0
        %1810 = vmatprep.subr.mxu0 0.0
        %1811 = vmatpush1.xpose.msra.mxu0 %v1778
        %1812 = vmatprep.subr.mxu0 0.0
        %1813 = vmatpush2.xpose.msra.mxu0 0.0
        %1814 = vmatprep.subr.mxu0 0.0
        %1815 = vmatpush2.xpose.msra.mxu0 0.0
        %1816 = vmatprep.subr.mxu0 0.0
        %1817 = vmatpush2.xpose.msra.mxu0 0.0
        %1818 = vmatprep.subr.mxu0 0.0
        %1819 = vmatpush2.xpose.msra.mxu0 0.0
        %1820 = vmatprep.subr.mxu0 0.0
        %1821 = vmatpush2.xpose.msra.mxu0 0.0
        %1822 = vmatprep.subr.mxu0 0.0
        %1823 = vmatpush2.xpose.msra.mxu0 0.0
        %1824 = vmatprep.subr.mxu0 0.0
        %1825 = vmatpush2.xpose.msra.mxu0 0.0
        %1826 = vmatprep.subr.mxu0 0.0
        %1827 = vmatpush2.xpose.msra.mxu0 0.0
        %1828 = vmatprep.subr.mxu0 0.0
        %1829 = vmatpush2.xpose.msra.mxu0 0.0
        %1830 = vmatprep.subr.mxu0 0.0
        %1831 = vmatpush2.xpose.msra.mxu0 0.0
        %1832 = vmatprep.subr.mxu0 0.0
        %1833 = vmatpush2.xpose.msra.mxu0 0.0
        %1834 = vmatprep.subr.mxu0 0.0
        %1835 = vmatpush2.xpose.msra.mxu0 0.0
        %1836 = vmatprep.subr.mxu0 0.0
        %1837 = vmatpush2.xpose.msra.mxu0 0.0
        %1838 = vmatprep.subr.mxu0 0.0
        %1839 = vmatpush2.xpose.msra.mxu0 0.0
        %1840 = vmatprep.subr.mxu0 0.0
        %1841 = vmatpush2.xpose.msra.mxu0 0.0
        %1842 = vmatprep.subr.mxu0 0.0
        %1843 = vmatpush2.xpose.msra.mxu0 0.0
        %1844 = vmatprep.mubr.f32.mxu0 0.0
        %1845 = vmatmul.mubr.f32.gmra.mxu0 %v1776
        %v1846 = vpop.f32.mrf.mxu0
        %v1847 = vadd.f32 0.0, %v1846
        %v1848 = vpop.f32.mrf.mxu0
        %1849 = vdwg.mxu0
        %1850 = vrot.lane.b32.xlu0 %v800, 112
        %v1851 = vpop.permute.xlu0 %1850
        %1852 = vrot.lane.b32.xlu0 %v875, 112
        %v1853 = vpop.permute.xlu0 %1852
        %v1854 = vsel %vm953, %v1851, 0
        %v1856 = vsel %vm953, %v1853, 0
        %1858 = vmatprep.subr.mxu0 0.0
        %1859 = vmatpush1.xpose.msra.mxu0 0.0
        %1860 = vmatprep.subr.mxu0 0.0
        %1861 = vmatpush1.xpose.msra.mxu0 0.0
        %1862 = vmatprep.subr.mxu0 0.0
        %1863 = vmatpush1.xpose.msra.mxu0 0.0
        %1864 = vmatprep.subr.mxu0 0.0
        %1865 = vmatpush1.xpose.msra.mxu0 0.0
        %1866 = vmatprep.subr.mxu0 0.0
        %1867 = vmatpush1.xpose.msra.mxu0 0.0
        %1868 = vmatprep.subr.mxu0 0.0
        %1869 = vmatpush1.xpose.msra.mxu0 0.0
        %1870 = vmatprep.subr.mxu0 0.0
        %1871 = vmatpush1.xpose.msra.mxu0 0.0
        %1872 = vmatprep.subr.mxu0 0.0
        %1873 = vmatpush1.xpose.msra.mxu0 0.0
        %1874 = vmatprep.subr.mxu0 0.0
        %1875 = vmatpush1.xpose.msra.mxu0 0.0
        %1876 = vmatprep.subr.mxu0 0.0
        %1877 = vmatpush1.xpose.msra.mxu0 0.0
        %1878 = vmatprep.subr.mxu0 0.0
        %1879 = vmatpush1.xpose.msra.mxu0 0.0
        %1880 = vmatprep.subr.mxu0 0.0
        %1881 = vmatpush1.xpose.msra.mxu0 0.0
        %1882 = vmatprep.subr.mxu0 0.0
        %1883 = vmatpush1.xpose.msra.mxu0 0.0
        %1884 = vmatprep.subr.mxu0 0.0
        %1885 = vmatpush1.xpose.msra.mxu0 0.0
        %1886 = vmatprep.subr.mxu0 0.0
        %1887 = vmatpush1.xpose.msra.mxu0 0.0
        %1888 = vmatprep.subr.mxu0 0.0
        %1889 = vmatpush1.xpose.msra.mxu0 %v1856
        %1890 = vmatprep.subr.mxu0 0.0
        %1891 = vmatpush2.xpose.msra.mxu0 0.0
        %1892 = vmatprep.subr.mxu0 0.0
        %1893 = vmatpush2.xpose.msra.mxu0 0.0
        %1894 = vmatprep.subr.mxu0 0.0
        %1895 = vmatpush2.xpose.msra.mxu0 0.0
        %1896 = vmatprep.subr.mxu0 0.0
        %1897 = vmatpush2.xpose.msra.mxu0 0.0
        %1898 = vmatprep.subr.mxu0 0.0
        %1899 = vmatpush2.xpose.msra.mxu0 0.0
        %1900 = vmatprep.subr.mxu0 0.0
        %1901 = vmatpush2.xpose.msra.mxu0 0.0
        %1902 = vmatprep.subr.mxu0 0.0
        %1903 = vmatpush2.xpose.msra.mxu0 0.0
        %1904 = vmatprep.subr.mxu0 0.0
        %1905 = vmatpush2.xpose.msra.mxu0 0.0
        %1906 = vmatprep.subr.mxu0 0.0
        %1907 = vmatpush2.xpose.msra.mxu0 0.0
        %1908 = vmatprep.subr.mxu0 0.0
        %1909 = vmatpush2.xpose.msra.mxu0 0.0
        %1910 = vmatprep.subr.mxu0 0.0
        %1911 = vmatpush2.xpose.msra.mxu0 0.0
        %1912 = vmatprep.subr.mxu0 0.0
        %1913 = vmatpush2.xpose.msra.mxu0 0.0
        %1914 = vmatprep.subr.mxu0 0.0
        %1915 = vmatpush2.xpose.msra.mxu0 0.0
        %1916 = vmatprep.subr.mxu0 0.0
        %1917 = vmatpush2.xpose.msra.mxu0 0.0
        %1918 = vmatprep.subr.mxu0 0.0
        %1919 = vmatpush2.xpose.msra.mxu0 0.0
        %1920 = vmatprep.subr.mxu0 0.0
        %1921 = vmatpush2.xpose.msra.mxu0 0.0
        %1922 = vmatprep.mubr.f32.mxu0 0.0
        %1923 = vmatmul.mubr.f32.gmra.mxu0 %v1854
        %v1924 = vpop.f32.mrf.mxu0
        %v1925 = vadd.f32 0.0, %v1924
        %v1926 = vpop.f32.mrf.mxu0
        %1927 = vdwg.mxu0
        %v1928 = vmul.f32 %v1847, 0.35355338
        %v1929 = vmul.f32 %v1925, 0.35355338
        %v1930 = vsel %vm953, %v1928, -inf
        %1931 = vmax.xlane.f32.xlu0 %v1930
        %v1932 = vpop.xlane.xlu0 %1931
        %v1933 = vsel %vm953, %v1929, -inf
        %1934 = vmax.xlane.f32.xlu0 %v1933
        %v1935 = vpop.xlane.xlu0 %1934
        %v1936 = vsub.f32 %v1928, %v1932
        %v1937 = vsub.f32 %v1929, %v1935
        %v1938 = vmul.f32 %v1936, 1.442695
        %v1939 = vpow.pop %v1938
        %v1940 = vmul.f32 %v1937, 1.442695
        %v1941 = vpow.pop %v1940
        %v1942 = vsel %vm953, %v1939, 0.0
        %1943 = vadd.xlane.f32.xlu0 %v1942
        %v1944 = vpop.xlane.xlu0 %1943
        %v1945 = vsel %vm953, %v1941, 0.0
        %1946 = vadd.xlane.f32.xlu0 %v1945
        %v1947 = vpop.xlane.xlu0 %1946
        %v1948 = vrcp.pop %v1944
        %v1949 = vrcp.pop %v1947
        %v1950 = vmul.f32 %v1939, %v1948
        %v1951 = vmul.f32 %v1941, %v1949
        %1952 = vrot.lane.b32.xlu0 %v945, 112
        %v1953 = vpop.permute.xlu0 %1952
        %v1956 = vsel %vm953, %v1950, 0
        %1958 = vmatprep.subr.mxu0 0.0
        %1959 = vmatpush1.msra.mxu0 0.0
        %1960 = vmatprep.subr.mxu0 0.0
        %1961 = vmatpush1.msra.mxu0 0.0
        %1962 = vmatprep.subr.mxu0 0.0
        %1963 = vmatpush1.msra.mxu0 0.0
        %1964 = vmatprep.subr.mxu0 0.0
        %1965 = vmatpush1.msra.mxu0 0.0
        %1966 = vmatprep.subr.mxu0 0.0
        %1967 = vmatpush1.msra.mxu0 0.0
        %1968 = vmatprep.subr.mxu0 0.0
        %1969 = vmatpush1.msra.mxu0 0.0
        %1970 = vmatprep.subr.mxu0 0.0
        %1971 = vmatpush1.msra.mxu0 0.0
        %1972 = vmatprep.subr.mxu0 0.0
        %1973 = vmatpush1.msra.mxu0 0.0
        %1974 = vmatprep.subr.mxu0 0.0
        %1975 = vmatpush1.msra.mxu0 0.0
        %1976 = vmatprep.subr.mxu0 0.0
        %1977 = vmatpush1.msra.mxu0 0.0
        %1978 = vmatprep.subr.mxu0 0.0
        %1979 = vmatpush1.msra.mxu0 0.0
        %1980 = vmatprep.subr.mxu0 0.0
        %1981 = vmatpush1.msra.mxu0 0.0
        %1982 = vmatprep.subr.mxu0 0.0
        %1983 = vmatpush1.msra.mxu0 0.0
        %1984 = vmatprep.subr.mxu0 0.0
        %1985 = vmatpush1.msra.mxu0 0.0
        %1986 = vmatprep.subr.mxu0 0.0
        %1987 = vmatpush1.msra.mxu0 0.0
        %1988 = vmatprep.subr.mxu0 0.0
        %1989 = vmatpush1.msra.mxu0 %v1953
        %1990 = vmatprep.subr.mxu0 0.0
        %1991 = vmatpush2.msra.mxu0 0.0
        %1992 = vmatprep.subr.mxu0 0.0
        %1993 = vmatpush2.msra.mxu0 0.0
        %1994 = vmatprep.subr.mxu0 0.0
        %1995 = vmatpush2.msra.mxu0 0.0
        %1996 = vmatprep.subr.mxu0 0.0
        %1997 = vmatpush2.msra.mxu0 0.0
        %1998 = vmatprep.subr.mxu0 0.0
        %1999 = vmatpush2.msra.mxu0 0.0
        %2000 = vmatprep.subr.mxu0 0.0
        %2001 = vmatpush2.msra.mxu0 0.0
        %2002 = vmatprep.subr.mxu0 0.0
        %2003 = vmatpush2.msra.mxu0 0.0
        %2004 = vmatprep.subr.mxu0 0.0
        %2005 = vmatpush2.msra.mxu0 0.0
        %2006 = vmatprep.subr.mxu0 0.0
        %2007 = vmatpush2.msra.mxu0 0.0
        %2008 = vmatprep.subr.mxu0 0.0
        %2009 = vmatpush2.msra.mxu0 0.0
        %2010 = vmatprep.subr.mxu0 0.0
        %2011 = vmatpush2.msra.mxu0 0.0
        %2012 = vmatprep.subr.mxu0 0.0
        %2013 = vmatpush2.msra.mxu0 0.0
        %2014 = vmatprep.subr.mxu0 0.0
        %2015 = vmatpush2.msra.mxu0 0.0
        %2016 = vmatprep.subr.mxu0 0.0
        %2017 = vmatpush2.msra.mxu0 0.0
        %2018 = vmatprep.subr.mxu0 0.0
        %2019 = vmatpush2.msra.mxu0 0.0
        %2020 = vmatprep.subr.mxu0 0.0
        %2021 = vmatpush2.msra.mxu0 0.0
        %2022 = vmatprep.mubr.f32.mxu0 0.0
        %2023 = vmatmul.mubr.f32.gmra.mxu0 %v1956
        %v2024 = vpop.f32.mrf.mxu0
        %v2025 = vadd.f32 0.0, %v2024
        %v2026 = vpop.f32.mrf.mxu0
        %2027 = vdwg.mxu0
        %2028 = vrot.lane.b32.xlu0 %v950, 112
        %v2029 = vpop.permute.xlu0 %2028
        %v2032 = vsel %vm953, %v1951, 0
        %2034 = vmatprep.subr.mxu0 0.0
        %2035 = vmatpush1.msra.mxu0 0.0
        %2036 = vmatprep.subr.mxu0 0.0
        %2037 = vmatpush1.msra.mxu0 0.0
        %2038 = vmatprep.subr.mxu0 0.0
        %2039 = vmatpush1.msra.mxu0 0.0
        %2040 = vmatprep.subr.mxu0 0.0
        %2041 = vmatpush1.msra.mxu0 0.0
        %2042 = vmatprep.subr.mxu0 0.0
        %2043 = vmatpush1.msra.mxu0 0.0
        %2044 = vmatprep.subr.mxu0 0.0
        %2045 = vmatpush1.msra.mxu0 0.0
        %2046 = vmatprep.subr.mxu0 0.0
        %2047 = vmatpush1.msra.mxu0 0.0
        %2048 = vmatprep.subr.mxu0 0.0
        %2049 = vmatpush1.msra.mxu0 0.0
        %2050 = vmatprep.subr.mxu0 0.0
        %2051 = vmatpush1.msra.mxu0 0.0
        %2052 = vmatprep.subr.mxu0 0.0
        %2053 = vmatpush1.msra.mxu0 0.0
        %2054 = vmatprep.subr.mxu0 0.0
        %2055 = vmatpush1.msra.mxu0 0.0
        %2056 = vmatprep.subr.mxu0 0.0
        %2057 = vmatpush1.msra.mxu0 0.0
        %2058 = vmatprep.subr.mxu0 0.0
        %2059 = vmatpush1.msra.mxu0 0.0
        %2060 = vmatprep.subr.mxu0 0.0
        %2061 = vmatpush1.msra.mxu0 0.0
        %2062 = vmatprep.subr.mxu0 0.0
        %2063 = vmatpush1.msra.mxu0 0.0
        %2064 = vmatprep.subr.mxu0 0.0
        %2065 = vmatpush1.msra.mxu0 %v2029
        %2066 = vmatprep.subr.mxu0 0.0
        %2067 = vmatpush2.msra.mxu0 0.0
        %2068 = vmatprep.subr.mxu0 0.0
        %2069 = vmatpush2.msra.mxu0 0.0
        %2070 = vmatprep.subr.mxu0 0.0
        %2071 = vmatpush2.msra.mxu0 0.0
        %2072 = vmatprep.subr.mxu0 0.0
        %2073 = vmatpush2.msra.mxu0 0.0
        %2074 = vmatprep.subr.mxu0 0.0
        %2075 = vmatpush2.msra.mxu0 0.0
        %2076 = vmatprep.subr.mxu0 0.0
        %2077 = vmatpush2.msra.mxu0 0.0
        %2078 = vmatprep.subr.mxu0 0.0
        %2079 = vmatpush2.msra.mxu0 0.0
        %2080 = vmatprep.subr.mxu0 0.0
        %2081 = vmatpush2.msra.mxu0 0.0
        %2082 = vmatprep.subr.mxu0 0.0
        %2083 = vmatpush2.msra.mxu0 0.0
        %2084 = vmatprep.subr.mxu0 0.0
        %2085 = vmatpush2.msra.mxu0 0.0
        %2086 = vmatprep.subr.mxu0 0.0
        %2087 = vmatpush2.msra.mxu0 0.0
        %2088 = vmatprep.subr.mxu0 0.0
        %2089 = vmatpush2.msra.mxu0 0.0
        %2090 = vmatprep.subr.mxu0 0.0
        %2091 = vmatpush2.msra.mxu0 0.0
        %2092 = vmatprep.subr.mxu0 0.0
        %2093 = vmatpush2.msra.mxu0 0.0
        %2094 = vmatprep.subr.mxu0 0.0
        %2095 = vmatpush2.msra.mxu0 0.0
        %2096 = vmatprep.subr.mxu0 0.0
        %2097 = vmatpush2.msra.mxu0 0.0
        %2098 = vmatprep.mubr.f32.mxu0 0.0
        %2099 = vmatmul.mubr.f32.gmra.mxu0 %v2032
        %v2100 = vpop.f32.mrf.mxu0
        %v2101 = vadd.f32 0.0, %v2100
        %v2102 = vpop.f32.mrf.mxu0
        %2103 = vdwg.mxu0
        %v2105 = vsel %vm953, %v2025, 0
        %v2108 = vsel %vm953, %v2101, 0
        %2110 = vmatprep.subr.mxu0 0.0
        %2111 = vmatpush1.msra.mxu0 0.0
        %2112 = vmatprep.subr.mxu0 0.0
        %2113 = vmatpush1.msra.mxu0 0.0
        %2114 = vmatprep.subr.mxu0 0.0
        %2115 = vmatpush1.msra.mxu0 0.0
        %2116 = vmatprep.subr.mxu0 0.0
        %2117 = vmatpush1.msra.mxu0 0.0
        %2118 = vmatprep.subr.mxu0 0.0
        %2119 = vmatpush1.msra.mxu0 0.0
        %2120 = vmatprep.subr.mxu0 0.0
        %2121 = vmatpush1.msra.mxu0 0.0
        %2122 = vmatprep.subr.mxu0 0.0
        %2123 = vmatpush1.msra.mxu0 0.0
        %2124 = vmatprep.subr.mxu0 0.0
        %2125 = vmatpush1.msra.mxu0 0.0
        %2126 = vmatprep.subr.mxu0 0.0
        %2127 = vmatpush1.msra.mxu0 0.0
        %2128 = vmatprep.subr.mxu0 0.0
        %2129 = vmatpush1.msra.mxu0 0.0
        %2130 = vmatprep.subr.mxu0 0.0
        %2131 = vmatpush1.msra.mxu0 0.0
        %2132 = vmatprep.subr.mxu0 0.0
        %2133 = vmatpush1.msra.mxu0 0.0
        %2134 = vmatprep.subr.mxu0 0.0
        %2135 = vmatpush1.msra.mxu0 0.0
        %2136 = vmatprep.subr.mxu0 0.0
        %2137 = vmatpush1.msra.mxu0 0.0
        %2138 = vmatprep.subr.mxu0 0.0
        %2139 = vmatpush1.msra.mxu0 0.0
        %2140 = vmatprep.subr.mxu0 0.0
        %2141 = vmatpush1.msra.mxu0 %v719
        %2142 = vmatprep.subr.mxu0 0.0
        %2143 = vmatpush2.msra.mxu0 0.0
        %2144 = vmatprep.subr.mxu0 0.0
        %2145 = vmatpush2.msra.mxu0 0.0
        %2146 = vmatprep.subr.mxu0 0.0
        %2147 = vmatpush2.msra.mxu0 0.0
        %2148 = vmatprep.subr.mxu0 0.0
        %2149 = vmatpush2.msra.mxu0 0.0
        %2150 = vmatprep.subr.mxu0 0.0
        %2151 = vmatpush2.msra.mxu0 0.0
        %2152 = vmatprep.subr.mxu0 0.0
        %2153 = vmatpush2.msra.mxu0 0.0
        %2154 = vmatprep.subr.mxu0 0.0
        %2155 = vmatpush2.msra.mxu0 0.0
        %2156 = vmatprep.subr.mxu0 0.0
        %2157 = vmatpush2.msra.mxu0 0.0
        %2158 = vmatprep.subr.mxu0 0.0
        %2159 = vmatpush2.msra.mxu0 0.0
        %2160 = vmatprep.subr.mxu0 0.0
        %2161 = vmatpush2.msra.mxu0 0.0
        %2162 = vmatprep.subr.mxu0 0.0
        %2163 = vmatpush2.msra.mxu0 0.0
        %2164 = vmatprep.subr.mxu0 0.0
        %2165 = vmatpush2.msra.mxu0 0.0
        %2166 = vmatprep.subr.mxu0 0.0
        %2167 = vmatpush2.msra.mxu0 0.0
        %2168 = vmatprep.subr.mxu0 0.0
        %2169 = vmatpush2.msra.mxu0 0.0
        %2170 = vmatprep.subr.mxu0 0.0
        %2171 = vmatpush2.msra.mxu0 0.0
        %2172 = vmatprep.subr.mxu0 0.0
        %2173 = vmatpush2.msra.mxu0 0.0
        %2174 = vmatprep.mubr.f32.mxu0 0.0
        %2175 = vmatmul.mubr.f32.gmra.mxu0 %v2105
        %v2176 = vpop.f32.mrf.mxu0
        %v2177 = vadd.f32 0.0, %v2176
        %v2178 = vpop.f32.mrf.mxu0
        %2179 = vmatprep.mubr.f32.mxu0 0.0
        %2180 = vmatmul.mubr.f32.gmra.mxu0 %v2108
        %v2181 = vpop.f32.mrf.mxu0
        %v2182 = vadd.f32 0.0, %v2181
        %v2183 = vpop.f32.mrf.mxu0
        %2184 = vdwg.mxu0
        %v2185 = vadd.f32 %v1764, %v2177
        %v2186 = vadd.f32 %v1769, %v2182
        %2187 = vrot.lane.b32.xlu0 %v795, 104
        %v2188 = vpop.permute.xlu0 %2187
        %2189 = vrot.lane.b32.xlu0 %v870, 104
        %v2190 = vpop.permute.xlu0 %2189
        %v2191 = vsel %vm953, %v2188, 0
        %v2193 = vsel %vm953, %v2190, 0
        %2195 = vmatprep.subr.mxu0 0.0
        %2196 = vmatpush1.xpose.msra.mxu0 0.0
        %2197 = vmatprep.subr.mxu0 0.0
        %2198 = vmatpush1.xpose.msra.mxu0 0.0
        %2199 = vmatprep.subr.mxu0 0.0
        %2200 = vmatpush1.xpose.msra.mxu0 0.0
        %2201 = vmatprep.subr.mxu0 0.0
        %2202 = vmatpush1.xpose.msra.mxu0 0.0
        %2203 = vmatprep.subr.mxu0 0.0
        %2204 = vmatpush1.xpose.msra.mxu0 0.0
        %2205 = vmatprep.subr.mxu0 0.0
        %2206 = vmatpush1.xpose.msra.mxu0 0.0
        %2207 = vmatprep.subr.mxu0 0.0
        %2208 = vmatpush1.xpose.msra.mxu0 0.0
        %2209 = vmatprep.subr.mxu0 0.0
        %2210 = vmatpush1.xpose.msra.mxu0 0.0
        %2211 = vmatprep.subr.mxu0 0.0
        %2212 = vmatpush1.xpose.msra.mxu0 0.0
        %2213 = vmatprep.subr.mxu0 0.0
        %2214 = vmatpush1.xpose.msra.mxu0 0.0
        %2215 = vmatprep.subr.mxu0 0.0
        %2216 = vmatpush1.xpose.msra.mxu0 0.0
        %2217 = vmatprep.subr.mxu0 0.0
        %2218 = vmatpush1.xpose.msra.mxu0 0.0
        %2219 = vmatprep.subr.mxu0 0.0
        %2220 = vmatpush1.xpose.msra.mxu0 0.0
        %2221 = vmatprep.subr.mxu0 0.0
        %2222 = vmatpush1.xpose.msra.mxu0 0.0
        %2223 = vmatprep.subr.mxu0 0.0
        %2224 = vmatpush1.xpose.msra.mxu0 0.0
        %2225 = vmatprep.subr.mxu0 0.0
        %2226 = vmatpush1.xpose.msra.mxu0 %v2193
        %2227 = vmatprep.subr.mxu0 0.0
        %2228 = vmatpush2.xpose.msra.mxu0 0.0
        %2229 = vmatprep.subr.mxu0 0.0
        %2230 = vmatpush2.xpose.msra.mxu0 0.0
        %2231 = vmatprep.subr.mxu0 0.0
        %2232 = vmatpush2.xpose.msra.mxu0 0.0
        %2233 = vmatprep.subr.mxu0 0.0
        %2234 = vmatpush2.xpose.msra.mxu0 0.0
        %2235 = vmatprep.subr.mxu0 0.0
        %2236 = vmatpush2.xpose.msra.mxu0 0.0
        %2237 = vmatprep.subr.mxu0 0.0
        %2238 = vmatpush2.xpose.msra.mxu0 0.0
        %2239 = vmatprep.subr.mxu0 0.0
        %2240 = vmatpush2.xpose.msra.mxu0 0.0
        %2241 = vmatprep.subr.mxu0 0.0
        %2242 = vmatpush2.xpose.msra.mxu0 0.0
        %2243 = vmatprep.subr.mxu0 0.0
        %2244 = vmatpush2.xpose.msra.mxu0 0.0
        %2245 = vmatprep.subr.mxu0 0.0
        %2246 = vmatpush2.xpose.msra.mxu0 0.0
        %2247 = vmatprep.subr.mxu0 0.0
        %2248 = vmatpush2.xpose.msra.mxu0 0.0
        %2249 = vmatprep.subr.mxu0 0.0
        %2250 = vmatpush2.xpose.msra.mxu0 0.0
        %2251 = vmatprep.subr.mxu0 0.0
        %2252 = vmatpush2.xpose.msra.mxu0 0.0
        %2253 = vmatprep.subr.mxu0 0.0
        %2254 = vmatpush2.xpose.msra.mxu0 0.0
        %2255 = vmatprep.subr.mxu0 0.0
        %2256 = vmatpush2.xpose.msra.mxu0 0.0
        %2257 = vmatprep.subr.mxu0 0.0
        %2258 = vmatpush2.xpose.msra.mxu0 0.0
        %2259 = vmatprep.mubr.f32.mxu0 0.0
        %2260 = vmatmul.mubr.f32.gmra.mxu0 %v2191
        %v2261 = vpop.f32.mrf.mxu0
        %v2262 = vadd.f32 0.0, %v2261
        %v2263 = vpop.f32.mrf.mxu0
        %2264 = vdwg.mxu0
        %2265 = vrot.lane.b32.xlu0 %v800, 104
        %v2266 = vpop.permute.xlu0 %2265
        %2267 = vrot.lane.b32.xlu0 %v875, 104
        %v2268 = vpop.permute.xlu0 %2267
        %v2269 = vsel %vm953, %v2266, 0
        %v2271 = vsel %vm953, %v2268, 0
        %2273 = vmatprep.subr.mxu0 0.0
        %2274 = vmatpush1.xpose.msra.mxu0 0.0
        %2275 = vmatprep.subr.mxu0 0.0
        %2276 = vmatpush1.xpose.msra.mxu0 0.0
        %2277 = vmatprep.subr.mxu0 0.0
        %2278 = vmatpush1.xpose.msra.mxu0 0.0
        %2279 = vmatprep.subr.mxu0 0.0
        %2280 = vmatpush1.xpose.msra.mxu0 0.0
        %2281 = vmatprep.subr.mxu0 0.0
        %2282 = vmatpush1.xpose.msra.mxu0 0.0
        %2283 = vmatprep.subr.mxu0 0.0
        %2284 = vmatpush1.xpose.msra.mxu0 0.0
        %2285 = vmatprep.subr.mxu0 0.0
        %2286 = vmatpush1.xpose.msra.mxu0 0.0
        %2287 = vmatprep.subr.mxu0 0.0
        %2288 = vmatpush1.xpose.msra.mxu0 0.0
        %2289 = vmatprep.subr.mxu0 0.0
        %2290 = vmatpush1.xpose.msra.mxu0 0.0
        %2291 = vmatprep.subr.mxu0 0.0
        %2292 = vmatpush1.xpose.msra.mxu0 0.0
        %2293 = vmatprep.subr.mxu0 0.0
        %2294 = vmatpush1.xpose.msra.mxu0 0.0
        %2295 = vmatprep.subr.mxu0 0.0
        %2296 = vmatpush1.xpose.msra.mxu0 0.0
        %2297 = vmatprep.subr.mxu0 0.0
        %2298 = vmatpush1.xpose.msra.mxu0 0.0
        %2299 = vmatprep.subr.mxu0 0.0
        %2300 = vmatpush1.xpose.msra.mxu0 0.0
        %2301 = vmatprep.subr.mxu0 0.0
        %2302 = vmatpush1.xpose.msra.mxu0 0.0
        %2303 = vmatprep.subr.mxu0 0.0
        %2304 = vmatpush1.xpose.msra.mxu0 %v2271
        %2305 = vmatprep.subr.mxu0 0.0
        %2306 = vmatpush2.xpose.msra.mxu0 0.0
        %2307 = vmatprep.subr.mxu0 0.0
        %2308 = vmatpush2.xpose.msra.mxu0 0.0
        %2309 = vmatprep.subr.mxu0 0.0
        %2310 = vmatpush2.xpose.msra.mxu0 0.0
        %2311 = vmatprep.subr.mxu0 0.0
        %2312 = vmatpush2.xpose.msra.mxu0 0.0
        %2313 = vmatprep.subr.mxu0 0.0
        %2314 = vmatpush2.xpose.msra.mxu0 0.0
        %2315 = vmatprep.subr.mxu0 0.0
        %2316 = vmatpush2.xpose.msra.mxu0 0.0
        %2317 = vmatprep.subr.mxu0 0.0
        %2318 = vmatpush2.xpose.msra.mxu0 0.0
        %2319 = vmatprep.subr.mxu0 0.0
        %2320 = vmatpush2.xpose.msra.mxu0 0.0
        %2321 = vmatprep.subr.mxu0 0.0
        %2322 = vmatpush2.xpose.msra.mxu0 0.0
        %2323 = vmatprep.subr.mxu0 0.0
        %2324 = vmatpush2.xpose.msra.mxu0 0.0
        %2325 = vmatprep.subr.mxu0 0.0
        %2326 = vmatpush2.xpose.msra.mxu0 0.0
        %2327 = vmatprep.subr.mxu0 0.0
        %2328 = vmatpush2.xpose.msra.mxu0 0.0
        %2329 = vmatprep.subr.mxu0 0.0
        %2330 = vmatpush2.xpose.msra.mxu0 0.0
        %2331 = vmatprep.subr.mxu0 0.0
        %2332 = vmatpush2.xpose.msra.mxu0 0.0
        %2333 = vmatprep.subr.mxu0 0.0
        %2334 = vmatpush2.xpose.msra.mxu0 0.0
        %2335 = vmatprep.subr.mxu0 0.0
        %2336 = vmatpush2.xpose.msra.mxu0 0.0
        %2337 = vmatprep.mubr.f32.mxu0 0.0
        %2338 = vmatmul.mubr.f32.gmra.mxu0 %v2269
        %v2339 = vpop.f32.mrf.mxu0
        %v2340 = vadd.f32 0.0, %v2339
        %v2341 = vpop.f32.mrf.mxu0
        %2342 = vdwg.mxu0
        %v2343 = vmul.f32 %v2262, 0.35355338
        %v2344 = vmul.f32 %v2340, 0.35355338
        %v2345 = vsel %vm953, %v2343, -inf
        %2346 = vmax.xlane.f32.xlu0 %v2345
        %v2347 = vpop.xlane.xlu0 %2346
        %v2348 = vsel %vm953, %v2344, -inf
        %2349 = vmax.xlane.f32.xlu0 %v2348
        %v2350 = vpop.xlane.xlu0 %2349
        %v2351 = vsub.f32 %v2343, %v2347
        %v2352 = vsub.f32 %v2344, %v2350
        %v2353 = vmul.f32 %v2351, 1.442695
        %v2354 = vpow.pop %v2353
        %v2355 = vmul.f32 %v2352, 1.442695
        %v2356 = vpow.pop %v2355
        %v2357 = vsel %vm953, %v2354, 0.0
        %2358 = vadd.xlane.f32.xlu0 %v2357
        %v2359 = vpop.xlane.xlu0 %2358
        %v2360 = vsel %vm953, %v2356, 0.0
        %2361 = vadd.xlane.f32.xlu0 %v2360
        %v2362 = vpop.xlane.xlu0 %2361
        %v2363 = vrcp.pop %v2359
        %v2364 = vrcp.pop %v2362
        %v2365 = vmul.f32 %v2354, %v2363
        %v2366 = vmul.f32 %v2356, %v2364
        %2367 = vrot.lane.b32.xlu0 %v945, 104
        %v2368 = vpop.permute.xlu0 %2367
        %v2371 = vsel %vm953, %v2365, 0
        %2373 = vmatprep.subr.mxu0 0.0
        %2374 = vmatpush1.msra.mxu0 0.0
        %2375 = vmatprep.subr.mxu0 0.0
        %2376 = vmatpush1.msra.mxu0 0.0
        %2377 = vmatprep.subr.mxu0 0.0
        %2378 = vmatpush1.msra.mxu0 0.0
        %2379 = vmatprep.subr.mxu0 0.0
        %2380 = vmatpush1.msra.mxu0 0.0
        %2381 = vmatprep.subr.mxu0 0.0
        %2382 = vmatpush1.msra.mxu0 0.0
        %2383 = vmatprep.subr.mxu0 0.0
        %2384 = vmatpush1.msra.mxu0 0.0
        %2385 = vmatprep.subr.mxu0 0.0
        %2386 = vmatpush1.msra.mxu0 0.0
        %2387 = vmatprep.subr.mxu0 0.0
        %2388 = vmatpush1.msra.mxu0 0.0
        %2389 = vmatprep.subr.mxu0 0.0
        %2390 = vmatpush1.msra.mxu0 0.0
        %2391 = vmatprep.subr.mxu0 0.0
        %2392 = vmatpush1.msra.mxu0 0.0
        %2393 = vmatprep.subr.mxu0 0.0
        %2394 = vmatpush1.msra.mxu0 0.0
        %2395 = vmatprep.subr.mxu0 0.0
        %2396 = vmatpush1.msra.mxu0 0.0
        %2397 = vmatprep.subr.mxu0 0.0
        %2398 = vmatpush1.msra.mxu0 0.0
        %2399 = vmatprep.subr.mxu0 0.0
        %2400 = vmatpush1.msra.mxu0 0.0
        %2401 = vmatprep.subr.mxu0 0.0
        %2402 = vmatpush1.msra.mxu0 0.0
        %2403 = vmatprep.subr.mxu0 0.0
        %2404 = vmatpush1.msra.mxu0 %v2368
        %2405 = vmatprep.subr.mxu0 0.0
        %2406 = vmatpush2.msra.mxu0 0.0
        %2407 = vmatprep.subr.mxu0 0.0
        %2408 = vmatpush2.msra.mxu0 0.0
        %2409 = vmatprep.subr.mxu0 0.0
        %2410 = vmatpush2.msra.mxu0 0.0
        %2411 = vmatprep.subr.mxu0 0.0
        %2412 = vmatpush2.msra.mxu0 0.0
        %2413 = vmatprep.subr.mxu0 0.0
        %2414 = vmatpush2.msra.mxu0 0.0
        %2415 = vmatprep.subr.mxu0 0.0
        %2416 = vmatpush2.msra.mxu0 0.0
        %2417 = vmatprep.subr.mxu0 0.0
        %2418 = vmatpush2.msra.mxu0 0.0
        %2419 = vmatprep.subr.mxu0 0.0
        %2420 = vmatpush2.msra.mxu0 0.0
        %2421 = vmatprep.subr.mxu0 0.0
        %2422 = vmatpush2.msra.mxu0 0.0
        %2423 = vmatprep.subr.mxu0 0.0
        %2424 = vmatpush2.msra.mxu0 0.0
        %2425 = vmatprep.subr.mxu0 0.0
        %2426 = vmatpush2.msra.mxu0 0.0
        %2427 = vmatprep.subr.mxu0 0.0
        %2428 = vmatpush2.msra.mxu0 0.0
        %2429 = vmatprep.subr.mxu0 0.0
        %2430 = vmatpush2.msra.mxu0 0.0
        %2431 = vmatprep.subr.mxu0 0.0
        %2432 = vmatpush2.msra.mxu0 0.0
        %2433 = vmatprep.subr.mxu0 0.0
        %2434 = vmatpush2.msra.mxu0 0.0
        %2435 = vmatprep.subr.mxu0 0.0
        %2436 = vmatpush2.msra.mxu0 0.0
        %2437 = vmatprep.mubr.f32.mxu0 0.0
        %2438 = vmatmul.mubr.f32.gmra.mxu0 %v2371
        %v2439 = vpop.f32.mrf.mxu0
        %v2440 = vadd.f32 0.0, %v2439
        %v2441 = vpop.f32.mrf.mxu0
        %2442 = vdwg.mxu0
        %2443 = vrot.lane.b32.xlu0 %v950, 104
        %v2444 = vpop.permute.xlu0 %2443
        %v2447 = vsel %vm953, %v2366, 0
        %2449 = vmatprep.subr.mxu0 0.0
        %2450 = vmatpush1.msra.mxu0 0.0
        %2451 = vmatprep.subr.mxu0 0.0
        %2452 = vmatpush1.msra.mxu0 0.0
        %2453 = vmatprep.subr.mxu0 0.0
        %2454 = vmatpush1.msra.mxu0 0.0
        %2455 = vmatprep.subr.mxu0 0.0
        %2456 = vmatpush1.msra.mxu0 0.0
        %2457 = vmatprep.subr.mxu0 0.0
        %2458 = vmatpush1.msra.mxu0 0.0
        %2459 = vmatprep.subr.mxu0 0.0
        %2460 = vmatpush1.msra.mxu0 0.0
        %2461 = vmatprep.subr.mxu0 0.0
        %2462 = vmatpush1.msra.mxu0 0.0
        %2463 = vmatprep.subr.mxu0 0.0
        %2464 = vmatpush1.msra.mxu0 0.0
        %2465 = vmatprep.subr.mxu0 0.0
        %2466 = vmatpush1.msra.mxu0 0.0
        %2467 = vmatprep.subr.mxu0 0.0
        %2468 = vmatpush1.msra.mxu0 0.0
        %2469 = vmatprep.subr.mxu0 0.0
        %2470 = vmatpush1.msra.mxu0 0.0
        %2471 = vmatprep.subr.mxu0 0.0
        %2472 = vmatpush1.msra.mxu0 0.0
        %2473 = vmatprep.subr.mxu0 0.0
        %2474 = vmatpush1.msra.mxu0 0.0
        %2475 = vmatprep.subr.mxu0 0.0
        %2476 = vmatpush1.msra.mxu0 0.0
        %2477 = vmatprep.subr.mxu0 0.0
        %2478 = vmatpush1.msra.mxu0 0.0
        %2479 = vmatprep.subr.mxu0 0.0
        %2480 = vmatpush1.msra.mxu0 %v2444
        %2481 = vmatprep.subr.mxu0 0.0
        %2482 = vmatpush2.msra.mxu0 0.0
        %2483 = vmatprep.subr.mxu0 0.0
        %2484 = vmatpush2.msra.mxu0 0.0
        %2485 = vmatprep.subr.mxu0 0.0
        %2486 = vmatpush2.msra.mxu0 0.0
        %2487 = vmatprep.subr.mxu0 0.0
        %2488 = vmatpush2.msra.mxu0 0.0
        %2489 = vmatprep.subr.mxu0 0.0
        %2490 = vmatpush2.msra.mxu0 0.0
        %2491 = vmatprep.subr.mxu0 0.0
        %2492 = vmatpush2.msra.mxu0 0.0
        %2493 = vmatprep.subr.mxu0 0.0
        %2494 = vmatpush2.msra.mxu0 0.0
        %2495 = vmatprep.subr.mxu0 0.0
        %2496 = vmatpush2.msra.mxu0 0.0
        %2497 = vmatprep.subr.mxu0 0.0
        %2498 = vmatpush2.msra.mxu0 0.0
        %2499 = vmatprep.subr.mxu0 0.0
        %2500 = vmatpush2.msra.mxu0 0.0
        %2501 = vmatprep.subr.mxu0 0.0
        %2502 = vmatpush2.msra.mxu0 0.0
        %2503 = vmatprep.subr.mxu0 0.0
        %2504 = vmatpush2.msra.mxu0 0.0
        %2505 = vmatprep.subr.mxu0 0.0
        %2506 = vmatpush2.msra.mxu0 0.0
        %2507 = vmatprep.subr.mxu0 0.0
        %2508 = vmatpush2.msra.mxu0 0.0
        %2509 = vmatprep.subr.mxu0 0.0
        %2510 = vmatpush2.msra.mxu0 0.0
        %2511 = vmatprep.subr.mxu0 0.0
        %2512 = vmatpush2.msra.mxu0 0.0
        %2513 = vmatprep.mubr.f32.mxu0 0.0
        %2514 = vmatmul.mubr.f32.gmra.mxu0 %v2447
        %v2515 = vpop.f32.mrf.mxu0
        %v2516 = vadd.f32 0.0, %v2515
        %v2517 = vpop.f32.mrf.mxu0
        %2518 = vdwg.mxu0
        %v2520 = vsel %vm953, %v2440, 0
        %v2523 = vsel %vm953, %v2516, 0
        %2525 = vmatprep.subr.mxu0 0.0
        %2526 = vmatpush1.msra.mxu0 0.0
        %2527 = vmatprep.subr.mxu0 0.0
        %2528 = vmatpush1.msra.mxu0 0.0
        %2529 = vmatprep.subr.mxu0 0.0
        %2530 = vmatpush1.msra.mxu0 0.0
        %2531 = vmatprep.subr.mxu0 0.0
        %2532 = vmatpush1.msra.mxu0 0.0
        %2533 = vmatprep.subr.mxu0 0.0
        %2534 = vmatpush1.msra.mxu0 0.0
        %2535 = vmatprep.subr.mxu0 0.0
        %2536 = vmatpush1.msra.mxu0 0.0
        %2537 = vmatprep.subr.mxu0 0.0
        %2538 = vmatpush1.msra.mxu0 0.0
        %2539 = vmatprep.subr.mxu0 0.0
        %2540 = vmatpush1.msra.mxu0 0.0
        %2541 = vmatprep.subr.mxu0 0.0
        %2542 = vmatpush1.msra.mxu0 0.0
        %2543 = vmatprep.subr.mxu0 0.0
        %2544 = vmatpush1.msra.mxu0 0.0
        %2545 = vmatprep.subr.mxu0 0.0
        %2546 = vmatpush1.msra.mxu0 0.0
        %2547 = vmatprep.subr.mxu0 0.0
        %2548 = vmatpush1.msra.mxu0 0.0
        %2549 = vmatprep.subr.mxu0 0.0
        %2550 = vmatpush1.msra.mxu0 0.0
        %2551 = vmatprep.subr.mxu0 0.0
        %2552 = vmatpush1.msra.mxu0 0.0
        %2553 = vmatprep.subr.mxu0 0.0
        %2554 = vmatpush1.msra.mxu0 0.0
        %2555 = vmatprep.subr.mxu0 0.0
        %2556 = vmatpush1.msra.mxu0 %v720
        %2557 = vmatprep.subr.mxu0 0.0
        %2558 = vmatpush2.msra.mxu0 0.0
        %2559 = vmatprep.subr.mxu0 0.0
        %2560 = vmatpush2.msra.mxu0 0.0
        %2561 = vmatprep.subr.mxu0 0.0
        %2562 = vmatpush2.msra.mxu0 0.0
        %2563 = vmatprep.subr.mxu0 0.0
        %2564 = vmatpush2.msra.mxu0 0.0
        %2565 = vmatprep.subr.mxu0 0.0
        %2566 = vmatpush2.msra.mxu0 0.0
        %2567 = vmatprep.subr.mxu0 0.0
        %2568 = vmatpush2.msra.mxu0 0.0
        %2569 = vmatprep.subr.mxu0 0.0
        %2570 = vmatpush2.msra.mxu0 0.0
        %2571 = vmatprep.subr.mxu0 0.0
        %2572 = vmatpush2.msra.mxu0 0.0
        %2573 = vmatprep.subr.mxu0 0.0
        %2574 = vmatpush2.msra.mxu0 0.0
        %2575 = vmatprep.subr.mxu0 0.0
        %2576 = vmatpush2.msra.mxu0 0.0
        %2577 = vmatprep.subr.mxu0 0.0
        %2578 = vmatpush2.msra.mxu0 0.0
        %2579 = vmatprep.subr.mxu0 0.0
        %2580 = vmatpush2.msra.mxu0 0.0
        %2581 = vmatprep.subr.mxu0 0.0
        %2582 = vmatpush2.msra.mxu0 0.0
        %2583 = vmatprep.subr.mxu0 0.0
        %2584 = vmatpush2.msra.mxu0 0.0
        %2585 = vmatprep.subr.mxu0 0.0
        %2586 = vmatpush2.msra.mxu0 0.0
        %2587 = vmatprep.subr.mxu0 0.0
        %2588 = vmatpush2.msra.mxu0 0.0
        %2589 = vmatprep.mubr.f32.mxu0 0.0
        %2590 = vmatmul.mubr.f32.gmra.mxu0 %v2520
        %v2591 = vpop.f32.mrf.mxu0
        %v2592 = vadd.f32 0.0, %v2591
        %v2593 = vpop.f32.mrf.mxu0
        %2594 = vmatprep.mubr.f32.mxu0 0.0
        %2595 = vmatmul.mubr.f32.gmra.mxu0 %v2523
        %v2596 = vpop.f32.mrf.mxu0
        %v2597 = vadd.f32 0.0, %v2596
        %v2598 = vpop.f32.mrf.mxu0
        %2599 = vdwg.mxu0
        %v2600 = vadd.f32 %v2185, %v2592
        %v2601 = vadd.f32 %v2186, %v2597
        %v2602 = vld [vmem:[%s664] sm:$0x1]
        %v2604 = vlaneseq
        %v2605 = vshrl.u32 %v2604, 7
        %v2606 = vsub.s32 0, %v2605
        %v2607 = vrot.slane %v2602, %v2606
        %v2609 = vadd.f32 %v2600, %v2607
        %v2610 = vadd.f32 %v2601, %v2607
        %v2611 = vadd.f32 %v2609, %v703
        %v2612 = vadd.f32 %v2610, %v704
        %v2613 = vld [vmem:[%s667] sm:$0x1]
        %v2614 = vld [vmem:[%s670] sm:$0x1]
        %v2615 = vsel %vm721, %v2611, 0.0
        %2616 = vadd.xlane.f32.xlu0 %v2615
        %v2617 = vpop.xlane.xlu0 %2616
        %v2618 = vsel %vm721, %v2612, 0.0
        %2619 = vadd.xlane.f32.xlu0 %v2618
        %v2620 = vpop.xlane.xlu0 %2619
        %v2621 = vrcp.pop 32.0
        %v2622 = vmul.f32 %v2617, %v2621
        %v2623 = vmul.f32 %v2620, %v2621
        %v2624 = vsub.f32 %v2611, %v2622
        %v2625 = vsub.f32 %v2612, %v2623
        %v2626 = vmul.f32 %v2624, %v2624
        %v2627 = vmul.f32 %v2625, %v2625
        %v2628 = vsel %vm721, %v2626, 0.0
        %2629 = vadd.xlane.f32.xlu0 %v2628
        %v2630 = vpop.xlane.xlu0 %2629
        %v2631 = vsel %vm721, %v2627, 0.0
        %2632 = vadd.xlane.f32.xlu0 %v2631
        %v2633 = vpop.xlane.xlu0 %2632
        %v2634 = vmul.f32 %v2630, %v2621
        %v2635 = vmul.f32 %v2633, %v2621
        %v2636 = vadd.f32 %v2634, 1e-05
        %v2637 = vadd.f32 %v2635, 1e-05
        %v2638 = vrsqrt.pop %v2636
        %v2639 = vrsqrt.pop %v2637
        %v2640 = vmul.f32 %v2624, %v2638
        %v2641 = vmul.f32 %v2625, %v2639
        %v2643 = vlaneseq
        %v2644 = vshrl.u32 %v2643, 7
        %v2645 = vsub.s32 0, %v2644
        %v2646 = vrot.slane %v2613, %v2645
        %v2648 = vmul.f32 %v2640, %v2646
        %v2649 = vmul.f32 %v2641, %v2646
        %v2651 = vlaneseq
        %v2652 = vshrl.u32 %v2651, 7
        %v2653 = vsub.s32 0, %v2652
        %v2654 = vrot.slane %v2614, %v2653
        %v2656 = vadd.f32 %v2648, %v2654
        %v2657 = vadd.f32 %v2649, %v2654
        %v2658 = vld [vmem:[%s675] sm:$0xff]
        %v2659 = vld [vmem:[%s675 + $0x8] sm:$0xff]
        %v2660 = vld [vmem:[%s675 + $0x10] sm:$0xff]
        %v2661 = vld [vmem:[%s675 + $0x18] sm:$0xff]
        %v2662 = vld [vmem:[%s678] sm:$0x1]
        %v2664 = vlaneseq
        %v2665 = vshrl.u32 %v2664, 7
        %v2666 = vsub.s32 0, %v2665
        %v2667 = vrot.slane %v2662, %v2666
        %v2670 = vsel %vm721, %v2656, 0
        %v2673 = vsel %vm721, %v2657, 0
        %2675 = vmatprep.subr.mxu0 0.0
        %2676 = vmatpush1.msra.mxu0 0.0
        %2677 = vmatprep.subr.mxu0 0.0
        %2678 = vmatpush1.msra.mxu0 0.0
        %2679 = vmatprep.subr.mxu0 0.0
        %2680 = vmatpush1.msra.mxu0 0.0
        %2681 = vmatprep.subr.mxu0 0.0
        %2682 = vmatpush1.msra.mxu0 0.0
        %2683 = vmatprep.subr.mxu0 0.0
        %2684 = vmatpush1.msra.mxu0 0.0
        %2685 = vmatprep.subr.mxu0 0.0
        %2686 = vmatpush1.msra.mxu0 0.0
        %2687 = vmatprep.subr.mxu0 0.0
        %2688 = vmatpush1.msra.mxu0 0.0
        %2689 = vmatprep.subr.mxu0 0.0
        %2690 = vmatpush1.msra.mxu0 0.0
        %2691 = vmatprep.subr.mxu0 0.0
        %2692 = vmatpush1.msra.mxu0 0.0
        %2693 = vmatprep.subr.mxu0 0.0
        %2694 = vmatpush1.msra.mxu0 0.0
        %2695 = vmatprep.subr.mxu0 0.0
        %2696 = vmatpush1.msra.mxu0 0.0
        %2697 = vmatprep.subr.mxu0 0.0
        %2698 = vmatpush1.msra.mxu0 0.0
        %2699 = vmatprep.subr.mxu0 0.0
        %2700 = vmatpush1.msra.mxu0 %v2661
        %2701 = vmatprep.subr.mxu0 0.0
        %2702 = vmatpush1.msra.mxu0 %v2660
        %2703 = vmatprep.subr.mxu0 0.0
        %2704 = vmatpush1.msra.mxu0 %v2659
        %2705 = vmatprep.subr.mxu0 0.0
        %2706 = vmatpush1.msra.mxu0 %v2658
        %2707 = vmatprep.subr.mxu0 0.0
        %2708 = vmatpush2.msra.mxu0 0.0
        %2709 = vmatprep.subr.mxu0 0.0
        %2710 = vmatpush2.msra.mxu0 0.0
        %2711 = vmatprep.subr.mxu0 0.0
        %2712 = vmatpush2.msra.mxu0 0.0
        %2713 = vmatprep.subr.mxu0 0.0
        %2714 = vmatpush2.msra.mxu0 0.0
        %2715 = vmatprep.subr.mxu0 0.0
        %2716 = vmatpush2.msra.mxu0 0.0
        %2717 = vmatprep.subr.mxu0 0.0
        %2718 = vmatpush2.msra.mxu0 0.0
        %2719 = vmatprep.subr.mxu0 0.0
        %2720 = vmatpush2.msra.mxu0 0.0
        %2721 = vmatprep.subr.mxu0 0.0
        %2722 = vmatpush2.msra.mxu0 0.0
        %2723 = vmatprep.subr.mxu0 0.0
        %2724 = vmatpush2.msra.mxu0 0.0
        %2725 = vmatprep.subr.mxu0 0.0
        %2726 = vmatpush2.msra.mxu0 0.0
        %2727 = vmatprep.subr.mxu0 0.0
        %2728 = vmatpush2.msra.mxu0 0.0
        %2729 = vmatprep.subr.mxu0 0.0
        %2730 = vmatpush2.msra.mxu0 0.0
        %2731 = vmatprep.subr.mxu0 0.0
        %2732 = vmatpush2.msra.mxu0 0.0
        %2733 = vmatprep.subr.mxu0 0.0
        %2734 = vmatpush2.msra.mxu0 0.0
        %2735 = vmatprep.subr.mxu0 0.0
        %2736 = vmatpush2.msra.mxu0 0.0
        %2737 = vmatprep.subr.mxu0 0.0
        %2738 = vmatpush2.msra.mxu0 0.0
        %2739 = vmatprep.mubr.f32.mxu0 0.0
        %2740 = vmatmul.mubr.f32.gmra.mxu0 %v2670
        %v2741 = vpop.f32.mrf.mxu0
        %v2742 = vadd.f32 %v2667, %v2741
        %v2743 = vpop.f32.mrf.mxu0
        %2744 = vmatprep.mubr.f32.mxu0 0.0
        %2745 = vmatmul.mubr.f32.gmra.mxu0 %v2673
        %v2746 = vpop.f32.mrf.mxu0
        %v2747 = vadd.f32 %v2667, %v2746
        %v2748 = vpop.f32.mrf.mxu0
        %2749 = vdwg.mxu0
        %v2750 = vmax.f32 %v2742, 0.0
        %v2751 = vmax.f32 %v2747, 0.0
        %v2752 = vld [vmem:[%s683] sm:$0xff]
        %v2753 = vld [vmem:[%s683 + $0x8] sm:$0xff]
        %v2754 = vld [vmem:[%s683 + $0x10] sm:$0xff]
        %v2755 = vld [vmem:[%s683 + $0x18] sm:$0xff]
        %v2756 = vld [vmem:[%s683 + $0x20] sm:$0xff]
        %v2757 = vld [vmem:[%s683 + $0x28] sm:$0xff]
        %v2758 = vld [vmem:[%s683 + $0x30] sm:$0xff]
        %v2759 = vld [vmem:[%s683 + $0x38] sm:$0xff]
        %v2760 = vld [vmem:[%s683 + $0x40] sm:$0xff]
        %v2761 = vld [vmem:[%s683 + $0x48] sm:$0xff]
        %v2762 = vld [vmem:[%s683 + $0x50] sm:$0xff]
        %v2763 = vld [vmem:[%s683 + $0x58] sm:$0xff]
        %v2764 = vld [vmem:[%s683 + $0x60] sm:$0xff]
        %v2765 = vld [vmem:[%s683 + $0x68] sm:$0xff]
        %v2766 = vld [vmem:[%s683 + $0x70] sm:$0xff]
        %v2767 = vld [vmem:[%s683 + $0x78] sm:$0xff]
        %v2768 = vld [vmem:[%s686] sm:$0x1]
        %v2770 = vlaneseq
        %v2771 = vshrl.u32 %v2770, 7
        %v2772 = vsub.s32 0, %v2771
        %v2773 = vrot.slane %v2768, %v2772
        %2775 = vmatprep.subr.mxu0 0.0
        %2776 = vmatpush1.msra.mxu0 %v2767
        %2777 = vmatprep.subr.mxu0 0.0
        %2778 = vmatpush1.msra.mxu0 %v2766
        %2779 = vmatprep.subr.mxu0 0.0
        %2780 = vmatpush1.msra.mxu0 %v2765
        %2781 = vmatprep.subr.mxu0 0.0
        %2782 = vmatpush1.msra.mxu0 %v2764
        %2783 = vmatprep.subr.mxu0 0.0
        %2784 = vmatpush1.msra.mxu0 %v2763
        %2785 = vmatprep.subr.mxu0 0.0
        %2786 = vmatpush1.msra.mxu0 %v2762
        %2787 = vmatprep.subr.mxu0 0.0
        %2788 = vmatpush1.msra.mxu0 %v2761
        %2789 = vmatprep.subr.mxu0 0.0
        %2790 = vmatpush1.msra.mxu0 %v2760
        %2791 = vmatprep.subr.mxu0 0.0
        %2792 = vmatpush1.msra.mxu0 %v2759
        %2793 = vmatprep.subr.mxu0 0.0
        %2794 = vmatpush1.msra.mxu0 %v2758
        %2795 = vmatprep.subr.mxu0 0.0
        %2796 = vmatpush1.msra.mxu0 %v2757
        %2797 = vmatprep.subr.mxu0 0.0
        %2798 = vmatpush1.msra.mxu0 %v2756
        %2799 = vmatprep.subr.mxu0 0.0
        %2800 = vmatpush1.msra.mxu0 %v2755
        %2801 = vmatprep.subr.mxu0 0.0
        %2802 = vmatpush1.msra.mxu0 %v2754
        %2803 = vmatprep.subr.mxu0 0.0
        %2804 = vmatpush1.msra.mxu0 %v2753
        %2805 = vmatprep.subr.mxu0 0.0
        %2806 = vmatpush1.msra.mxu0 %v2752
        %2807 = vmatprep.subr.mxu0 0.0
        %2808 = vmatpush2.msra.mxu0 0.0
        %2809 = vmatprep.subr.mxu0 0.0
        %2810 = vmatpush2.msra.mxu0 0.0
        %2811 = vmatprep.subr.mxu0 0.0
        %2812 = vmatpush2.msra.mxu0 0.0
        %2813 = vmatprep.subr.mxu0 0.0
        %2814 = vmatpush2.msra.mxu0 0.0
        %2815 = vmatprep.subr.mxu0 0.0
        %2816 = vmatpush2.msra.mxu0 0.0
        %2817 = vmatprep.subr.mxu0 0.0
        %2818 = vmatpush2.msra.mxu0 0.0
        %2819 = vmatprep.subr.mxu0 0.0
        %2820 = vmatpush2.msra.mxu0 0.0
        %2821 = vmatprep.subr.mxu0 0.0
        %2822 = vmatpush2.msra.mxu0 0.0
        %2823 = vmatprep.subr.mxu0 0.0
        %2824 = vmatpush2.msra.mxu0 0.0
        %2825 = vmatprep.subr.mxu0 0.0
        %2826 = vmatpush2.msra.mxu0 0.0
        %2827 = vmatprep.subr.mxu0 0.0
        %2828 = vmatpush2.msra.mxu0 0.0
        %2829 = vmatprep.subr.mxu0 0.0
        %2830 = vmatpush2.msra.mxu0 0.0
        %2831 = vmatprep.subr.mxu0 0.0
        %2832 = vmatpush2.msra.mxu0 0.0
        %2833 = vmatprep.subr.mxu0 0.0
        %2834 = vmatpush2.msra.mxu0 0.0
        %2835 = vmatprep.subr.mxu0 0.0
        %2836 = vmatpush2.msra.mxu0 0.0
        %2837 = vmatprep.subr.mxu0 0.0
        %2838 = vmatpush2.msra.mxu0 0.0
        %2839 = vmatprep.mubr.f32.mxu0 0.0
        %2840 = vmatmul.mubr.f32.gmra.mxu0 %v2750
        %v2841 = vpop.f32.mrf.mxu0
        %v2842 = vadd.f32 %v2773, %v2841
        %v2843 = vpop.f32.mrf.mxu0
        %2844 = vmatprep.mubr.f32.mxu0 0.0
        %2845 = vmatmul.mubr.f32.gmra.mxu0 %v2751
        %v2846 = vpop.f32.mrf.mxu0
        %v2847 = vadd.f32 %v2773, %v2846
        %v2848 = vpop.f32.mrf.mxu0
        %2849 = vdwg.mxu0
        %v2850 = vadd.f32 %v2842, %v2656
        %v2851 = vadd.f32 %v2847, %v2657
        %v2852 = vld [vmem:[%s689] sm:$0x1]
        %v2853 = vld [vmem:[%s692] sm:$0x1]
        %v2854 = vsel %vm721, %v2850, 0.0
        %2855 = vadd.xlane.f32.xlu0 %v2854
        %v2856 = vpop.xlane.xlu0 %2855
        %v2857 = vsel %vm721, %v2851, 0.0
        %2858 = vadd.xlane.f32.xlu0 %v2857
        %v2859 = vpop.xlane.xlu0 %2858
        %v2860 = vmul.f32 %v2856, %v2621
        %v2861 = vmul.f32 %v2859, %v2621
        %v2862 = vsub.f32 %v2850, %v2860
        %v2863 = vsub.f32 %v2851, %v2861
        %v2864 = vmul.f32 %v2862, %v2862
        %v2865 = vmul.f32 %v2863, %v2863
        %v2866 = vsel %vm721, %v2864, 0.0
        %2867 = vadd.xlane.f32.xlu0 %v2866
        %v2868 = vpop.xlane.xlu0 %2867
        %v2869 = vsel %vm721, %v2865, 0.0
        %2870 = vadd.xlane.f32.xlu0 %v2869
        %v2871 = vpop.xlane.xlu0 %2870
        %v2872 = vmul.f32 %v2868, %v2621
        %v2873 = vmul.f32 %v2871, %v2621
        %v2874 = vadd.f32 %v2872, 1e-05
        %v2875 = vadd.f32 %v2873, 1e-05
        %v2876 = vrsqrt.pop %v2874
        %v2877 = vrsqrt.pop %v2875
        %v2878 = vmul.f32 %v2862, %v2876
        %v2879 = vmul.f32 %v2863, %v2877
        %v2881 = vlaneseq
        %v2882 = vshrl.u32 %v2881, 7
        %v2883 = vsub.s32 0, %v2882
        %v2884 = vrot.slane %v2852, %v2883
        %v2886 = vmul.f32 %v2878, %v2884
        %v2887 = vmul.f32 %v2879, %v2884
        %v2889 = vlaneseq
        %v2890 = vshrl.u32 %v2889, 7
        %v2891 = vsub.s32 0, %v2890
        %v2892 = vrot.slane %v2853, %v2891
        %v2894 = vadd.f32 %v2886, %v2892
        %v2895 = vadd.f32 %v2887, %v2892
        %2896 = vst.msk [vmem:[#allocation5] sm:$0xff] %vm721, %v2894
        %2897 = vst.msk [vmem:[#allocation5 + $0x8] sm:$0xff] %vm721, %v2895
        // Predicated region
        $region85: #{tpu_custom_call.1} parent=75 // pred_check
          %p2898 = pneg %p421
        $region86: #{tpu_custom_call.1} parent=75 // pred_check_branch
          %2900 = sbr.rel (%p2898) target = $region88
        $region87: #{tpu_custom_call.1} parent=75 // pred_region
          %s2901 = smul.u32 2, %s31
          %s2903 = ssub.s32 256, 256
          %2904 = vsyncadd [#allocation4], %s2903
          %s2905 = smul.addr %s2901, 128
          %s2906 = scalar_lea.hbm %s14, %s2905
          %s2907 = sshll.u32 [#allocation5], 4
          %s2908 = int_to_ptr.vmem [resolvable:$true] %s2907
          %2913 = dma.vmem_to_hbm [thread:$0]  %s2908, 256, %s2906, [#allocation4], 128, 128, 8
        $region88: #{tpu_custom_call.1} parent=75 // pred_fallthru
          _
        // Predicated region
        $region89: #{tpu_custom_call.1} parent=75 // pred_check
          %p2914 = pneg %p421
        $region90: #{tpu_custom_call.1} parent=75 // pred_check_branch
          %2916 = sbr.rel (%p2914) target = $region92
        $region91: #{tpu_custom_call.1} parent=75 // pred_region
          %2917 = dma.done [#allocation4], 256
        $region92: #{tpu_custom_call.1} parent=75 // pred_fallthru
          _
      $region76: #{tpu_custom_call.1} parent=5 // pred_fallthru
        _
      %p2918 = scmp.le.s32.totalorder 2, %s22
      // Predicated region
      $region93: #{tpu_custom_call.1} parent=5 // pred_check
        %p2919 = pneg %p2918
      $region94: #{tpu_custom_call.1} parent=5 // pred_check_branch
        %2921 = sbr.rel (%p2919) target = $region96
      $region95: #{tpu_custom_call.1} parent=5 // pred_region
        %s2922 = ssub.s32 %s22, 2
      $region96: #{tpu_custom_call.1} parent=5 // pred_fallthru
        _
    $region6: #{tpu_custom_call.1} parent=1 // loop_footer
      %s26 = sadd.s32 1, %s22
    $region7: #{tpu_custom_call.1} parent=1 // loop_footer_branch
      %21 = sbr.rel target = $region3
    $region8: #{tpu_custom_call.1} parent=1 // loop_exit
      _
    %2923 = vsyncpa [#allocation3], 1
    %s2924 = scalar_lea.sflag [#allocation3], 1
    %2925 = vsyncpa %s2924, 1
    %2926 = vsyncpa [#allocation4], 1
    %s2927 = scalar_lea.sflag [#allocation4], 1
    %2928 = vsyncpa %s2927, 1

</llo_original>
